<compile_context>
chip_gen: v7x
topology: tpu7x:2x2x1
jax: 0.10.0
libtpu: 0.0.40
codegen_flags: <defaults>
</compile_context>

<pallas_src>
import functools

import jax
import jax.numpy as jnp
from jax.experimental import pallas as pl
from jax.experimental.pallas import tpu as pltpu

IN_DIM = 1000    # fc1 in_features
HID_DIM = 512    # fc1 out_features / fc2 in_features
OUT_DIM = 1024   # Config.AUDIO_EMBEDDING_DIM (fc2 out_features)
TM_MAX = 1024    # max batch tile (rows per grid step); sweep 512/1024/2048 when tuning


def audio_encoder_kernel(x_ref, w1_ref, b1_ref, w2_ref, b2_ref, o_ref, h_ref):
    # x_ref:  (tm, IN_DIM) f32 or bf16   (streams per grid step)
    # w1_ref: (IN_DIM, HID_DIM) bf16, b1_ref: (1, HID_DIM) f32   (VMEM-resident)
    # w2_ref: (HID_DIM, OUT_DIM) bf16, b2_ref: (1, OUT_DIM) f32  (VMEM-resident)
    # o_ref:  (tm, OUT_DIM) bf16 (default) or f32
    # h_ref:  (tm, HID_DIM) bf16 VMEM scratch for the hidden activation
    x = x_ref[...].astype(jnp.bfloat16)               # no-op when x is already bf16
    h = jnp.dot(x, w1_ref[...], preferred_element_type=jnp.float32) + b1_ref[...]
    h_ref[...] = jnp.maximum(h, 0.0).astype(jnp.bfloat16)   # F.relu(fc1(x)), bf16 home
    # nn.Dropout(0.3): identity in eval / inference mode.
    # TODO(synk): training-mode dropout (p=0.3 masking + 1/(1-p) scaling via pltpu.prng_*).
    y = jnp.dot(h_ref[...], w2_ref[...],
                preferred_element_type=jnp.float32) + b2_ref[...]
    o_ref[...] = jnp.maximum(y, 0.0).astype(o_ref.dtype)    # F.relu(fc2(x))


def prepare_params(w1, b1, w2, b2):
    """One-time parameter prep (out of the per-call hot path):
    bf16 weights (halves weight DMA, bf16 MXU path), 2-D f32 biases."""
    return (w1.astype(jnp.bfloat16),
            b1.reshape(1, HID_DIM).astype(jnp.float32),
            w2.astype(jnp.bfloat16),
            b2.reshape(1, OUT_DIM).astype(jnp.float32))


@functools.partial(jax.jit, static_argnames=("tm", "out_dtype"))
def _forward(x, w1_bf, b1_2d, w2_bf, b2_2d, *, tm, out_dtype):
    B = x.shape[0]
    grid = (pl.cdiv(B, tm),)

    x_bytes = jnp.dtype(x.dtype).itemsize
    out_bytes = jnp.dtype(out_dtype).itemsize
    flops = 2 * B * (IN_DIM * HID_DIM + HID_DIM * OUT_DIM)
    bytes_accessed = (B * IN_DIM * x_bytes + B * OUT_DIM * out_bytes
                      + (IN_DIM * HID_DIM + HID_DIM * OUT_DIM) * 2
                      + (HID_DIM + OUT_DIM) * 4)

    return pl.pallas_call(
        audio_encoder_kernel,
        out_shape=jax.ShapeDtypeStruct((B, OUT_DIM), out_dtype),
        grid=grid,
        in_specs=[
            pl.BlockSpec((tm, IN_DIM), lambda i: (i, 0)),        # x: streamed tiles
            pl.BlockSpec((IN_DIM, HID_DIM), lambda i: (0, 0)),   # w1: VMEM-resident
            pl.BlockSpec((1, HID_DIM), lambda i: (0, 0)),        # b1: VMEM-resident
            pl.BlockSpec((HID_DIM, OUT_DIM), lambda i: (0, 0)),  # w2: VMEM-resident
            pl.BlockSpec((1, OUT_DIM), lambda i: (0, 0)),        # b2: VMEM-resident
        ],
        out_specs=pl.BlockSpec((tm, OUT_DIM), lambda i: (i, 0)),
        scratch_shapes=[pltpu.VMEM((tm, HID_DIM), jnp.bfloat16)],
        compiler_params=pltpu.CompilerParams(
            dimension_semantics=("parallel",),     # batch tiles independent (v7x 2-TC)
            vmem_limit_bytes=48 * 1024 * 1024,     # headroom under v7x's 64 MiB VMEM
        ),
        cost_estimate=pl.CostEstimate(
            flops=flops, transcendentals=0, bytes_accessed=bytes_accessed),
    )(x, w1_bf, b1_2d, w2_bf, b2_2d)


def _choose_tm(B):
    """Bucketed batch tile: power of two >= 8 (avoids per-B recompiles), aims for
    >= 2 grid steps once B >= 16 (so the batch axis can split across v7x's two
    TensorCores), capped at TM_MAX."""
    tm = max(8, pl.next_power_of_2(max(B, 1)) // 2)
    return min(TM_MAX, tm)


def audio_encoder_forward(x, params, out_dtype=jnp.bfloat16):
    """x: (B, 1000) float32 or bfloat16, params from prepare_params
    -> (B, 1024) in out_dtype (bf16 default; pass jnp.float32 for f32 output)."""
    B = x.shape[0]
    tm = _choose_tm(B)
    if B < tm:
        # Zero-pad tiny batches up to one sublane-aligned tile; rows are
        # independent, so the pad rows are just sliced off afterwards.
        x_in = jnp.pad(x, ((0, tm - B), (0, 0)))
        return _forward(x_in, *params, tm=tm, out_dtype=out_dtype)[:B]
    # B >= tm: partial last tile (if any) is masked on writeback by Pallas.
    return _forward(x, *params, tm=tm, out_dtype=out_dtype)


def init_params(key):
    """Deterministic parameter init mirroring nn.Linear shapes.

    PyTorch nn.Linear(in, out) stores weight as (out, in); we store the
    transpose (in, out) so the kernel does x @ W + b.
    """
    k1, k2, k3, k4 = jax.random.split(key, 4)
    lim1 = 1.0 / jnp.sqrt(IN_DIM)
    lim2 = 1.0 / jnp.sqrt(HID_DIM)
    w1 = jax.random.uniform(k1, (IN_DIM, HID_DIM), jnp.float32, -lim1, lim1)
    b1 = jax.random.uniform(k2, (HID_DIM,), jnp.float32, -lim1, lim1)
    w2 = jax.random.uniform(k3, (HID_DIM, OUT_DIM), jnp.float32, -lim2, lim2)
    b2 = jax.random.uniform(k4, (OUT_DIM,), jnp.float32, -lim2, lim2)
    return w1, b1, w2, b2


if __name__ == "__main__":
    key = jax.random.PRNGKey(0)
    k_x, k_p = jax.random.split(key)

    B = 2
    x = jax.random.normal(k_x, (B, IN_DIM), jnp.float32)
    w1, b1, w2, b2 = init_params(k_p)
    params = prepare_params(w1, b1, w2, b2)

    # f32-input path (module's native input dtype), bf16 output.
    out = audio_encoder_forward(x, params)
    out = jax.block_until_ready(out)

    # bf16-input fast path (what an upstream bf16 producer would feed).
    out_bf16in = audio_encoder_forward(x.astype(jnp.bfloat16), params)
    out_bf16in = jax.block_until_ready(out_bf16in)

    # Pure-JAX reference with the same bf16 weight/activation rounding and f32
    # accumulation (same forward semantics as the PyTorch module in eval mode).
    w1f = params[0].astype(jnp.float32)
    w2f = params[2].astype(jnp.float32)
    xf = x.astype(jnp.bfloat16).astype(jnp.float32)
    h_ref = jnp.maximum(
        jnp.dot(xf, w1f, precision=jax.lax.Precision.HIGHEST) + b1, 0.0)
    hf = h_ref.astype(jnp.bfloat16).astype(jnp.float32)
    ref = jnp.maximum(
        jnp.dot(hf, w2f, precision=jax.lax.Precision.HIGHEST) + b2, 0.0)

    assert out.shape == (B, OUT_DIM) and out.dtype == jnp.bfloat16
    assert out_bf16in.shape == (B, OUT_DIM)
    err = float(jnp.max(jnp.abs(out.astype(jnp.float32) - ref)))
    assert jnp.allclose(out.astype(jnp.float32), ref, atol=2e-2, rtol=2e-2), err
    assert jnp.allclose(out_bf16in.astype(jnp.float32), ref, atol=2e-2, rtol=2e-2)

    print("KERNEL_OK")
</pallas_src>

<mosaic_0001>
module attributes {stable_mosaic.version = 11 : i64} {
  func.func @audio_encoder_kernel(%arg0: i32, %arg1: memref<8x1000xf32, #tpu.memory_space<vmem>>, %arg2: memref<1000x512xbf16, #tpu.memory_space<vmem>>, %arg3: memref<1x512xf32, #tpu.memory_space<vmem>>, %arg4: memref<512x1024xbf16, #tpu.memory_space<vmem>>, %arg5: memref<1x1024xf32, #tpu.memory_space<vmem>>, %arg6: memref<8x1024xbf16, #tpu.memory_space<vmem>>, %arg7: memref<8x512xbf16, #tpu.memory_space<vmem>>) attributes {dimension_semantics = [#tpu.dimension_semantics<parallel>], iteration_bounds = array<i64: 1>, scalar_prefetch = 0 : i64, scratch_operands = 1 : i64, tpu.core_type = #tpu.core_type<tc>, window_params = [{transform_indices = @transform_0, window_bounds = array<i64: 8, 1000>}, {pipeline_mode = #tpu.pipeline_mode<synchronous>, transform_indices = @transform_1, window_bounds = array<i64: 1000, 512>}, {pipeline_mode = #tpu.pipeline_mode<synchronous>, transform_indices = @transform_2, window_bounds = array<i64: 1, 512>}, {pipeline_mode = #tpu.pipeline_mode<synchronous>, transform_indices = @transform_3, window_bounds = array<i64: 512, 1024>}, {pipeline_mode = #tpu.pipeline_mode<synchronous>, transform_indices = @transform_4, window_bounds = array<i64: 1, 1024>}, {transform_indices = @transform_5, window_bounds = array<i64: 8, 1024>}]} {
    %c0 = arith.constant 0 : index
    %c0_0 = arith.constant 0 : index
    %0 = vector.load %arg1[%c0, %c0_0] : memref<8x1000xf32, #tpu.memory_space<vmem>>, vector<8x1000xf32>
    %1 = arith.truncf %0 : vector<8x1000xf32> to vector<8x1000xbf16>
    %c0_1 = arith.constant 0 : index
    %c0_2 = arith.constant 0 : index
    %2 = vector.load %arg2[%c0_1, %c0_2] : memref<1000x512xbf16, #tpu.memory_space<vmem>>, vector<1000x512xbf16>
    %cst = arith.constant dense<0.000000e+00> : vector<8x512xf32>
    %3 = tpu.matmul %1, %2, %cst {dimension_numbers = #tpu.dot_dimension_numbers<[1], [0], [0], [1], [0, 0, 1, 1], [], []>} : vector<8x1000xbf16>, vector<1000x512xbf16>, vector<8x512xf32> -> vector<8x512xf32>
    %c0_3 = arith.constant 0 : index
    %c0_4 = arith.constant 0 : index
    %4 = vector.load %arg3[%c0_3, %c0_4] : memref<1x512xf32, #tpu.memory_space<vmem>>, vector<1x512xf32>
    %5 = vector.broadcast %4 : vector<1x512xf32> to vector<8x512xf32>
    %6 = arith.addf %3, %5 : vector<8x512xf32>
    %cst_5 = arith.constant 0.000000e+00 : f32
    %7 = vector.broadcast %cst_5 : f32 to vector<8x512xf32>
    %8 = arith.maximumf %6, %7 : vector<8x512xf32>
    %9 = arith.truncf %8 : vector<8x512xf32> to vector<8x512xbf16>
    %c0_6 = arith.constant 0 : index
    %c0_7 = arith.constant 0 : index
    %10 = vector.load %arg7[%c0_6, %c0_7] : memref<8x512xbf16, #tpu.memory_space<vmem>>, vector<8x512xbf16>
    tpu.vector_store %arg7[%c0_6, %c0_7], %9 {strides = array<i32>} : memref<8x512xbf16, #tpu.memory_space<vmem>>, vector<8x512xbf16>,
    %c0_8 = arith.constant 0 : index
    %c0_9 = arith.constant 0 : index
    %11 = vector.load %arg7[%c0_8, %c0_9] : memref<8x512xbf16, #tpu.memory_space<vmem>>, vector<8x512xbf16>
    %c0_10 = arith.constant 0 : index
    %c0_11 = arith.constant 0 : index
    %12 = vector.load %arg4[%c0_10, %c0_11] : memref<512x1024xbf16, #tpu.memory_space<vmem>>, vector<512x1024xbf16>
    %cst_12 = arith.constant dense<0.000000e+00> : vector<8x1024xf32>
    %13 = tpu.matmul %11, %12, %cst_12 {dimension_numbers = #tpu.dot_dimension_numbers<[1], [0], [0], [1], [0, 0, 1, 1], [], []>} : vector<8x512xbf16>, vector<512x1024xbf16>, vector<8x1024xf32> -> vector<8x1024xf32>
    %c0_13 = arith.constant 0 : index
    %c0_14 = arith.constant 0 : index
    %14 = vector.load %arg5[%c0_13, %c0_14] : memref<1x1024xf32, #tpu.memory_space<vmem>>, vector<1x1024xf32>
    %15 = vector.broadcast %14 : vector<1x1024xf32> to vector<8x1024xf32>
    %16 = arith.addf %13, %15 : vector<8x1024xf32>
    %cst_15 = arith.constant 0.000000e+00 : f32
    %17 = vector.broadcast %cst_15 : f32 to vector<8x1024xf32>
    %18 = arith.maximumf %16, %17 : vector<8x1024xf32>
    %19 = arith.truncf %18 : vector<8x1024xf32> to vector<8x1024xbf16>
    %c0_16 = arith.constant 0 : index
    %c0_17 = arith.constant 0 : index
    %20 = vector.load %arg6[%c0_16, %c0_17] : memref<8x1024xbf16, #tpu.memory_space<vmem>>, vector<8x1024xbf16>
    tpu.vector_store %arg6[%c0_16, %c0_17], %19 {strides = array<i32>} : memref<8x1024xbf16, #tpu.memory_space<vmem>>, vector<8x1024xbf16>,
    return
  }
  func.func @transform_0(%arg0: i32) -> (i32, i32) {
    %c0_i32 = arith.constant 0 : i32
    %c0_i32_0 = arith.constant 0 : i32
    return %arg0, %c0_i32 : i32, i32
  }
  func.func @transform_1(%arg0: i32) -> (i32, i32) {
    %c0_i32 = arith.constant 0 : i32
    %c0_i32_0 = arith.constant 0 : i32
    %c0_i32_1 = arith.constant 0 : i32
    return %c0_i32, %c0_i32_0 : i32, i32
  }
  func.func @transform_2(%arg0: i32) -> (i32, i32) {
    %c0_i32 = arith.constant 0 : i32
    %c0_i32_0 = arith.constant 0 : i32
    %c0_i32_1 = arith.constant 0 : i32
    return %c0_i32, %c0_i32_0 : i32, i32
  }
  func.func @transform_3(%arg0: i32) -> (i32, i32) {
    %c0_i32 = arith.constant 0 : i32
    %c0_i32_0 = arith.constant 0 : i32
    %c0_i32_1 = arith.constant 0 : i32
    return %c0_i32, %c0_i32_0 : i32, i32
  }
  func.func @transform_4(%arg0: i32) -> (i32, i32) {
    %c0_i32 = arith.constant 0 : i32
    %c0_i32_0 = arith.constant 0 : i32
    %c0_i32_1 = arith.constant 0 : i32
    return %c0_i32, %c0_i32_0 : i32, i32
  }
  func.func @transform_5(%arg0: i32) -> (i32, i32) {
    %c0_i32 = arith.constant 0 : i32
    %c0_i32_0 = arith.constant 0 : i32
    return %arg0, %c0_i32 : i32, i32
  }
}

</mosaic_0001>

<llo_original>
// kernel: _forward.1
$region0: #{_forward.1}
  #allocation0 [shape = 'u32[]', space=smem, size = 0x4, offset = 0x4, fixed_abs, tag = 'smem constant byte address 0x4 - core index']
  #allocation1 [shape = 'u32[144,128]{1,0:T(1,128)}', space=vmem, size = 0x12000, scoped, tag = 'internal scratch']
  #allocation2 [shape = 'bf16[8,512]{1,0:T(8,128)(2,1)}', space=vmem, size = 0x2000, scoped, tag = 'scratch operand']
  %s0 = inlined_call_operand.hbm [shape: f32[8,1000], index: 0, kind: input, shape index: {}]
  %s1 = inlined_call_operand.hbm [shape: bf16[1000,512], index: 1, kind: input, shape index: {}]
  %s2 = inlined_call_operand.vmem [shape: f32[1,512], index: 2, kind: input, shape index: {}]
  %s3 = inlined_call_operand.hbm [shape: bf16[512,1024], index: 3, kind: input, shape index: {}]
  %s4 = inlined_call_operand.vmem [shape: f32[1,1024], index: 4, kind: input, shape index: {}]
  %s5 = inlined_call_operand.hbm [shape: bf16[8,1024], index: 5, kind: output, shape index: {}]
  %s6 = sld [smem:[#allocation0]]
  $region42: #{_forward.1} parent=0
    _
  %s8 = ssub.s32 1, %s6
  %s9 = scalar_select 0, %s8, %s6
  $region1: #{_forward.1} parent=0
    #allocation3 [shape = 'u8[32768]{0}', space=vmem, size = 0x8000, scoped, tag = 'input window, operand 0, single buffered']
    #allocation4 [shape = 's32[1]{0}', space=sflag, size = 0x4, scoped, tag = 'scoped memory for _forward.1']
    #allocation5 [shape = 's32[1]{0}', space=sflag, size = 0x4, scoped, tag = 'scoped memory for _forward.1']
    #allocation6 [shape = 'u8[1024000]{0}', space=vmem, size = 0xfa000, scoped, tag = 'input window, operand 1, single buffered']
    #allocation7 [shape = 's32[1]{0}', space=sflag, size = 0x4, scoped, tag = 'scoped memory for _forward.1']
    #allocation8 [shape = 'u8[1048576]{0}', space=vmem, size = 0x100000, scoped, tag = 'input window, operand 3, single buffered']
    #allocation9 [shape = 'u8[16384]{0}', space=vmem, size = 0x4000, scoped, tag = 'output window, operand 0, single buffered']
    %10 = vsyncpa [#allocation4], 0
    %11 = vsyncpa [#allocation7], 0
    %12 = vsyncpa [#allocation5], 0
    // Predicated region
    $region2: #{_forward.1} parent=1 // pred_check
      _
    $region3: #{_forward.1} parent=1 // pred_check_branch
      %14 = sbr.rel (0) target = $region5
    $region4: #{_forward.1} parent=1 // pred_region
      %s16 = ssub.s32 1024, 1024
      %17 = vsyncadd [#allocation4], %s16
      %s19 = sshll.u32 [#allocation3], 4
      %s20 = int_to_ptr.vmem [resolvable:$true] %s19
      %22 = dma.hbm_to_vmem [thread:$0]  %s0, 1024, %s20, [#allocation4]
    $region5: #{_forward.1} parent=1 // pred_fallthru
      _
    // Predicated region
    $region6: #{_forward.1} parent=1 // pred_check
      _
    $region7: #{_forward.1} parent=1 // pred_check_branch
      %24 = sbr.rel (0) target = $region9
    $region8: #{_forward.1} parent=1 // pred_region
      %s26 = ssub.s32 32000, 32000
      %27 = vsyncadd [#allocation7], %s26
      %s28 = sshll.u32 [#allocation6], 4
      %s29 = int_to_ptr.vmem [resolvable:$true] %s28
      %34 = dma.hbm_to_vmem [thread:$0]  %s1, 32000, %s29, [#allocation7], 256, 256, 16
    $region9: #{_forward.1} parent=1 // pred_fallthru
      _
    // Predicated region
    $region10: #{_forward.1} parent=1 // pred_check
      _
    $region11: #{_forward.1} parent=1 // pred_check_branch
      %36 = sbr.rel (0) target = $region13
    $region12: #{_forward.1} parent=1 // pred_region
      _
    $region13: #{_forward.1} parent=1 // pred_fallthru
      _
    // Predicated region
    $region14: #{_forward.1} parent=1 // pred_check
      _
    $region15: #{_forward.1} parent=1 // pred_check_branch
      %38 = sbr.rel (0) target = $region17
    $region16: #{_forward.1} parent=1 // pred_region
      %s40 = ssub.s32 32768, 32768
      %41 = vsyncadd [#allocation7], %s40
      %s42 = sshll.u32 [#allocation8], 4
      %s43 = int_to_ptr.vmem [resolvable:$true] %s42
      %48 = dma.hbm_to_vmem [thread:$0]  %s3, 32768, %s43, [#allocation7], 512, 512, 32
    $region17: #{_forward.1} parent=1 // pred_fallthru
      _
    // Predicated region
    $region18: #{_forward.1} parent=1 // pred_check
      _
    $region19: #{_forward.1} parent=1 // pred_check_branch
      %50 = sbr.rel (0) target = $region21
    $region20: #{_forward.1} parent=1 // pred_region
      _
    $region21: #{_forward.1} parent=1 // pred_fallthru
      _
    // Predicated region
    $region22: #{_forward.1} parent=1 // pred_check
      _
    $region23: #{_forward.1} parent=1 // pred_check_branch
      %52 = sbr.rel (0) target = $region25
    $region24: #{_forward.1} parent=1 // pred_region
      %53 = dma.done [#allocation4], 1024
    $region25: #{_forward.1} parent=1 // pred_fallthru
      _
    // Predicated region
    $region26: #{_forward.1} parent=1 // pred_check
      _
    $region27: #{_forward.1} parent=1 // pred_check_branch
      %55 = sbr.rel (0) target = $region29
    $region28: #{_forward.1} parent=1 // pred_region
      %56 = dma.done [#allocation7], 32000
    $region29: #{_forward.1} parent=1 // pred_fallthru
      _
    // Predicated region
    $region30: #{_forward.1} parent=1 // pred_check
      _
    $region31: #{_forward.1} parent=1 // pred_check_branch
      %58 = sbr.rel (0) target = $region33
    $region32: #{_forward.1} parent=1 // pred_region
      %59 = dma.done [#allocation7], 32768
    $region33: #{_forward.1} parent=1 // pred_fallthru
      _
    %v61 = vld [vmem:[#allocation3] sm:$0xff]
    %v62 = vld [vmem:[#allocation3 + $0x8] sm:$0xff]
    %v63 = vld [vmem:[#allocation3 + $0x10] sm:$0xff]
    %v64 = vld [vmem:[#allocation3 + $0x18] sm:$0xff]
    %v65 = vld [vmem:[#allocation3 + $0x20] sm:$0xff]
    %v66 = vld [vmem:[#allocation3 + $0x28] sm:$0xff]
    %v67 = vld [vmem:[#allocation3 + $0x30] sm:$0xff]
    %v68 = vld [vmem:[#allocation3 + $0x38] sm:$0xff]
    %v69 = vpack.c.bf16 %v61, %v61
    %v70 = vpack.c.bf16 %v62, %v62
    %v71 = vpack.c.bf16 %v63, %v63
    %v72 = vpack.c.bf16 %v64, %v64
    %v73 = vpack.c.bf16 %v65, %v65
    %v74 = vpack.c.bf16 %v66, %v66
    %v75 = vpack.c.bf16 %v67, %v67
    %v76 = vpack.c.bf16 %v68, %v68
    %v77 = vld [vmem:[#allocation6] sm:$0xff]
    %v78 = vld [vmem:[#allocation6 + $0x8] sm:$0xff]
    %v79 = vld [vmem:[#allocation6 + $0x10] sm:$0xff]
    %v80 = vld [vmem:[#allocation6 + $0x18] sm:$0xff]
    %v81 = vld [vmem:[#allocation6 + $0x20] sm:$0xff]
    %v82 = vld [vmem:[#allocation6 + $0x28] sm:$0xff]
    %v83 = vld [vmem:[#allocation6 + $0x30] sm:$0xff]
    %v84 = vld [vmem:[#allocation6 + $0x38] sm:$0xff]
    %v85 = vld [vmem:[#allocation6 + $0x40] sm:$0xff]
    %v86 = vld [vmem:[#allocation6 + $0x48] sm:$0xff]
    %v87 = vld [vmem:[#allocation6 + $0x50] sm:$0xff]
    %v88 = vld [vmem:[#allocation6 + $0x58] sm:$0xff]
    %v89 = vld [vmem:[#allocation6 + $0x60] sm:$0xff]
    %v90 = vld [vmem:[#allocation6 + $0x68] sm:$0xff]
    %v91 = vld [vmem:[#allocation6 + $0x70] sm:$0xff]
    %v92 = vld [vmem:[#allocation6 + $0x78] sm:$0xff]
    %v93 = vld [vmem:[#allocation6 + $0x80] sm:$0xff]
    %v94 = vld [vmem:[#allocation6 + $0x88] sm:$0xff]
    %v95 = vld [vmem:[#allocation6 + $0x90] sm:$0xff]
    %v96 = vld [vmem:[#allocation6 + $0x98] sm:$0xff]
    %v97 = vld [vmem:[#allocation6 + $0xa0] sm:$0xff]
    %v98 = vld [vmem:[#allocation6 + $0xa8] sm:$0xff]
    %v99 = vld [vmem:[#allocation6 + $0xb0] sm:$0xff]
    %v100 = vld [vmem:[#allocation6 + $0xb8] sm:$0xff]
    %v101 = vld [vmem:[#allocation6 + $0xc0] sm:$0xff]
    %v102 = vld [vmem:[#allocation6 + $0xc8] sm:$0xff]
    %v103 = vld [vmem:[#allocation6 + $0xd0] sm:$0xff]
    %v104 = vld [vmem:[#allocation6 + $0xd8] sm:$0xff]
    %v105 = vld [vmem:[#allocation6 + $0xe0] sm:$0xff]
    %v106 = vld [vmem:[#allocation6 + $0xe8] sm:$0xff]
    %v107 = vld [vmem:[#allocation6 + $0xf0] sm:$0xff]
    %v108 = vld [vmem:[#allocation6 + $0xf8] sm:$0xff]
    %v109 = vld [vmem:[#allocation6 + $0x100] sm:$0xff]
    %v110 = vld [vmem:[#allocation6 + $0x108] sm:$0xff]
    %v111 = vld [vmem:[#allocation6 + $0x110] sm:$0xff]
    %v112 = vld [vmem:[#allocation6 + $0x118] sm:$0xff]
    %v113 = vld [vmem:[#allocation6 + $0x120] sm:$0xff]
    %v114 = vld [vmem:[#allocation6 + $0x128] sm:$0xff]
    %v115 = vld [vmem:[#allocation6 + $0x130] sm:$0xff]
    %v116 = vld [vmem:[#allocation6 + $0x138] sm:$0xff]
    %v117 = vld [vmem:[#allocation6 + $0x140] sm:$0xff]
    %v118 = vld [vmem:[#allocation6 + $0x148] sm:$0xff]
    %v119 = vld [vmem:[#allocation6 + $0x150] sm:$0xff]
    %v120 = vld [vmem:[#allocation6 + $0x158] sm:$0xff]
    %v121 = vld [vmem:[#allocation6 + $0x160] sm:$0xff]
    %v122 = vld [vmem:[#allocation6 + $0x168] sm:$0xff]
    %v123 = vld [vmem:[#allocation6 + $0x170] sm:$0xff]
    %v124 = vld [vmem:[#allocation6 + $0x178] sm:$0xff]
    %v125 = vld [vmem:[#allocation6 + $0x180] sm:$0xff]
    %v126 = vld [vmem:[#allocation6 + $0x188] sm:$0xff]
    %v127 = vld [vmem:[#allocation6 + $0x190] sm:$0xff]
    %v128 = vld [vmem:[#allocation6 + $0x198] sm:$0xff]
    %v129 = vld [vmem:[#allocation6 + $0x1a0] sm:$0xff]
    %v130 = vld [vmem:[#allocation6 + $0x1a8] sm:$0xff]
    %v131 = vld [vmem:[#allocation6 + $0x1b0] sm:$0xff]
    %v132 = vld [vmem:[#allocation6 + $0x1b8] sm:$0xff]
    %v133 = vld [vmem:[#allocation6 + $0x1c0] sm:$0xff]
    %v134 = vld [vmem:[#allocation6 + $0x1c8] sm:$0xff]
    %v135 = vld [vmem:[#allocation6 + $0x1d0] sm:$0xff]
    %v136 = vld [vmem:[#allocation6 + $0x1d8] sm:$0xff]
    %v137 = vld [vmem:[#allocation6 + $0x1e0] sm:$0xff]
    %v138 = vld [vmem:[#allocation6 + $0x1e8] sm:$0xff]
    %v139 = vld [vmem:[#allocation6 + $0x1f0] sm:$0xff]
    %v140 = vld [vmem:[#allocation6 + $0x1f8] sm:$0xff]
    %v141 = vld [vmem:[#allocation6 + $0x200] sm:$0xff]
    %v142 = vld [vmem:[#allocation6 + $0x208] sm:$0xff]
    %v143 = vld [vmem:[#allocation6 + $0x210] sm:$0xff]
    %v144 = vld [vmem:[#allocation6 + $0x218] sm:$0xff]
    %v145 = vld [vmem:[#allocation6 + $0x220] sm:$0xff]
    %v146 = vld [vmem:[#allocation6 + $0x228] sm:$0xff]
    %v147 = vld [vmem:[#allocation6 + $0x230] sm:$0xff]
    %v148 = vld [vmem:[#allocation6 + $0x238] sm:$0xff]
    %v149 = vld [vmem:[#allocation6 + $0x240] sm:$0xff]
    %v150 = vld [vmem:[#allocation6 + $0x248] sm:$0xff]
    %v151 = vld [vmem:[#allocation6 + $0x250] sm:$0xff]
    %v152 = vld [vmem:[#allocation6 + $0x258] sm:$0xff]
    %v153 = vld [vmem:[#allocation6 + $0x260] sm:$0xff]
    %v154 = vld [vmem:[#allocation6 + $0x268] sm:$0xff]
    %v155 = vld [vmem:[#allocation6 + $0x270] sm:$0xff]
    %v156 = vld [vmem:[#allocation6 + $0x278] sm:$0xff]
    %v157 = vld [vmem:[#allocation6 + $0x280] sm:$0xff]
    %v158 = vld [vmem:[#allocation6 + $0x288] sm:$0xff]
    %v159 = vld [vmem:[#allocation6 + $0x290] sm:$0xff]
    %v160 = vld [vmem:[#allocation6 + $0x298] sm:$0xff]
    %v161 = vld [vmem:[#allocation6 + $0x2a0] sm:$0xff]
    %v162 = vld [vmem:[#allocation6 + $0x2a8] sm:$0xff]
    %v163 = vld [vmem:[#allocation6 + $0x2b0] sm:$0xff]
    %v164 = vld [vmem:[#allocation6 + $0x2b8] sm:$0xff]
    %v165 = vld [vmem:[#allocation6 + $0x2c0] sm:$0xff]
    %v166 = vld [vmem:[#allocation6 + $0x2c8] sm:$0xff]
    %v167 = vld [vmem:[#allocation6 + $0x2d0] sm:$0xff]
    %v168 = vld [vmem:[#allocation6 + $0x2d8] sm:$0xff]
    %v169 = vld [vmem:[#allocation6 + $0x2e0] sm:$0xff]
    %v170 = vld [vmem:[#allocation6 + $0x2e8] sm:$0xff]
    %v171 = vld [vmem:[#allocation6 + $0x2f0] sm:$0xff]
    %v172 = vld [vmem:[#allocation6 + $0x2f8] sm:$0xff]
    %v173 = vld [vmem:[#allocation6 + $0x300] sm:$0xff]
    %v174 = vld [vmem:[#allocation6 + $0x308] sm:$0xff]
    %v175 = vld [vmem:[#allocation6 + $0x310] sm:$0xff]
    %v176 = vld [vmem:[#allocation6 + $0x318] sm:$0xff]
    %v177 = vld [vmem:[#allocation6 + $0x320] sm:$0xff]
    %v178 = vld [vmem:[#allocation6 + $0x328] sm:$0xff]
    %v179 = vld [vmem:[#allocation6 + $0x330] sm:$0xff]
    %v180 = vld [vmem:[#allocation6 + $0x338] sm:$0xff]
    %v181 = vld [vmem:[#allocation6 + $0x340] sm:$0xff]
    %v182 = vld [vmem:[#allocation6 + $0x348] sm:$0xff]
    %v183 = vld [vmem:[#allocation6 + $0x350] sm:$0xff]
    %v184 = vld [vmem:[#allocation6 + $0x358] sm:$0xff]
    %v185 = vld [vmem:[#allocation6 + $0x360] sm:$0xff]
    %v186 = vld [vmem:[#allocation6 + $0x368] sm:$0xff]
    %v187 = vld [vmem:[#allocation6 + $0x370] sm:$0xff]
    %v188 = vld [vmem:[#allocation6 + $0x378] sm:$0xff]
    %v189 = vld [vmem:[#allocation6 + $0x380] sm:$0xff]
    %v190 = vld [vmem:[#allocation6 + $0x388] sm:$0xff]
    %v191 = vld [vmem:[#allocation6 + $0x390] sm:$0xff]
    %v192 = vld [vmem:[#allocation6 + $0x398] sm:$0xff]
    %v193 = vld [vmem:[#allocation6 + $0x3a0] sm:$0xff]
    %v194 = vld [vmem:[#allocation6 + $0x3a8] sm:$0xff]
    %v195 = vld [vmem:[#allocation6 + $0x3b0] sm:$0xff]
    %v196 = vld [vmem:[#allocation6 + $0x3b8] sm:$0xff]
    %v197 = vld [vmem:[#allocation6 + $0x3c0] sm:$0xff]
    %v198 = vld [vmem:[#allocation6 + $0x3c8] sm:$0xff]
    %v199 = vld [vmem:[#allocation6 + $0x3d0] sm:$0xff]
    %v200 = vld [vmem:[#allocation6 + $0x3d8] sm:$0xff]
    %v201 = vld [vmem:[#allocation6 + $0x3e0] sm:$0xff]
    %v202 = vld [vmem:[#allocation6 + $0x3e8] sm:$0xff]
    %v203 = vld [vmem:[#allocation6 + $0x3f0] sm:$0xff]
    %v204 = vld [vmem:[#allocation6 + $0x3f8] sm:$0xff]
    %v205 = vld [vmem:[#allocation6 + $0x400] sm:$0xff]
    %v206 = vld [vmem:[#allocation6 + $0x408] sm:$0xff]
    %v207 = vld [vmem:[#allocation6 + $0x410] sm:$0xff]
    %v208 = vld [vmem:[#allocation6 + $0x418] sm:$0xff]
    %v209 = vld [vmem:[#allocation6 + $0x420] sm:$0xff]
    %v210 = vld [vmem:[#allocation6 + $0x428] sm:$0xff]
    %v211 = vld [vmem:[#allocation6 + $0x430] sm:$0xff]
    %v212 = vld [vmem:[#allocation6 + $0x438] sm:$0xff]
    %v213 = vld [vmem:[#allocation6 + $0x440] sm:$0xff]
    %v214 = vld [vmem:[#allocation6 + $0x448] sm:$0xff]
    %v215 = vld [vmem:[#allocation6 + $0x450] sm:$0xff]
    %v216 = vld [vmem:[#allocation6 + $0x458] sm:$0xff]
    %v217 = vld [vmem:[#allocation6 + $0x460] sm:$0xff]
    %v218 = vld [vmem:[#allocation6 + $0x468] sm:$0xff]
    %v219 = vld [vmem:[#allocation6 + $0x470] sm:$0xff]
    %v220 = vld [vmem:[#allocation6 + $0x478] sm:$0xff]
    %v221 = vld [vmem:[#allocation6 + $0x480] sm:$0xff]
    %v222 = vld [vmem:[#allocation6 + $0x488] sm:$0xff]
    %v223 = vld [vmem:[#allocation6 + $0x490] sm:$0xff]
    %v224 = vld [vmem:[#allocation6 + $0x498] sm:$0xff]
    %v225 = vld [vmem:[#allocation6 + $0x4a0] sm:$0xff]
    %v226 = vld [vmem:[#allocation6 + $0x4a8] sm:$0xff]
    %v227 = vld [vmem:[#allocation6 + $0x4b0] sm:$0xff]
    %v228 = vld [vmem:[#allocation6 + $0x4b8] sm:$0xff]
    %v229 = vld [vmem:[#allocation6 + $0x4c0] sm:$0xff]
    %v230 = vld [vmem:[#allocation6 + $0x4c8] sm:$0xff]
    %v231 = vld [vmem:[#allocation6 + $0x4d0] sm:$0xff]
    %v232 = vld [vmem:[#allocation6 + $0x4d8] sm:$0xff]
    %v233 = vld [vmem:[#allocation6 + $0x4e0] sm:$0xff]
    %v234 = vld [vmem:[#allocation6 + $0x4e8] sm:$0xff]
    %v235 = vld [vmem:[#allocation6 + $0x4f0] sm:$0xff]
    %v236 = vld [vmem:[#allocation6 + $0x4f8] sm:$0xff]
    %v237 = vld [vmem:[#allocation6 + $0x500] sm:$0xff]
    %v238 = vld [vmem:[#allocation6 + $0x508] sm:$0xff]
    %v239 = vld [vmem:[#allocation6 + $0x510] sm:$0xff]
    %v240 = vld [vmem:[#allocation6 + $0x518] sm:$0xff]
    %v241 = vld [vmem:[#allocation6 + $0x520] sm:$0xff]
    %v242 = vld [vmem:[#allocation6 + $0x528] sm:$0xff]
    %v243 = vld [vmem:[#allocation6 + $0x530] sm:$0xff]
    %v244 = vld [vmem:[#allocation6 + $0x538] sm:$0xff]
    %v245 = vld [vmem:[#allocation6 + $0x540] sm:$0xff]
    %v246 = vld [vmem:[#allocation6 + $0x548] sm:$0xff]
    %v247 = vld [vmem:[#allocation6 + $0x550] sm:$0xff]
    %v248 = vld [vmem:[#allocation6 + $0x558] sm:$0xff]
    %v249 = vld [vmem:[#allocation6 + $0x560] sm:$0xff]
    %v250 = vld [vmem:[#allocation6 + $0x568] sm:$0xff]
    %v251 = vld [vmem:[#allocation6 + $0x570] sm:$0xff]
    %v252 = vld [vmem:[#allocation6 + $0x578] sm:$0xff]
    %v253 = vld [vmem:[#allocation6 + $0x580] sm:$0xff]
    %v254 = vld [vmem:[#allocation6 + $0x588] sm:$0xff]
    %v255 = vld [vmem:[#allocation6 + $0x590] sm:$0xff]
    %v256 = vld [vmem:[#allocation6 + $0x598] sm:$0xff]
    %v257 = vld [vmem:[#allocation6 + $0x5a0] sm:$0xff]
    %v258 = vld [vmem:[#allocation6 + $0x5a8] sm:$0xff]
    %v259 = vld [vmem:[#allocation6 + $0x5b0] sm:$0xff]
    %v260 = vld [vmem:[#allocation6 + $0x5b8] sm:$0xff]
    %v261 = vld [vmem:[#allocation6 + $0x5c0] sm:$0xff]
    %v262 = vld [vmem:[#allocation6 + $0x5c8] sm:$0xff]
    %v263 = vld [vmem:[#allocation6 + $0x5d0] sm:$0xff]
    %v264 = vld [vmem:[#allocation6 + $0x5d8] sm:$0xff]
    %v265 = vld [vmem:[#allocation6 + $0x5e0] sm:$0xff]
    %v266 = vld [vmem:[#allocation6 + $0x5e8] sm:$0xff]
    %v267 = vld [vmem:[#allocation6 + $0x5f0] sm:$0xff]
    %v268 = vld [vmem:[#allocation6 + $0x5f8] sm:$0xff]
    %v269 = vld [vmem:[#allocation6 + $0x600] sm:$0xff]
    %v270 = vld [vmem:[#allocation6 + $0x608] sm:$0xff]
    %v271 = vld [vmem:[#allocation6 + $0x610] sm:$0xff]
    %v272 = vld [vmem:[#allocation6 + $0x618] sm:$0xff]
    %v273 = vld [vmem:[#allocation6 + $0x620] sm:$0xff]
    %v274 = vld [vmem:[#allocation6 + $0x628] sm:$0xff]
    %v275 = vld [vmem:[#allocation6 + $0x630] sm:$0xff]
    %v276 = vld [vmem:[#allocation6 + $0x638] sm:$0xff]
    %v277 = vld [vmem:[#allocation6 + $0x640] sm:$0xff]
    %v278 = vld [vmem:[#allocation6 + $0x648] sm:$0xff]
    %v279 = vld [vmem:[#allocation6 + $0x650] sm:$0xff]
    %v280 = vld [vmem:[#allocation6 + $0x658] sm:$0xff]
    %v281 = vld [vmem:[#allocation6 + $0x660] sm:$0xff]
    %v282 = vld [vmem:[#allocation6 + $0x668] sm:$0xff]
    %v283 = vld [vmem:[#allocation6 + $0x670] sm:$0xff]
    %v284 = vld [vmem:[#allocation6 + $0x678] sm:$0xff]
    %v285 = vld [vmem:[#allocation6 + $0x680] sm:$0xff]
    %v286 = vld [vmem:[#allocation6 + $0x688] sm:$0xff]
    %v287 = vld [vmem:[#allocation6 + $0x690] sm:$0xff]
    %v288 = vld [vmem:[#allocation6 + $0x698] sm:$0xff]
    %v289 = vld [vmem:[#allocation6 + $0x6a0] sm:$0xff]
    %v290 = vld [vmem:[#allocation6 + $0x6a8] sm:$0xff]
    %v291 = vld [vmem:[#allocation6 + $0x6b0] sm:$0xff]
    %v292 = vld [vmem:[#allocation6 + $0x6b8] sm:$0xff]
    %v293 = vld [vmem:[#allocation6 + $0x6c0] sm:$0xff]
    %v294 = vld [vmem:[#allocation6 + $0x6c8] sm:$0xff]
    %v295 = vld [vmem:[#allocation6 + $0x6d0] sm:$0xff]
    %v296 = vld [vmem:[#allocation6 + $0x6d8] sm:$0xff]
    %v297 = vld [vmem:[#allocation6 + $0x6e0] sm:$0xff]
    %v298 = vld [vmem:[#allocation6 + $0x6e8] sm:$0xff]
    %v299 = vld [vmem:[#allocation6 + $0x6f0] sm:$0xff]
    %v300 = vld [vmem:[#allocation6 + $0x6f8] sm:$0xff]
    %v301 = vld [vmem:[#allocation6 + $0x700] sm:$0xff]
    %v302 = vld [vmem:[#allocation6 + $0x708] sm:$0xff]
    %v303 = vld [vmem:[#allocation6 + $0x710] sm:$0xff]
    %v304 = vld [vmem:[#allocation6 + $0x718] sm:$0xff]
    %v305 = vld [vmem:[#allocation6 + $0x720] sm:$0xff]
    %v306 = vld [vmem:[#allocation6 + $0x728] sm:$0xff]
    %v307 = vld [vmem:[#allocation6 + $0x730] sm:$0xff]
    %v308 = vld [vmem:[#allocation6 + $0x738] sm:$0xff]
    %v309 = vld [vmem:[#allocation6 + $0x740] sm:$0xff]
    %v310 = vld [vmem:[#allocation6 + $0x748] sm:$0xff]
    %v311 = vld [vmem:[#allocation6 + $0x750] sm:$0xff]
    %v312 = vld [vmem:[#allocation6 + $0x758] sm:$0xff]
    %v313 = vld [vmem:[#allocation6 + $0x760] sm:$0xff]
    %v314 = vld [vmem:[#allocation6 + $0x768] sm:$0xff]
    %v315 = vld [vmem:[#allocation6 + $0x770] sm:$0xff]
    %v316 = vld [vmem:[#allocation6 + $0x778] sm:$0xff]
    %v317 = vld [vmem:[#allocation6 + $0x780] sm:$0xff]
    %v318 = vld [vmem:[#allocation6 + $0x788] sm:$0xff]
    %v319 = vld [vmem:[#allocation6 + $0x790] sm:$0xff]
    %v320 = vld [vmem:[#allocation6 + $0x798] sm:$0xff]
    %v321 = vld [vmem:[#allocation6 + $0x7a0] sm:$0xff]
    %v322 = vld [vmem:[#allocation6 + $0x7a8] sm:$0xff]
    %v323 = vld [vmem:[#allocation6 + $0x7b0] sm:$0xff]
    %v324 = vld [vmem:[#allocation6 + $0x7b8] sm:$0xff]
    %v325 = vld [vmem:[#allocation6 + $0x7c0] sm:$0xff]
    %v326 = vld [vmem:[#allocation6 + $0x7c8] sm:$0xff]
    %v327 = vld [vmem:[%s2] sm:$0xf]
    %v329 = vlaneseq
    %v330 = vshrl.u32 %v329, 7
    %v331 = vsub.s32 0, %v330
    %v332 = vrot.slane %v327, %v331
    %v333 = vlaneseq
    %v334 = vshrl.u32 %v333, 7
    %v335 = vsub.s32 1, %v334
    %v336 = vrot.slane %v327, %v335
    %v337 = vlaneseq
    %v338 = vshrl.u32 %v337, 7
    %v339 = vsub.s32 2, %v338
    %v340 = vrot.slane %v327, %v339
    %v341 = vlaneseq
    %v342 = vshrl.u32 %v341, 7
    %v343 = vsub.s32 3, %v342
    %v344 = vrot.slane %v327, %v343
    %v599 = vunpack.c.l.b16 %v77
    %v600 = vunpack.c.h.b16 %v77
    %v601 = vunpack.c.l.b16 %v78
    %v602 = vunpack.c.h.b16 %v78
    %v603 = vunpack.c.l.b16 %v79
    %v604 = vunpack.c.h.b16 %v79
    %v605 = vunpack.c.l.b16 %v80
    %v606 = vunpack.c.h.b16 %v80
    %v607 = vunpack.c.l.b16 %v81
    %v608 = vunpack.c.h.b16 %v81
    %v609 = vunpack.c.l.b16 %v82
    %v610 = vunpack.c.h.b16 %v82
    %v611 = vunpack.c.l.b16 %v83
    %v612 = vunpack.c.h.b16 %v83
    %v613 = vunpack.c.l.b16 %v84
    %v614 = vunpack.c.h.b16 %v84
    %v615 = vunpack.c.l.b16 %v85
    %v616 = vunpack.c.h.b16 %v85
    %v617 = vunpack.c.l.b16 %v86
    %v618 = vunpack.c.h.b16 %v86
    %v619 = vunpack.c.l.b16 %v87
    %v620 = vunpack.c.h.b16 %v87
    %v621 = vunpack.c.l.b16 %v88
    %v622 = vunpack.c.h.b16 %v88
    %v623 = vunpack.c.l.b16 %v89
    %v624 = vunpack.c.h.b16 %v89
    %v625 = vunpack.c.l.b16 %v90
    %v626 = vunpack.c.h.b16 %v90
    %v627 = vunpack.c.l.b16 %v91
    %v628 = vunpack.c.h.b16 %v91
    %v629 = vunpack.c.l.b16 %v92
    %v630 = vunpack.c.h.b16 %v92
    %v631 = vunpack.c.l.b16 %v93
    %v632 = vunpack.c.h.b16 %v93
    %v633 = vunpack.c.l.b16 %v94
    %v634 = vunpack.c.h.b16 %v94
    %v635 = vunpack.c.l.b16 %v95
    %v636 = vunpack.c.h.b16 %v95
    %v637 = vunpack.c.l.b16 %v96
    %v638 = vunpack.c.h.b16 %v96
    %v639 = vunpack.c.l.b16 %v97
    %v640 = vunpack.c.h.b16 %v97
    %v641 = vunpack.c.l.b16 %v98
    %v642 = vunpack.c.h.b16 %v98
    %v643 = vunpack.c.l.b16 %v99
    %v644 = vunpack.c.h.b16 %v99
    %v645 = vunpack.c.l.b16 %v100
    %v646 = vunpack.c.h.b16 %v100
    %v647 = vunpack.c.l.b16 %v101
    %v648 = vunpack.c.h.b16 %v101
    %v649 = vunpack.c.l.b16 %v102
    %v650 = vunpack.c.h.b16 %v102
    %v651 = vunpack.c.l.b16 %v103
    %v652 = vunpack.c.h.b16 %v103
    %v653 = vunpack.c.l.b16 %v104
    %v654 = vunpack.c.h.b16 %v104
    %v655 = vunpack.c.l.b16 %v105
    %v656 = vunpack.c.h.b16 %v105
    %v657 = vunpack.c.l.b16 %v106
    %v658 = vunpack.c.h.b16 %v106
    %v659 = vunpack.c.l.b16 %v107
    %v660 = vunpack.c.h.b16 %v107
    %v661 = vunpack.c.l.b16 %v108
    %v662 = vunpack.c.h.b16 %v108
    %v663 = vunpack.c.l.b16 %v109
    %v664 = vunpack.c.h.b16 %v109
    %v665 = vunpack.c.l.b16 %v110
    %v666 = vunpack.c.h.b16 %v110
    %v667 = vunpack.c.l.b16 %v111
    %v668 = vunpack.c.h.b16 %v111
    %v669 = vunpack.c.l.b16 %v112
    %v670 = vunpack.c.h.b16 %v112
    %v671 = vunpack.c.l.b16 %v113
    %v672 = vunpack.c.h.b16 %v113
    %v673 = vunpack.c.l.b16 %v114
    %v674 = vunpack.c.h.b16 %v114
    %v675 = vunpack.c.l.b16 %v115
    %v676 = vunpack.c.h.b16 %v115
    %v677 = vunpack.c.l.b16 %v116
    %v678 = vunpack.c.h.b16 %v116
    %v679 = vunpack.c.l.b16 %v117
    %v680 = vunpack.c.h.b16 %v117
    %v681 = vunpack.c.l.b16 %v118
    %v682 = vunpack.c.h.b16 %v118
    %v683 = vunpack.c.l.b16 %v119
    %v684 = vunpack.c.h.b16 %v119
    %v685 = vunpack.c.l.b16 %v120
    %v686 = vunpack.c.h.b16 %v120
    %v687 = vunpack.c.l.b16 %v121
    %v688 = vunpack.c.h.b16 %v121
    %v689 = vunpack.c.l.b16 %v122
    %v690 = vunpack.c.h.b16 %v122
    %v691 = vunpack.c.l.b16 %v123
    %v692 = vunpack.c.h.b16 %v123
    %v693 = vunpack.c.l.b16 %v124
    %v694 = vunpack.c.h.b16 %v124
    %v695 = vunpack.c.l.b16 %v125
    %v696 = vunpack.c.h.b16 %v125
    %v697 = vunpack.c.l.b16 %v126
    %v698 = vunpack.c.h.b16 %v126
    %v699 = vunpack.c.l.b16 %v127
    %v700 = vunpack.c.h.b16 %v127
    %v701 = vunpack.c.l.b16 %v128
    %v702 = vunpack.c.h.b16 %v128
    %v703 = vunpack.c.l.b16 %v129
    %v704 = vunpack.c.h.b16 %v129
    %v705 = vunpack.c.l.b16 %v130
    %v706 = vunpack.c.h.b16 %v130
    %v707 = vunpack.c.l.b16 %v131
    %v708 = vunpack.c.h.b16 %v131
    %v709 = vunpack.c.l.b16 %v132
    %v710 = vunpack.c.h.b16 %v132
    %v711 = vunpack.c.l.b16 %v133
    %v712 = vunpack.c.h.b16 %v133
    %v713 = vunpack.c.l.b16 %v134
    %v714 = vunpack.c.h.b16 %v134
    %v715 = vunpack.c.l.b16 %v135
    %v716 = vunpack.c.h.b16 %v135
    %v717 = vunpack.c.l.b16 %v136
    %v718 = vunpack.c.h.b16 %v136
    %v719 = vunpack.c.l.b16 %v137
    %v720 = vunpack.c.h.b16 %v137
    %v721 = vunpack.c.l.b16 %v138
    %v722 = vunpack.c.h.b16 %v138
    %v723 = vunpack.c.l.b16 %v139
    %v724 = vunpack.c.h.b16 %v139
    %v725 = vunpack.c.l.b16 %v140
    %v726 = vunpack.c.h.b16 %v140
    %v727 = vunpack.c.l.b16 %v141
    %v728 = vunpack.c.h.b16 %v141
    %v729 = vunpack.c.l.b16 %v142
    %v730 = vunpack.c.h.b16 %v142
    %v731 = vunpack.c.l.b16 %v143
    %v732 = vunpack.c.h.b16 %v143
    %v733 = vunpack.c.l.b16 %v144
    %v734 = vunpack.c.h.b16 %v144
    %v735 = vunpack.c.l.b16 %v145
    %v736 = vunpack.c.h.b16 %v145
    %v737 = vunpack.c.l.b16 %v146
    %v738 = vunpack.c.h.b16 %v146
    %v739 = vunpack.c.l.b16 %v147
    %v740 = vunpack.c.h.b16 %v147
    %v741 = vunpack.c.l.b16 %v148
    %v742 = vunpack.c.h.b16 %v148
    %v743 = vunpack.c.l.b16 %v149
    %v744 = vunpack.c.h.b16 %v149
    %v745 = vunpack.c.l.b16 %v150
    %v746 = vunpack.c.h.b16 %v150
    %v747 = vunpack.c.l.b16 %v151
    %v748 = vunpack.c.h.b16 %v151
    %v749 = vunpack.c.l.b16 %v152
    %v750 = vunpack.c.h.b16 %v152
    %v751 = vunpack.c.l.b16 %v153
    %v752 = vunpack.c.h.b16 %v153
    %v753 = vunpack.c.l.b16 %v154
    %v754 = vunpack.c.h.b16 %v154
    %v755 = vunpack.c.l.b16 %v155
    %v756 = vunpack.c.h.b16 %v155
    %v757 = vunpack.c.l.b16 %v156
    %v758 = vunpack.c.h.b16 %v156
    %v759 = vunpack.c.l.b16 %v157
    %v760 = vunpack.c.h.b16 %v157
    %v761 = vunpack.c.l.b16 %v158
    %v762 = vunpack.c.h.b16 %v158
    %v763 = vunpack.c.l.b16 %v159
    %v764 = vunpack.c.h.b16 %v159
    %v765 = vunpack.c.l.b16 %v160
    %v766 = vunpack.c.h.b16 %v160
    %v767 = vunpack.c.l.b16 %v161
    %v768 = vunpack.c.h.b16 %v161
    %v769 = vunpack.c.l.b16 %v162
    %v770 = vunpack.c.h.b16 %v162
    %v771 = vunpack.c.l.b16 %v163
    %v772 = vunpack.c.h.b16 %v163
    %v773 = vunpack.c.l.b16 %v164
    %v774 = vunpack.c.h.b16 %v164
    %v775 = vunpack.c.l.b16 %v165
    %v776 = vunpack.c.h.b16 %v165
    %v777 = vunpack.c.l.b16 %v166
    %v778 = vunpack.c.h.b16 %v166
    %v779 = vunpack.c.l.b16 %v167
    %v780 = vunpack.c.h.b16 %v167
    %v781 = vunpack.c.l.b16 %v168
    %v782 = vunpack.c.h.b16 %v168
    %v783 = vunpack.c.l.b16 %v169
    %v784 = vunpack.c.h.b16 %v169
    %v785 = vunpack.c.l.b16 %v170
    %v786 = vunpack.c.h.b16 %v170
    %v787 = vunpack.c.l.b16 %v171
    %v788 = vunpack.c.h.b16 %v171
    %v789 = vunpack.c.l.b16 %v172
    %v790 = vunpack.c.h.b16 %v172
    %v791 = vunpack.c.l.b16 %v173
    %v792 = vunpack.c.h.b16 %v173
    %v793 = vunpack.c.l.b16 %v174
    %v794 = vunpack.c.h.b16 %v174
    %v795 = vunpack.c.l.b16 %v175
    %v796 = vunpack.c.h.b16 %v175
    %v797 = vunpack.c.l.b16 %v176
    %v798 = vunpack.c.h.b16 %v176
    %v799 = vunpack.c.l.b16 %v177
    %v800 = vunpack.c.h.b16 %v177
    %v801 = vunpack.c.l.b16 %v178
    %v802 = vunpack.c.h.b16 %v178
    %v803 = vunpack.c.l.b16 %v179
    %v804 = vunpack.c.h.b16 %v179
    %v805 = vunpack.c.l.b16 %v180
    %v806 = vunpack.c.h.b16 %v180
    %v807 = vunpack.c.l.b16 %v181
    %v808 = vunpack.c.h.b16 %v181
    %v809 = vunpack.c.l.b16 %v182
    %v810 = vunpack.c.h.b16 %v182
    %v811 = vunpack.c.l.b16 %v183
    %v812 = vunpack.c.h.b16 %v183
    %v813 = vunpack.c.l.b16 %v184
    %v814 = vunpack.c.h.b16 %v184
    %v815 = vunpack.c.l.b16 %v185
    %v816 = vunpack.c.h.b16 %v185
    %v817 = vunpack.c.l.b16 %v186
    %v818 = vunpack.c.h.b16 %v186
    %v819 = vunpack.c.l.b16 %v187
    %v820 = vunpack.c.h.b16 %v187
    %v821 = vunpack.c.l.b16 %v188
    %v822 = vunpack.c.h.b16 %v188
    %v823 = vunpack.c.l.b16 %v189
    %v824 = vunpack.c.h.b16 %v189
    %v825 = vunpack.c.l.b16 %v190
    %v826 = vunpack.c.h.b16 %v190
    %v827 = vunpack.c.l.b16 %v191
    %v828 = vunpack.c.h.b16 %v191
    %v829 = vunpack.c.l.b16 %v192
    %v830 = vunpack.c.h.b16 %v192
    %v831 = vunpack.c.l.b16 %v193
    %v832 = vunpack.c.h.b16 %v193
    %v833 = vunpack.c.l.b16 %v194
    %v834 = vunpack.c.h.b16 %v194
    %v835 = vunpack.c.l.b16 %v195
    %v836 = vunpack.c.h.b16 %v195
    %v837 = vunpack.c.l.b16 %v196
    %v838 = vunpack.c.h.b16 %v196
    %v839 = vunpack.c.l.b16 %v197
    %v840 = vunpack.c.h.b16 %v197
    %v841 = vunpack.c.l.b16 %v198
    %v842 = vunpack.c.h.b16 %v198
    %v843 = vunpack.c.l.b16 %v199
    %v844 = vunpack.c.h.b16 %v199
    %v845 = vunpack.c.l.b16 %v200
    %v846 = vunpack.c.h.b16 %v200
    %v847 = vunpack.c.l.b16 %v201
    %v848 = vunpack.c.h.b16 %v201
    %v849 = vunpack.c.l.b16 %v202
    %v850 = vunpack.c.h.b16 %v202
    %v851 = vunpack.c.l.b16 %v203
    %v852 = vunpack.c.h.b16 %v203
    %v853 = vunpack.c.l.b16 %v204
    %v854 = vunpack.c.h.b16 %v204
    %v855 = vunpack.c.l.b16 %v205
    %v856 = vunpack.c.h.b16 %v205
    %v857 = vunpack.c.l.b16 %v206
    %v858 = vunpack.c.h.b16 %v206
    %v859 = vunpack.c.l.b16 %v207
    %v860 = vunpack.c.h.b16 %v207
    %v861 = vunpack.c.l.b16 %v208
    %v862 = vunpack.c.h.b16 %v208
    %v863 = vunpack.c.l.b16 %v209
    %v864 = vunpack.c.h.b16 %v209
    %v865 = vunpack.c.l.b16 %v210
    %v866 = vunpack.c.h.b16 %v210
    %v867 = vunpack.c.l.b16 %v211
    %v868 = vunpack.c.h.b16 %v211
    %v869 = vunpack.c.l.b16 %v212
    %v870 = vunpack.c.h.b16 %v212
    %v871 = vunpack.c.l.b16 %v213
    %v872 = vunpack.c.h.b16 %v213
    %v873 = vunpack.c.l.b16 %v214
    %v874 = vunpack.c.h.b16 %v214
    %v875 = vunpack.c.l.b16 %v215
    %v876 = vunpack.c.h.b16 %v215
    %v877 = vunpack.c.l.b16 %v216
    %v878 = vunpack.c.h.b16 %v216
    %v879 = vunpack.c.l.b16 %v217
    %v880 = vunpack.c.h.b16 %v217
    %v881 = vunpack.c.l.b16 %v218
    %v882 = vunpack.c.h.b16 %v218
    %v883 = vunpack.c.l.b16 %v219
    %v884 = vunpack.c.h.b16 %v219
    %v885 = vunpack.c.l.b16 %v220
    %v886 = vunpack.c.h.b16 %v220
    %v887 = vunpack.c.l.b16 %v221
    %v888 = vunpack.c.h.b16 %v221
    %v889 = vunpack.c.l.b16 %v222
    %v890 = vunpack.c.h.b16 %v222
    %v891 = vunpack.c.l.b16 %v223
    %v892 = vunpack.c.h.b16 %v223
    %v893 = vunpack.c.l.b16 %v224
    %v894 = vunpack.c.h.b16 %v224
    %v895 = vunpack.c.l.b16 %v225
    %v896 = vunpack.c.h.b16 %v225
    %v897 = vunpack.c.l.b16 %v226
    %v898 = vunpack.c.h.b16 %v226
    %v899 = vunpack.c.l.b16 %v227
    %v900 = vunpack.c.h.b16 %v227
    %v901 = vunpack.c.l.b16 %v228
    %v902 = vunpack.c.h.b16 %v228
    %v903 = vunpack.c.l.b16 %v229
    %v904 = vunpack.c.h.b16 %v229
    %v905 = vunpack.c.l.b16 %v230
    %v906 = vunpack.c.h.b16 %v230
    %v907 = vunpack.c.l.b16 %v231
    %v908 = vunpack.c.h.b16 %v231
    %v909 = vunpack.c.l.b16 %v232
    %v910 = vunpack.c.h.b16 %v232
    %v911 = vunpack.c.l.b16 %v233
    %v912 = vunpack.c.h.b16 %v233
    %v913 = vunpack.c.l.b16 %v234
    %v914 = vunpack.c.h.b16 %v234
    %v915 = vunpack.c.l.b16 %v235
    %v916 = vunpack.c.h.b16 %v235
    %v917 = vunpack.c.l.b16 %v236
    %v918 = vunpack.c.h.b16 %v236
    %v919 = vunpack.c.l.b16 %v237
    %v920 = vunpack.c.h.b16 %v237
    %v921 = vunpack.c.l.b16 %v238
    %v922 = vunpack.c.h.b16 %v238
    %v923 = vunpack.c.l.b16 %v239
    %v924 = vunpack.c.h.b16 %v239
    %v925 = vunpack.c.l.b16 %v240
    %v926 = vunpack.c.h.b16 %v240
    %v927 = vunpack.c.l.b16 %v241
    %v928 = vunpack.c.h.b16 %v241
    %v929 = vunpack.c.l.b16 %v242
    %v930 = vunpack.c.h.b16 %v242
    %v931 = vunpack.c.l.b16 %v243
    %v932 = vunpack.c.h.b16 %v243
    %v933 = vunpack.c.l.b16 %v244
    %v934 = vunpack.c.h.b16 %v244
    %v935 = vunpack.c.l.b16 %v245
    %v936 = vunpack.c.h.b16 %v245
    %v937 = vunpack.c.l.b16 %v246
    %v938 = vunpack.c.h.b16 %v246
    %v939 = vunpack.c.l.b16 %v247
    %v940 = vunpack.c.h.b16 %v247
    %v941 = vunpack.c.l.b16 %v248
    %v942 = vunpack.c.h.b16 %v248
    %v943 = vunpack.c.l.b16 %v249
    %v944 = vunpack.c.h.b16 %v249
    %v945 = vunpack.c.l.b16 %v250
    %v946 = vunpack.c.h.b16 %v250
    %v947 = vunpack.c.l.b16 %v251
    %v948 = vunpack.c.h.b16 %v251
    %v949 = vunpack.c.l.b16 %v252
    %v950 = vunpack.c.h.b16 %v252
    %v951 = vunpack.c.l.b16 %v253
    %v952 = vunpack.c.h.b16 %v253
    %v953 = vunpack.c.l.b16 %v254
    %v954 = vunpack.c.h.b16 %v254
    %v955 = vunpack.c.l.b16 %v255
    %v956 = vunpack.c.h.b16 %v255
    %v957 = vunpack.c.l.b16 %v256
    %v958 = vunpack.c.h.b16 %v256
    %v959 = vunpack.c.l.b16 %v257
    %v960 = vunpack.c.h.b16 %v257
    %v961 = vunpack.c.l.b16 %v258
    %v962 = vunpack.c.h.b16 %v258
    %v963 = vunpack.c.l.b16 %v259
    %v964 = vunpack.c.h.b16 %v259
    %v965 = vunpack.c.l.b16 %v260
    %v966 = vunpack.c.h.b16 %v260
    %v967 = vunpack.c.l.b16 %v261
    %v968 = vunpack.c.h.b16 %v261
    %v969 = vunpack.c.l.b16 %v262
    %v970 = vunpack.c.h.b16 %v262
    %v971 = vunpack.c.l.b16 %v263
    %v972 = vunpack.c.h.b16 %v263
    %v973 = vunpack.c.l.b16 %v264
    %v974 = vunpack.c.h.b16 %v264
    %v975 = vunpack.c.l.b16 %v265
    %v976 = vunpack.c.h.b16 %v265
    %v977 = vunpack.c.l.b16 %v266
    %v978 = vunpack.c.h.b16 %v266
    %v979 = vunpack.c.l.b16 %v267
    %v980 = vunpack.c.h.b16 %v267
    %v981 = vunpack.c.l.b16 %v268
    %v982 = vunpack.c.h.b16 %v268
    %v983 = vunpack.c.l.b16 %v269
    %v984 = vunpack.c.h.b16 %v269
    %v985 = vunpack.c.l.b16 %v270
    %v986 = vunpack.c.h.b16 %v270
    %v987 = vunpack.c.l.b16 %v271
    %v988 = vunpack.c.h.b16 %v271
    %v989 = vunpack.c.l.b16 %v272
    %v990 = vunpack.c.h.b16 %v272
    %v991 = vunpack.c.l.b16 %v273
    %v992 = vunpack.c.h.b16 %v273
    %v993 = vunpack.c.l.b16 %v274
    %v994 = vunpack.c.h.b16 %v274
    %v995 = vunpack.c.l.b16 %v275
    %v996 = vunpack.c.h.b16 %v275
    %v997 = vunpack.c.l.b16 %v276
    %v998 = vunpack.c.h.b16 %v276
    %v999 = vunpack.c.l.b16 %v277
    %v1000 = vunpack.c.h.b16 %v277
    %v1001 = vunpack.c.l.b16 %v278
    %v1002 = vunpack.c.h.b16 %v278
    %v1003 = vunpack.c.l.b16 %v279
    %v1004 = vunpack.c.h.b16 %v279
    %v1005 = vunpack.c.l.b16 %v280
    %v1006 = vunpack.c.h.b16 %v280
    %v1007 = vunpack.c.l.b16 %v281
    %v1008 = vunpack.c.h.b16 %v281
    %v1009 = vunpack.c.l.b16 %v282
    %v1010 = vunpack.c.h.b16 %v282
    %v1011 = vunpack.c.l.b16 %v283
    %v1012 = vunpack.c.h.b16 %v283
    %v1013 = vunpack.c.l.b16 %v284
    %v1014 = vunpack.c.h.b16 %v284
    %v1015 = vunpack.c.l.b16 %v285
    %v1016 = vunpack.c.h.b16 %v285
    %v1017 = vunpack.c.l.b16 %v286
    %v1018 = vunpack.c.h.b16 %v286
    %v1019 = vunpack.c.l.b16 %v287
    %v1020 = vunpack.c.h.b16 %v287
    %v1021 = vunpack.c.l.b16 %v288
    %v1022 = vunpack.c.h.b16 %v288
    %v1023 = vunpack.c.l.b16 %v289
    %v1024 = vunpack.c.h.b16 %v289
    %v1025 = vunpack.c.l.b16 %v290
    %v1026 = vunpack.c.h.b16 %v290
    %v1027 = vunpack.c.l.b16 %v291
    %v1028 = vunpack.c.h.b16 %v291
    %v1029 = vunpack.c.l.b16 %v292
    %v1030 = vunpack.c.h.b16 %v292
    %v1031 = vunpack.c.l.b16 %v293
    %v1032 = vunpack.c.h.b16 %v293
    %v1033 = vunpack.c.l.b16 %v294
    %v1034 = vunpack.c.h.b16 %v294
    %v1035 = vunpack.c.l.b16 %v295
    %v1036 = vunpack.c.h.b16 %v295
    %v1037 = vunpack.c.l.b16 %v296
    %v1038 = vunpack.c.h.b16 %v296
    %v1039 = vunpack.c.l.b16 %v297
    %v1040 = vunpack.c.h.b16 %v297
    %v1041 = vunpack.c.l.b16 %v298
    %v1042 = vunpack.c.h.b16 %v298
    %v1043 = vunpack.c.l.b16 %v299
    %v1044 = vunpack.c.h.b16 %v299
    %v1045 = vunpack.c.l.b16 %v300
    %v1046 = vunpack.c.h.b16 %v300
    %v1047 = vunpack.c.l.b16 %v301
    %v1048 = vunpack.c.h.b16 %v301
    %v1049 = vunpack.c.l.b16 %v302
    %v1050 = vunpack.c.h.b16 %v302
    %v1051 = vunpack.c.l.b16 %v303
    %v1052 = vunpack.c.h.b16 %v303
    %v1053 = vunpack.c.l.b16 %v304
    %v1054 = vunpack.c.h.b16 %v304
    %v1055 = vunpack.c.l.b16 %v305
    %v1056 = vunpack.c.h.b16 %v305
    %v1057 = vunpack.c.l.b16 %v306
    %v1058 = vunpack.c.h.b16 %v306
    %v1059 = vunpack.c.l.b16 %v307
    %v1060 = vunpack.c.h.b16 %v307
    %v1061 = vunpack.c.l.b16 %v308
    %v1062 = vunpack.c.h.b16 %v308
    %v1063 = vunpack.c.l.b16 %v309
    %v1064 = vunpack.c.h.b16 %v309
    %v1065 = vunpack.c.l.b16 %v310
    %v1066 = vunpack.c.h.b16 %v310
    %v1067 = vunpack.c.l.b16 %v311
    %v1068 = vunpack.c.h.b16 %v311
    %v1069 = vunpack.c.l.b16 %v312
    %v1070 = vunpack.c.h.b16 %v312
    %v1071 = vunpack.c.l.b16 %v313
    %v1072 = vunpack.c.h.b16 %v313
    %v1073 = vunpack.c.l.b16 %v314
    %v1074 = vunpack.c.h.b16 %v314
    %v1075 = vunpack.c.l.b16 %v315
    %v1076 = vunpack.c.h.b16 %v315
    %v1077 = vunpack.c.l.b16 %v316
    %v1078 = vunpack.c.h.b16 %v316
    %v1079 = vunpack.c.l.b16 %v317
    %v1080 = vunpack.c.h.b16 %v317
    %v1081 = vunpack.c.l.b16 %v318
    %v1082 = vunpack.c.h.b16 %v318
    %v1083 = vunpack.c.l.b16 %v319
    %v1084 = vunpack.c.h.b16 %v319
    %v1085 = vunpack.c.l.b16 %v320
    %v1086 = vunpack.c.h.b16 %v320
    %v1087 = vunpack.c.l.b16 %v321
    %v1088 = vunpack.c.h.b16 %v321
    %v1089 = vunpack.c.l.b16 %v322
    %v1090 = vunpack.c.h.b16 %v322
    %v1091 = vunpack.c.l.b16 %v323
    %v1092 = vunpack.c.h.b16 %v323
    %v1093 = vunpack.c.l.b16 %v324
    %v1094 = vunpack.c.h.b16 %v324
    %v1095 = vunpack.c.l.b16 %v325
    %v1096 = vunpack.c.h.b16 %v325
    %v1097 = vunpack.c.l.b16 %v326
    %v1098 = vunpack.c.h.b16 %v326
    %v1099 = vpack.c.b16 %v603, %v599
    %v1100 = vpack.c.b16 %v604, %v600
    %v1101 = vpack.c.b16 %v605, %v601
    %v1102 = vpack.c.b16 %v606, %v602
    %v1103 = vpack.c.b16 %v611, %v607
    %v1104 = vpack.c.b16 %v612, %v608
    %v1105 = vpack.c.b16 %v613, %v609
    %v1106 = vpack.c.b16 %v614, %v610
    %v1107 = vpack.c.b16 %v619, %v615
    %v1108 = vpack.c.b16 %v620, %v616
    %v1109 = vpack.c.b16 %v621, %v617
    %v1110 = vpack.c.b16 %v622, %v618
    %v1111 = vpack.c.b16 %v627, %v623
    %v1112 = vpack.c.b16 %v628, %v624
    %v1113 = vpack.c.b16 %v629, %v625
    %v1114 = vpack.c.b16 %v630, %v626
    %v1115 = vpack.c.b16 %v635, %v631
    %v1116 = vpack.c.b16 %v636, %v632
    %v1117 = vpack.c.b16 %v637, %v633
    %v1118 = vpack.c.b16 %v638, %v634
    %v1119 = vpack.c.b16 %v643, %v639
    %v1120 = vpack.c.b16 %v644, %v640
    %v1121 = vpack.c.b16 %v645, %v641
    %v1122 = vpack.c.b16 %v646, %v642
    %v1123 = vpack.c.b16 %v651, %v647
    %v1124 = vpack.c.b16 %v652, %v648
    %v1125 = vpack.c.b16 %v653, %v649
    %v1126 = vpack.c.b16 %v654, %v650
    %v1127 = vpack.c.b16 %v659, %v655
    %v1128 = vpack.c.b16 %v660, %v656
    %v1129 = vpack.c.b16 %v661, %v657
    %v1130 = vpack.c.b16 %v662, %v658
    %v1131 = vpack.c.b16 %v667, %v663
    %v1132 = vpack.c.b16 %v668, %v664
    %v1133 = vpack.c.b16 %v669, %v665
    %v1134 = vpack.c.b16 %v670, %v666
    %v1135 = vpack.c.b16 %v675, %v671
    %v1136 = vpack.c.b16 %v676, %v672
    %v1137 = vpack.c.b16 %v677, %v673
    %v1138 = vpack.c.b16 %v678, %v674
    %v1139 = vpack.c.b16 %v683, %v679
    %v1140 = vpack.c.b16 %v684, %v680
    %v1141 = vpack.c.b16 %v685, %v681
    %v1142 = vpack.c.b16 %v686, %v682
    %v1143 = vpack.c.b16 %v691, %v687
    %v1144 = vpack.c.b16 %v692, %v688
    %v1145 = vpack.c.b16 %v693, %v689
    %v1146 = vpack.c.b16 %v694, %v690
    %v1147 = vpack.c.b16 %v699, %v695
    %v1148 = vpack.c.b16 %v700, %v696
    %v1149 = vpack.c.b16 %v701, %v697
    %v1150 = vpack.c.b16 %v702, %v698
    %v1151 = vpack.c.b16 %v707, %v703
    %v1152 = vpack.c.b16 %v708, %v704
    %v1153 = vpack.c.b16 %v709, %v705
    %v1154 = vpack.c.b16 %v710, %v706
    %v1155 = vpack.c.b16 %v715, %v711
    %v1156 = vpack.c.b16 %v716, %v712
    %v1157 = vpack.c.b16 %v717, %v713
    %v1158 = vpack.c.b16 %v718, %v714
    %v1159 = vpack.c.b16 %v723, %v719
    %v1160 = vpack.c.b16 %v724, %v720
    %v1161 = vpack.c.b16 %v725, %v721
    %v1162 = vpack.c.b16 %v726, %v722
    %v1163 = vpack.c.b16 %v731, %v727
    %v1164 = vpack.c.b16 %v732, %v728
    %v1165 = vpack.c.b16 %v733, %v729
    %v1166 = vpack.c.b16 %v734, %v730
    %v1167 = vpack.c.b16 %v739, %v735
    %v1168 = vpack.c.b16 %v740, %v736
    %v1169 = vpack.c.b16 %v741, %v737
    %v1170 = vpack.c.b16 %v742, %v738
    %v1171 = vpack.c.b16 %v747, %v743
    %v1172 = vpack.c.b16 %v748, %v744
    %v1173 = vpack.c.b16 %v749, %v745
    %v1174 = vpack.c.b16 %v750, %v746
    %v1175 = vpack.c.b16 %v755, %v751
    %v1176 = vpack.c.b16 %v756, %v752
    %v1177 = vpack.c.b16 %v757, %v753
    %v1178 = vpack.c.b16 %v758, %v754
    %v1179 = vpack.c.b16 %v763, %v759
    %v1180 = vpack.c.b16 %v764, %v760
    %v1181 = vpack.c.b16 %v765, %v761
    %v1182 = vpack.c.b16 %v766, %v762
    %v1183 = vpack.c.b16 %v771, %v767
    %v1184 = vpack.c.b16 %v772, %v768
    %v1185 = vpack.c.b16 %v773, %v769
    %v1186 = vpack.c.b16 %v774, %v770
    %v1187 = vpack.c.b16 %v779, %v775
    %v1188 = vpack.c.b16 %v780, %v776
    %v1189 = vpack.c.b16 %v781, %v777
    %v1190 = vpack.c.b16 %v782, %v778
    %v1191 = vpack.c.b16 %v787, %v783
    %v1192 = vpack.c.b16 %v788, %v784
    %v1193 = vpack.c.b16 %v789, %v785
    %v1194 = vpack.c.b16 %v790, %v786
    %v1195 = vpack.c.b16 %v795, %v791
    %v1196 = vpack.c.b16 %v796, %v792
    %v1197 = vpack.c.b16 %v797, %v793
    %v1198 = vpack.c.b16 %v798, %v794
    %v1199 = vpack.c.b16 %v803, %v799
    %v1200 = vpack.c.b16 %v804, %v800
    %v1201 = vpack.c.b16 %v805, %v801
    %v1202 = vpack.c.b16 %v806, %v802
    %v1203 = vpack.c.b16 %v811, %v807
    %v1204 = vpack.c.b16 %v812, %v808
    %v1205 = vpack.c.b16 %v813, %v809
    %v1206 = vpack.c.b16 %v814, %v810
    %v1207 = vpack.c.b16 %v819, %v815
    %v1208 = vpack.c.b16 %v820, %v816
    %v1209 = vpack.c.b16 %v821, %v817
    %v1210 = vpack.c.b16 %v822, %v818
    %v1211 = vpack.c.b16 %v827, %v823
    %v1212 = vpack.c.b16 %v828, %v824
    %v1213 = vpack.c.b16 %v829, %v825
    %v1214 = vpack.c.b16 %v830, %v826
    %v1215 = vpack.c.b16 %v835, %v831
    %v1216 = vpack.c.b16 %v836, %v832
    %v1217 = vpack.c.b16 %v837, %v833
    %v1218 = vpack.c.b16 %v838, %v834
    %v1219 = vpack.c.b16 %v843, %v839
    %v1220 = vpack.c.b16 %v844, %v840
    %v1221 = vpack.c.b16 %v845, %v841
    %v1222 = vpack.c.b16 %v846, %v842
    %v1223 = vpack.c.b16 %v851, %v847
    %v1224 = vpack.c.b16 %v852, %v848
    %v1225 = vpack.c.b16 %v853, %v849
    %v1226 = vpack.c.b16 %v854, %v850
    %v1227 = vpack.c.b16 %v859, %v855
    %v1228 = vpack.c.b16 %v860, %v856
    %v1229 = vpack.c.b16 %v861, %v857
    %v1230 = vpack.c.b16 %v862, %v858
    %v1231 = vpack.c.b16 %v867, %v863
    %v1232 = vpack.c.b16 %v868, %v864
    %v1233 = vpack.c.b16 %v869, %v865
    %v1234 = vpack.c.b16 %v870, %v866
    %v1235 = vpack.c.b16 %v875, %v871
    %v1236 = vpack.c.b16 %v876, %v872
    %v1237 = vpack.c.b16 %v877, %v873
    %v1238 = vpack.c.b16 %v878, %v874
    %v1239 = vpack.c.b16 %v883, %v879
    %v1240 = vpack.c.b16 %v884, %v880
    %v1241 = vpack.c.b16 %v885, %v881
    %v1242 = vpack.c.b16 %v886, %v882
    %v1243 = vpack.c.b16 %v891, %v887
    %v1244 = vpack.c.b16 %v892, %v888
    %v1245 = vpack.c.b16 %v893, %v889
    %v1246 = vpack.c.b16 %v894, %v890
    %v1247 = vpack.c.b16 %v899, %v895
    %v1248 = vpack.c.b16 %v900, %v896
    %v1249 = vpack.c.b16 %v901, %v897
    %v1250 = vpack.c.b16 %v902, %v898
    %v1251 = vpack.c.b16 %v907, %v903
    %v1252 = vpack.c.b16 %v908, %v904
    %v1253 = vpack.c.b16 %v909, %v905
    %v1254 = vpack.c.b16 %v910, %v906
    %v1255 = vpack.c.b16 %v915, %v911
    %v1256 = vpack.c.b16 %v916, %v912
    %v1257 = vpack.c.b16 %v917, %v913
    %v1258 = vpack.c.b16 %v918, %v914
    %v1259 = vpack.c.b16 %v923, %v919
    %v1260 = vpack.c.b16 %v924, %v920
    %v1261 = vpack.c.b16 %v925, %v921
    %v1262 = vpack.c.b16 %v926, %v922
    %v1263 = vpack.c.b16 %v931, %v927
    %v1264 = vpack.c.b16 %v932, %v928
    %v1265 = vpack.c.b16 %v933, %v929
    %v1266 = vpack.c.b16 %v934, %v930
    %v1267 = vpack.c.b16 %v939, %v935
    %v1268 = vpack.c.b16 %v940, %v936
    %v1269 = vpack.c.b16 %v941, %v937
    %v1270 = vpack.c.b16 %v942, %v938
    %v1271 = vpack.c.b16 %v947, %v943
    %v1272 = vpack.c.b16 %v948, %v944
    %v1273 = vpack.c.b16 %v949, %v945
    %v1274 = vpack.c.b16 %v950, %v946
    %v1275 = vpack.c.b16 %v955, %v951
    %v1276 = vpack.c.b16 %v956, %v952
    %v1277 = vpack.c.b16 %v957, %v953
    %v1278 = vpack.c.b16 %v958, %v954
    %v1279 = vpack.c.b16 %v963, %v959
    %v1280 = vpack.c.b16 %v964, %v960
    %v1281 = vpack.c.b16 %v965, %v961
    %v1282 = vpack.c.b16 %v966, %v962
    %v1283 = vpack.c.b16 %v971, %v967
    %v1284 = vpack.c.b16 %v972, %v968
    %v1285 = vpack.c.b16 %v973, %v969
    %v1286 = vpack.c.b16 %v974, %v970
    %v1287 = vpack.c.b16 %v979, %v975
    %v1288 = vpack.c.b16 %v980, %v976
    %v1289 = vpack.c.b16 %v981, %v977
    %v1290 = vpack.c.b16 %v982, %v978
    %v1291 = vpack.c.b16 %v987, %v983
    %v1292 = vpack.c.b16 %v988, %v984
    %v1293 = vpack.c.b16 %v989, %v985
    %v1294 = vpack.c.b16 %v990, %v986
    %v1295 = vpack.c.b16 %v995, %v991
    %v1296 = vpack.c.b16 %v996, %v992
    %v1297 = vpack.c.b16 %v997, %v993
    %v1298 = vpack.c.b16 %v998, %v994
    %v1299 = vpack.c.b16 %v1003, %v999
    %v1300 = vpack.c.b16 %v1004, %v1000
    %v1301 = vpack.c.b16 %v1005, %v1001
    %v1302 = vpack.c.b16 %v1006, %v1002
    %v1303 = vpack.c.b16 %v1011, %v1007
    %v1304 = vpack.c.b16 %v1012, %v1008
    %v1305 = vpack.c.b16 %v1013, %v1009
    %v1306 = vpack.c.b16 %v1014, %v1010
    %v1307 = vpack.c.b16 %v1019, %v1015
    %v1308 = vpack.c.b16 %v1020, %v1016
    %v1309 = vpack.c.b16 %v1021, %v1017
    %v1310 = vpack.c.b16 %v1022, %v1018
    %v1311 = vpack.c.b16 %v1027, %v1023
    %v1312 = vpack.c.b16 %v1028, %v1024
    %v1313 = vpack.c.b16 %v1029, %v1025
    %v1314 = vpack.c.b16 %v1030, %v1026
    %v1315 = vpack.c.b16 %v1035, %v1031
    %v1316 = vpack.c.b16 %v1036, %v1032
    %v1317 = vpack.c.b16 %v1037, %v1033
    %v1318 = vpack.c.b16 %v1038, %v1034
    %v1319 = vpack.c.b16 %v1043, %v1039
    %v1320 = vpack.c.b16 %v1044, %v1040
    %v1321 = vpack.c.b16 %v1045, %v1041
    %v1322 = vpack.c.b16 %v1046, %v1042
    %v1323 = vpack.c.b16 %v1051, %v1047
    %v1324 = vpack.c.b16 %v1052, %v1048
    %v1325 = vpack.c.b16 %v1053, %v1049
    %v1326 = vpack.c.b16 %v1054, %v1050
    %v1327 = vpack.c.b16 %v1059, %v1055
    %v1328 = vpack.c.b16 %v1060, %v1056
    %v1329 = vpack.c.b16 %v1061, %v1057
    %v1330 = vpack.c.b16 %v1062, %v1058
    %v1331 = vpack.c.b16 %v1067, %v1063
    %v1332 = vpack.c.b16 %v1068, %v1064
    %v1333 = vpack.c.b16 %v1069, %v1065
    %v1334 = vpack.c.b16 %v1070, %v1066
    %v1335 = vpack.c.b16 %v1075, %v1071
    %v1336 = vpack.c.b16 %v1076, %v1072
    %v1337 = vpack.c.b16 %v1077, %v1073
    %v1338 = vpack.c.b16 %v1078, %v1074
    %v1339 = vpack.c.b16 %v1083, %v1079
    %v1340 = vpack.c.b16 %v1084, %v1080
    %v1341 = vpack.c.b16 %v1085, %v1081
    %v1342 = vpack.c.b16 %v1086, %v1082
    %v1343 = vpack.c.b16 %v1091, %v1087
    %v1344 = vpack.c.b16 %v1092, %v1088
    %v1345 = vpack.c.b16 %v1093, %v1089
    %v1346 = vpack.c.b16 %v1094, %v1090
    %v1347 = vpack.c.b16 %v1095, %v1095
    %v1348 = vpack.c.b16 %v1096, %v1096
    %v1349 = vpack.c.b16 %v1097, %v1097
    %v1350 = vpack.c.b16 %v1098, %v1098
    %vm1599 = vcmask 850944
    %v1601 = vsel %vm1599, %v76, 0
    %vm1603 = vcmask 1043456
    %v1605 = vsel %vm1603, %v1347, 0
    %v1608 = vsel %vm1603, %v1348, 0
    %v1611 = vsel %vm1603, %v1349, 0
    %v1614 = vsel %vm1603, %v1350, 0
    %1616 = vmatprep.subr.bf16.mxu0 %v1100
    %1617 = vmatpush1.bf16.msra.mxu0 %v1099
    %1618 = vmatprep.subr.bf16.mxu0 %v1104
    %1619 = vmatpush1.bf16.msra.mxu0 %v1103
    %1620 = vmatprep.subr.bf16.mxu0 %v1108
    %1621 = vmatpush1.bf16.msra.mxu0 %v1107
    %1622 = vmatprep.subr.bf16.mxu0 %v1112
    %1623 = vmatpush1.bf16.msra.mxu0 %v1111
    %1624 = vmatprep.subr.bf16.mxu0 %v1116
    %1625 = vmatpush1.bf16.msra.mxu0 %v1115
    %1626 = vmatprep.subr.bf16.mxu0 %v1120
    %1627 = vmatpush1.bf16.msra.mxu0 %v1119
    %1628 = vmatprep.subr.bf16.mxu0 %v1124
    %1629 = vmatpush1.bf16.msra.mxu0 %v1123
    %1630 = vmatprep.subr.bf16.mxu0 %v1128
    %1631 = vmatpush1.bf16.msra.mxu0 %v1127
    %1632 = vmatprep.subr.bf16.mxu0 %v1132
    %1633 = vmatpush1.bf16.msra.mxu0 %v1131
    %1634 = vmatprep.subr.bf16.mxu0 %v1136
    %1635 = vmatpush1.bf16.msra.mxu0 %v1135
    %1636 = vmatprep.subr.bf16.mxu0 %v1140
    %1637 = vmatpush1.bf16.msra.mxu0 %v1139
    %1638 = vmatprep.subr.bf16.mxu0 %v1144
    %1639 = vmatpush1.bf16.msra.mxu0 %v1143
    %1640 = vmatprep.subr.bf16.mxu0 %v1148
    %1641 = vmatpush1.bf16.msra.mxu0 %v1147
    %1642 = vmatprep.subr.bf16.mxu0 %v1152
    %1643 = vmatpush1.bf16.msra.mxu0 %v1151
    %1644 = vmatprep.subr.bf16.mxu0 %v1156
    %1645 = vmatpush1.bf16.msra.mxu0 %v1155
    %1646 = vmatprep.subr.bf16.mxu0 %v1160
    %1647 = vmatpush1.bf16.msra.mxu0 %v1159
    %1648 = vmatprep.mubr.bf16.mxu0 %v70
    %1649 = vmatmul.mubr.bf16.gmra.mrb[0].mxu0 %v69
    %v1650 = vpop.f32.mrb[0].mxu0
    %v1651 = vadd.f32 %v332, %v1650
    %v1652 = vpop.f32.mrb[0].mxu0
    %v1653 = vadd.f32 %v336, %v1652
    %v1654 = vpop.f32.mrb[0].mxu0
    %v1655 = vpop.f32.mrb[0].mxu0
    %1656 = vdwg.mxu0
    %1657 = vmatprep.subr.bf16.mxu0 %v1164
    %1658 = vmatpush1.bf16.msra.mxu0 %v1163
    %1659 = vmatprep.subr.bf16.mxu0 %v1168
    %1660 = vmatpush1.bf16.msra.mxu0 %v1167
    %1661 = vmatprep.subr.bf16.mxu0 %v1172
    %1662 = vmatpush1.bf16.msra.mxu0 %v1171
    %1663 = vmatprep.subr.bf16.mxu0 %v1176
    %1664 = vmatpush1.bf16.msra.mxu0 %v1175
    %1665 = vmatprep.subr.bf16.mxu0 %v1180
    %1666 = vmatpush1.bf16.msra.mxu0 %v1179
    %1667 = vmatprep.subr.bf16.mxu0 %v1184
    %1668 = vmatpush1.bf16.msra.mxu0 %v1183
    %1669 = vmatprep.subr.bf16.mxu0 %v1188
    %1670 = vmatpush1.bf16.msra.mxu0 %v1187
    %1671 = vmatprep.subr.bf16.mxu0 %v1192
    %1672 = vmatpush1.bf16.msra.mxu0 %v1191
    %1673 = vmatprep.subr.bf16.mxu0 %v1196
    %1674 = vmatpush1.bf16.msra.mxu0 %v1195
    %1675 = vmatprep.subr.bf16.mxu0 %v1200
    %1676 = vmatpush1.bf16.msra.mxu0 %v1199
    %1677 = vmatprep.subr.bf16.mxu0 %v1204
    %1678 = vmatpush1.bf16.msra.mxu0 %v1203
    %1679 = vmatprep.subr.bf16.mxu0 %v1208
    %1680 = vmatpush1.bf16.msra.mxu0 %v1207
    %1681 = vmatprep.subr.bf16.mxu0 %v1212
    %1682 = vmatpush1.bf16.msra.mxu0 %v1211
    %1683 = vmatprep.subr.bf16.mxu0 %v1216
    %1684 = vmatpush1.bf16.msra.mxu0 %v1215
    %1685 = vmatprep.subr.bf16.mxu0 %v1220
    %1686 = vmatpush1.bf16.msra.mxu0 %v1219
    %1687 = vmatprep.subr.bf16.mxu0 %v1224
    %1688 = vmatpush1.bf16.msra.mxu0 %v1223
    %1689 = vmatprep.mubr.bf16.mxu0 %v72
    %1690 = vmatmul.mubr.bf16.gmra.mrb[0].mxu0 %v71
    %v1691 = vpop.f32.mrb[0].mxu0
    %v1692 = vadd.f32 %v1651, %v1691
    %v1693 = vpop.f32.mrb[0].mxu0
    %v1694 = vadd.f32 %v1653, %v1693
    %v1695 = vpop.f32.mrb[0].mxu0
    %v1696 = vpop.f32.mrb[0].mxu0
    %1697 = vdwg.mxu0
    %1698 = vmatprep.subr.bf16.mxu0 %v1228
    %1699 = vmatpush1.bf16.msra.mxu0 %v1227
    %1700 = vmatprep.subr.bf16.mxu0 %v1232
    %1701 = vmatpush1.bf16.msra.mxu0 %v1231
    %1702 = vmatprep.subr.bf16.mxu0 %v1236
    %1703 = vmatpush1.bf16.msra.mxu0 %v1235
    %1704 = vmatprep.subr.bf16.mxu0 %v1240
    %1705 = vmatpush1.bf16.msra.mxu0 %v1239
    %1706 = vmatprep.subr.bf16.mxu0 %v1244
    %1707 = vmatpush1.bf16.msra.mxu0 %v1243
    %1708 = vmatprep.subr.bf16.mxu0 %v1248
    %1709 = vmatpush1.bf16.msra.mxu0 %v1247
    %1710 = vmatprep.subr.bf16.mxu0 %v1252
    %1711 = vmatpush1.bf16.msra.mxu0 %v1251
    %1712 = vmatprep.subr.bf16.mxu0 %v1256
    %1713 = vmatpush1.bf16.msra.mxu0 %v1255
    %1714 = vmatprep.subr.bf16.mxu0 %v1260
    %1715 = vmatpush1.bf16.msra.mxu0 %v1259
    %1716 = vmatprep.subr.bf16.mxu0 %v1264
    %1717 = vmatpush1.bf16.msra.mxu0 %v1263
    %1718 = vmatprep.subr.bf16.mxu0 %v1268
    %1719 = vmatpush1.bf16.msra.mxu0 %v1267
    %1720 = vmatprep.subr.bf16.mxu0 %v1272
    %1721 = vmatpush1.bf16.msra.mxu0 %v1271
    %1722 = vmatprep.subr.bf16.mxu0 %v1276
    %1723 = vmatpush1.bf16.msra.mxu0 %v1275
    %1724 = vmatprep.subr.bf16.mxu0 %v1280
    %1725 = vmatpush1.bf16.msra.mxu0 %v1279
    %1726 = vmatprep.subr.bf16.mxu0 %v1284
    %1727 = vmatpush1.bf16.msra.mxu0 %v1283
    %1728 = vmatprep.subr.bf16.mxu0 %v1288
    %1729 = vmatpush1.bf16.msra.mxu0 %v1287
    %1730 = vmatprep.mubr.bf16.mxu0 %v74
    %1731 = vmatmul.mubr.bf16.gmra.mrb[0].mxu0 %v73
    %v1732 = vpop.f32.mrb[0].mxu0
    %v1733 = vadd.f32 %v1692, %v1732
    %v1734 = vpop.f32.mrb[0].mxu0
    %v1735 = vadd.f32 %v1694, %v1734
    %v1736 = vpop.f32.mrb[0].mxu0
    %v1737 = vpop.f32.mrb[0].mxu0
    %1738 = vdwg.mxu0
    %1739 = vmatprep.subr.bf16.mxu0 %v1292
    %1740 = vmatpush1.bf16.msra.mxu0 %v1291
    %1741 = vmatprep.subr.bf16.mxu0 %v1296
    %1742 = vmatpush1.bf16.msra.mxu0 %v1295
    %1743 = vmatprep.subr.bf16.mxu0 %v1300
    %1744 = vmatpush1.bf16.msra.mxu0 %v1299
    %1745 = vmatprep.subr.bf16.mxu0 %v1304
    %1746 = vmatpush1.bf16.msra.mxu0 %v1303
    %1747 = vmatprep.subr.bf16.mxu0 %v1308
    %1748 = vmatpush1.bf16.msra.mxu0 %v1307
    %1749 = vmatprep.subr.bf16.mxu0 %v1312
    %1750 = vmatpush1.bf16.msra.mxu0 %v1311
    %1751 = vmatprep.subr.bf16.mxu0 %v1316
    %1752 = vmatpush1.bf16.msra.mxu0 %v1315
    %1753 = vmatprep.subr.bf16.mxu0 %v1320
    %1754 = vmatpush1.bf16.msra.mxu0 %v1319
    %1755 = vmatprep.subr.bf16.mxu0 %v1324
    %1756 = vmatpush1.bf16.msra.mxu0 %v1323
    %1757 = vmatprep.subr.bf16.mxu0 %v1328
    %1758 = vmatpush1.bf16.msra.mxu0 %v1327
    %1759 = vmatprep.subr.bf16.mxu0 %v1332
    %1760 = vmatpush1.bf16.msra.mxu0 %v1331
    %1761 = vmatprep.subr.bf16.mxu0 %v1336
    %1762 = vmatpush1.bf16.msra.mxu0 %v1335
    %1763 = vmatprep.subr.bf16.mxu0 %v1340
    %1764 = vmatpush1.bf16.msra.mxu0 %v1339
    %1765 = vmatprep.subr.bf16.mxu0 %v1344
    %1766 = vmatpush1.bf16.msra.mxu0 %v1343
    %1767 = vmatprep.subr.bf16.mxu0 %v1608
    %1768 = vmatpush1.bf16.msra.mxu0 %v1605
    %1769 = vmatprep.subr.bf16.mxu0 0
    %1770 = vmatpush1.bf16.msra.mxu0 0
    %1771 = vmatprep.mubr.bf16.mxu0 %v1601
    %1772 = vmatmul.mubr.bf16.gmra.mrb[0].mxu0 %v75
    %v1773 = vpop.f32.mrb[0].mxu0
    %v1774 = vadd.f32 %v1733, %v1773
    %v1775 = vpop.f32.mrb[0].mxu0
    %v1776 = vadd.f32 %v1735, %v1775
    %v1777 = vpop.f32.mrb[0].mxu0
    %v1778 = vpop.f32.mrb[0].mxu0
    %1779 = vdwg.mxu0
    %1780 = vmatprep.subr.bf16.mxu0 %v1102
    %1781 = vmatpush1.bf16.msra.mxu0 %v1101
    %1782 = vmatprep.subr.bf16.mxu0 %v1106
    %1783 = vmatpush1.bf16.msra.mxu0 %v1105
    %1784 = vmatprep.subr.bf16.mxu0 %v1110
    %1785 = vmatpush1.bf16.msra.mxu0 %v1109
    %1786 = vmatprep.subr.bf16.mxu0 %v1114
    %1787 = vmatpush1.bf16.msra.mxu0 %v1113
    %1788 = vmatprep.subr.bf16.mxu0 %v1118
    %1789 = vmatpush1.bf16.msra.mxu0 %v1117
    %1790 = vmatprep.subr.bf16.mxu0 %v1122
    %1791 = vmatpush1.bf16.msra.mxu0 %v1121
    %1792 = vmatprep.subr.bf16.mxu0 %v1126
    %1793 = vmatpush1.bf16.msra.mxu0 %v1125
    %1794 = vmatprep.subr.bf16.mxu0 %v1130
    %1795 = vmatpush1.bf16.msra.mxu0 %v1129
    %1796 = vmatprep.subr.bf16.mxu0 %v1134
    %1797 = vmatpush1.bf16.msra.mxu0 %v1133
    %1798 = vmatprep.subr.bf16.mxu0 %v1138
    %1799 = vmatpush1.bf16.msra.mxu0 %v1137
    %1800 = vmatprep.subr.bf16.mxu0 %v1142
    %1801 = vmatpush1.bf16.msra.mxu0 %v1141
    %1802 = vmatprep.subr.bf16.mxu0 %v1146
    %1803 = vmatpush1.bf16.msra.mxu0 %v1145
    %1804 = vmatprep.subr.bf16.mxu0 %v1150
    %1805 = vmatpush1.bf16.msra.mxu0 %v1149
    %1806 = vmatprep.subr.bf16.mxu0 %v1154
    %1807 = vmatpush1.bf16.msra.mxu0 %v1153
    %1808 = vmatprep.subr.bf16.mxu0 %v1158
    %1809 = vmatpush1.bf16.msra.mxu0 %v1157
    %1810 = vmatprep.subr.bf16.mxu0 %v1162
    %1811 = vmatpush1.bf16.msra.mxu0 %v1161
    %1812 = vmatprep.mubr.bf16.mxu0 %v70
    %1813 = vmatmul.mubr.bf16.gmra.mrb[0].mxu0 %v69
    %v1814 = vpop.f32.mrb[0].mxu0
    %v1815 = vadd.f32 %v340, %v1814
    %v1816 = vpop.f32.mrb[0].mxu0
    %v1817 = vadd.f32 %v344, %v1816
    %v1818 = vpop.f32.mrb[0].mxu0
    %v1819 = vpop.f32.mrb[0].mxu0
    %1820 = vdwg.mxu0
    %1821 = vmatprep.subr.bf16.mxu0 %v1166
    %1822 = vmatpush1.bf16.msra.mxu0 %v1165
    %1823 = vmatprep.subr.bf16.mxu0 %v1170
    %1824 = vmatpush1.bf16.msra.mxu0 %v1169
    %1825 = vmatprep.subr.bf16.mxu0 %v1174
    %1826 = vmatpush1.bf16.msra.mxu0 %v1173
    %1827 = vmatprep.subr.bf16.mxu0 %v1178
    %1828 = vmatpush1.bf16.msra.mxu0 %v1177
    %1829 = vmatprep.subr.bf16.mxu0 %v1182
    %1830 = vmatpush1.bf16.msra.mxu0 %v1181
    %1831 = vmatprep.subr.bf16.mxu0 %v1186
    %1832 = vmatpush1.bf16.msra.mxu0 %v1185
    %1833 = vmatprep.subr.bf16.mxu0 %v1190
    %1834 = vmatpush1.bf16.msra.mxu0 %v1189
    %1835 = vmatprep.subr.bf16.mxu0 %v1194
    %1836 = vmatpush1.bf16.msra.mxu0 %v1193
    %1837 = vmatprep.subr.bf16.mxu0 %v1198
    %1838 = vmatpush1.bf16.msra.mxu0 %v1197
    %1839 = vmatprep.subr.bf16.mxu0 %v1202
    %1840 = vmatpush1.bf16.msra.mxu0 %v1201
    %1841 = vmatprep.subr.bf16.mxu0 %v1206
    %1842 = vmatpush1.bf16.msra.mxu0 %v1205
    %1843 = vmatprep.subr.bf16.mxu0 %v1210
    %1844 = vmatpush1.bf16.msra.mxu0 %v1209
    %1845 = vmatprep.subr.bf16.mxu0 %v1214
    %1846 = vmatpush1.bf16.msra.mxu0 %v1213
    %1847 = vmatprep.subr.bf16.mxu0 %v1218
    %1848 = vmatpush1.bf16.msra.mxu0 %v1217
    %1849 = vmatprep.subr.bf16.mxu0 %v1222
    %1850 = vmatpush1.bf16.msra.mxu0 %v1221
    %1851 = vmatprep.subr.bf16.mxu0 %v1226
    %1852 = vmatpush1.bf16.msra.mxu0 %v1225
    %1853 = vmatprep.mubr.bf16.mxu0 %v72
    %1854 = vmatmul.mubr.bf16.gmra.mrb[0].mxu0 %v71
    %v1855 = vpop.f32.mrb[0].mxu0
    %v1856 = vadd.f32 %v1815, %v1855
    %v1857 = vpop.f32.mrb[0].mxu0
    %v1858 = vadd.f32 %v1817, %v1857
    %v1859 = vpop.f32.mrb[0].mxu0
    %v1860 = vpop.f32.mrb[0].mxu0
    %1861 = vdwg.mxu0
    %1862 = vmatprep.subr.bf16.mxu0 %v1230
    %1863 = vmatpush1.bf16.msra.mxu0 %v1229
    %1864 = vmatprep.subr.bf16.mxu0 %v1234
    %1865 = vmatpush1.bf16.msra.mxu0 %v1233
    %1866 = vmatprep.subr.bf16.mxu0 %v1238
    %1867 = vmatpush1.bf16.msra.mxu0 %v1237
    %1868 = vmatprep.subr.bf16.mxu0 %v1242
    %1869 = vmatpush1.bf16.msra.mxu0 %v1241
    %1870 = vmatprep.subr.bf16.mxu0 %v1246
    %1871 = vmatpush1.bf16.msra.mxu0 %v1245
    %1872 = vmatprep.subr.bf16.mxu0 %v1250
    %1873 = vmatpush1.bf16.msra.mxu0 %v1249
    %1874 = vmatprep.subr.bf16.mxu0 %v1254
    %1875 = vmatpush1.bf16.msra.mxu0 %v1253
    %1876 = vmatprep.subr.bf16.mxu0 %v1258
    %1877 = vmatpush1.bf16.msra.mxu0 %v1257
    %1878 = vmatprep.subr.bf16.mxu0 %v1262
    %1879 = vmatpush1.bf16.msra.mxu0 %v1261
    %1880 = vmatprep.subr.bf16.mxu0 %v1266
    %1881 = vmatpush1.bf16.msra.mxu0 %v1265
    %1882 = vmatprep.subr.bf16.mxu0 %v1270
    %1883 = vmatpush1.bf16.msra.mxu0 %v1269
    %1884 = vmatprep.subr.bf16.mxu0 %v1274
    %1885 = vmatpush1.bf16.msra.mxu0 %v1273
    %1886 = vmatprep.subr.bf16.mxu0 %v1278
    %1887 = vmatpush1.bf16.msra.mxu0 %v1277
    %1888 = vmatprep.subr.bf16.mxu0 %v1282
    %1889 = vmatpush1.bf16.msra.mxu0 %v1281
    %1890 = vmatprep.subr.bf16.mxu0 %v1286
    %1891 = vmatpush1.bf16.msra.mxu0 %v1285
    %1892 = vmatprep.subr.bf16.mxu0 %v1290
    %1893 = vmatpush1.bf16.msra.mxu0 %v1289
    %1894 = vmatprep.mubr.bf16.mxu0 %v74
    %1895 = vmatmul.mubr.bf16.gmra.mrb[0].mxu0 %v73
    %v1896 = vpop.f32.mrb[0].mxu0
    %v1897 = vadd.f32 %v1856, %v1896
    %v1898 = vpop.f32.mrb[0].mxu0
    %v1899 = vadd.f32 %v1858, %v1898
    %v1900 = vpop.f32.mrb[0].mxu0
    %v1901 = vpop.f32.mrb[0].mxu0
    %1902 = vdwg.mxu0
    %1903 = vmatprep.subr.bf16.mxu0 %v1294
    %1904 = vmatpush1.bf16.msra.mxu0 %v1293
    %1905 = vmatprep.subr.bf16.mxu0 %v1298
    %1906 = vmatpush1.bf16.msra.mxu0 %v1297
    %1907 = vmatprep.subr.bf16.mxu0 %v1302
    %1908 = vmatpush1.bf16.msra.mxu0 %v1301
    %1909 = vmatprep.subr.bf16.mxu0 %v1306
    %1910 = vmatpush1.bf16.msra.mxu0 %v1305
    %1911 = vmatprep.subr.bf16.mxu0 %v1310
    %1912 = vmatpush1.bf16.msra.mxu0 %v1309
    %1913 = vmatprep.subr.bf16.mxu0 %v1314
    %1914 = vmatpush1.bf16.msra.mxu0 %v1313
    %1915 = vmatprep.subr.bf16.mxu0 %v1318
    %1916 = vmatpush1.bf16.msra.mxu0 %v1317
    %1917 = vmatprep.subr.bf16.mxu0 %v1322
    %1918 = vmatpush1.bf16.msra.mxu0 %v1321
    %1919 = vmatprep.subr.bf16.mxu0 %v1326
    %1920 = vmatpush1.bf16.msra.mxu0 %v1325
    %1921 = vmatprep.subr.bf16.mxu0 %v1330
    %1922 = vmatpush1.bf16.msra.mxu0 %v1329
    %1923 = vmatprep.subr.bf16.mxu0 %v1334
    %1924 = vmatpush1.bf16.msra.mxu0 %v1333
    %1925 = vmatprep.subr.bf16.mxu0 %v1338
    %1926 = vmatpush1.bf16.msra.mxu0 %v1337
    %1927 = vmatprep.subr.bf16.mxu0 %v1342
    %1928 = vmatpush1.bf16.msra.mxu0 %v1341
    %1929 = vmatprep.subr.bf16.mxu0 %v1346
    %1930 = vmatpush1.bf16.msra.mxu0 %v1345
    %1931 = vmatprep.subr.bf16.mxu0 %v1614
    %1932 = vmatpush1.bf16.msra.mxu0 %v1611
    %1933 = vmatprep.subr.bf16.mxu0 0
    %1934 = vmatpush1.bf16.msra.mxu0 0
    %1935 = vmatprep.mubr.bf16.mxu0 %v1601
    %1936 = vmatmul.mubr.bf16.gmra.mrb[0].mxu0 %v75
    %v1937 = vpop.f32.mrb[0].mxu0
    %v1938 = vadd.f32 %v1897, %v1937
    %v1939 = vpop.f32.mrb[0].mxu0
    %v1940 = vadd.f32 %v1899, %v1939
    %v1941 = vpop.f32.mrb[0].mxu0
    %v1942 = vpop.f32.mrb[0].mxu0
    %1943 = vdwg.mxu0
    %v1944 = vmax.f32 %v1774, 0.0
    %v1945 = vmax.f32 %v1776, 0.0
    %v1946 = vmax.f32 %v1938, 0.0
    %v1947 = vmax.f32 %v1940, 0.0
    %v1948 = vpack.c.bf16 %v1944, %v1944
    %v1949 = vpack.c.bf16 %v1945, %v1945
    %v1950 = vpack.c.bf16 %v1946, %v1946
    %v1951 = vpack.c.bf16 %v1947, %v1947
    %v1956 = vunpack.c.l.b16 %v1948
    %v1957 = vunpack.c.l.b16 %v1949
    %v1958 = vunpack.c.l.b16 %v1950
    %v1959 = vunpack.c.l.b16 %v1951
    %v1960 = vpack.c.b16 %v1957, %v1956
    %v1961 = vpack.c.b16 %v1959, %v1958
    %1964 = vst [vmem:[#allocation2] sm:$0xff] %v1960
    %1965 = vst [vmem:[#allocation2 + $0x8] sm:$0xff] %v1961
    %v1966 = vld [vmem:[#allocation2] sm:$0xff]
    %v1967 = vld [vmem:[#allocation2 + $0x8] sm:$0xff]
    %v1968 = vld [vmem:[#allocation8] sm:$0xff]
    %v1969 = vld [vmem:[#allocation8 + $0x8] sm:$0xff]
    %v1970 = vld [vmem:[#allocation8 + $0x10] sm:$0xff]
    %v1971 = vld [vmem:[#allocation8 + $0x18] sm:$0xff]
    %v1972 = vld [vmem:[#allocation8 + $0x20] sm:$0xff]
    %v1973 = vld [vmem:[#allocation8 + $0x28] sm:$0xff]
    %v1974 = vld [vmem:[#allocation8 + $0x30] sm:$0xff]
    %v1975 = vld [vmem:[#allocation8 + $0x38] sm:$0xff]
    %v1976 = vld [vmem:[#allocation8 + $0x40] sm:$0xff]
    %v1977 = vld [vmem:[#allocation8 + $0x48] sm:$0xff]
    %v1978 = vld [vmem:[#allocation8 + $0x50] sm:$0xff]
    %v1979 = vld [vmem:[#allocation8 + $0x58] sm:$0xff]
    %v1980 = vld [vmem:[#allocation8 + $0x60] sm:$0xff]
    %v1981 = vld [vmem:[#allocation8 + $0x68] sm:$0xff]
    %v1982 = vld [vmem:[#allocation8 + $0x70] sm:$0xff]
    %v1983 = vld [vmem:[#allocation8 + $0x78] sm:$0xff]
    %v1984 = vld [vmem:[#allocation8 + $0x80] sm:$0xff]
    %v1985 = vld [vmem:[#allocation8 + $0x88] sm:$0xff]
    %v1986 = vld [vmem:[#allocation8 + $0x90] sm:$0xff]
    %v1987 = vld [vmem:[#allocation8 + $0x98] sm:$0xff]
    %v1988 = vld [vmem:[#allocation8 + $0xa0] sm:$0xff]
    %v1989 = vld [vmem:[#allocation8 + $0xa8] sm:$0xff]
    %v1990 = vld [vmem:[#allocation8 + $0xb0] sm:$0xff]
    %v1991 = vld [vmem:[#allocation8 + $0xb8] sm:$0xff]
    %v1992 = vld [vmem:[#allocation8 + $0xc0] sm:$0xff]
    %v1993 = vld [vmem:[#allocation8 + $0xc8] sm:$0xff]
    %v1994 = vld [vmem:[#allocation8 + $0xd0] sm:$0xff]
    %v1995 = vld [vmem:[#allocation8 + $0xd8] sm:$0xff]
    %v1996 = vld [vmem:[#allocation8 + $0xe0] sm:$0xff]
    %v1997 = vld [vmem:[#allocation8 + $0xe8] sm:$0xff]
    %v1998 = vld [vmem:[#allocation8 + $0xf0] sm:$0xff]
    %v1999 = vld [vmem:[#allocation8 + $0xf8] sm:$0xff]
    %v2000 = vld [vmem:[#allocation8 + $0x100] sm:$0xff]
    %v2001 = vld [vmem:[#allocation8 + $0x108] sm:$0xff]
    %v2002 = vld [vmem:[#allocation8 + $0x110] sm:$0xff]
    %v2003 = vld [vmem:[#allocation8 + $0x118] sm:$0xff]
    %v2004 = vld [vmem:[#allocation8 + $0x120] sm:$0xff]
    %v2005 = vld [vmem:[#allocation8 + $0x128] sm:$0xff]
    %v2006 = vld [vmem:[#allocation8 + $0x130] sm:$0xff]
    %v2007 = vld [vmem:[#allocation8 + $0x138] sm:$0xff]
    %v2008 = vld [vmem:[#allocation8 + $0x140] sm:$0xff]
    %v2009 = vld [vmem:[#allocation8 + $0x148] sm:$0xff]
    %v2010 = vld [vmem:[#allocation8 + $0x150] sm:$0xff]
    %v2011 = vld [vmem:[#allocation8 + $0x158] sm:$0xff]
    %v2012 = vld [vmem:[#allocation8 + $0x160] sm:$0xff]
    %v2013 = vld [vmem:[#allocation8 + $0x168] sm:$0xff]
    %v2014 = vld [vmem:[#allocation8 + $0x170] sm:$0xff]
    %v2015 = vld [vmem:[#allocation8 + $0x178] sm:$0xff]
    %v2016 = vld [vmem:[#allocation8 + $0x180] sm:$0xff]
    %v2017 = vld [vmem:[#allocation8 + $0x188] sm:$0xff]
    %v2018 = vld [vmem:[#allocation8 + $0x190] sm:$0xff]
    %v2019 = vld [vmem:[#allocation8 + $0x198] sm:$0xff]
    %v2020 = vld [vmem:[#allocation8 + $0x1a0] sm:$0xff]
    %v2021 = vld [vmem:[#allocation8 + $0x1a8] sm:$0xff]
    %v2022 = vld [vmem:[#allocation8 + $0x1b0] sm:$0xff]
    %v2023 = vld [vmem:[#allocation8 + $0x1b8] sm:$0xff]
    %v2024 = vld [vmem:[#allocation8 + $0x1c0] sm:$0xff]
    %v2025 = vld [vmem:[#allocation8 + $0x1c8] sm:$0xff]
    %v2026 = vld [vmem:[#allocation8 + $0x1d0] sm:$0xff]
    %v2027 = vld [vmem:[#allocation8 + $0x1d8] sm:$0xff]
    %v2028 = vld [vmem:[#allocation8 + $0x1e0] sm:$0xff]
    %v2029 = vld [vmem:[#allocation8 + $0x1e8] sm:$0xff]
    %v2030 = vld [vmem:[#allocation8 + $0x1f0] sm:$0xff]
    %v2031 = vld [vmem:[#allocation8 + $0x1f8] sm:$0xff]
    %v2032 = vld [vmem:[#allocation8 + $0x200] sm:$0xff]
    %v2033 = vld [vmem:[#allocation8 + $0x208] sm:$0xff]
    %v2034 = vld [vmem:[#allocation8 + $0x210] sm:$0xff]
    %v2035 = vld [vmem:[#allocation8 + $0x218] sm:$0xff]
    %v2036 = vld [vmem:[#allocation8 + $0x220] sm:$0xff]
    %v2037 = vld [vmem:[#allocation8 + $0x228] sm:$0xff]
    %v2038 = vld [vmem:[#allocation8 + $0x230] sm:$0xff]
    %v2039 = vld [vmem:[#allocation8 + $0x238] sm:$0xff]
    %v2040 = vld [vmem:[#allocation8 + $0x240] sm:$0xff]
    %v2041 = vld [vmem:[#allocation8 + $0x248] sm:$0xff]
    %v2042 = vld [vmem:[#allocation8 + $0x250] sm:$0xff]
    %v2043 = vld [vmem:[#allocation8 + $0x258] sm:$0xff]
    %v2044 = vld [vmem:[#allocation8 + $0x260] sm:$0xff]
    %v2045 = vld [vmem:[#allocation8 + $0x268] sm:$0xff]
    %v2046 = vld [vmem:[#allocation8 + $0x270] sm:$0xff]
    %v2047 = vld [vmem:[#allocation8 + $0x278] sm:$0xff]
    %v2048 = vld [vmem:[#allocation8 + $0x280] sm:$0xff]
    %v2049 = vld [vmem:[#allocation8 + $0x288] sm:$0xff]
    %v2050 = vld [vmem:[#allocation8 + $0x290] sm:$0xff]
    %v2051 = vld [vmem:[#allocation8 + $0x298] sm:$0xff]
    %v2052 = vld [vmem:[#allocation8 + $0x2a0] sm:$0xff]
    %v2053 = vld [vmem:[#allocation8 + $0x2a8] sm:$0xff]
    %v2054 = vld [vmem:[#allocation8 + $0x2b0] sm:$0xff]
    %v2055 = vld [vmem:[#allocation8 + $0x2b8] sm:$0xff]
    %v2056 = vld [vmem:[#allocation8 + $0x2c0] sm:$0xff]
    %v2057 = vld [vmem:[#allocation8 + $0x2c8] sm:$0xff]
    %v2058 = vld [vmem:[#allocation8 + $0x2d0] sm:$0xff]
    %v2059 = vld [vmem:[#allocation8 + $0x2d8] sm:$0xff]
    %v2060 = vld [vmem:[#allocation8 + $0x2e0] sm:$0xff]
    %v2061 = vld [vmem:[#allocation8 + $0x2e8] sm:$0xff]
    %v2062 = vld [vmem:[#allocation8 + $0x2f0] sm:$0xff]
    %v2063 = vld [vmem:[#allocation8 + $0x2f8] sm:$0xff]
    %v2064 = vld [vmem:[#allocation8 + $0x300] sm:$0xff]
    %v2065 = vld [vmem:[#allocation8 + $0x308] sm:$0xff]
    %v2066 = vld [vmem:[#allocation8 + $0x310] sm:$0xff]
    %v2067 = vld [vmem:[#allocation8 + $0x318] sm:$0xff]
    %v2068 = vld [vmem:[#allocation8 + $0x320] sm:$0xff]
    %v2069 = vld [vmem:[#allocation8 + $0x328] sm:$0xff]
    %v2070 = vld [vmem:[#allocation8 + $0x330] sm:$0xff]
    %v2071 = vld [vmem:[#allocation8 + $0x338] sm:$0xff]
    %v2072 = vld [vmem:[#allocation8 + $0x340] sm:$0xff]
    %v2073 = vld [vmem:[#allocation8 + $0x348] sm:$0xff]
    %v2074 = vld [vmem:[#allocation8 + $0x350] sm:$0xff]
    %v2075 = vld [vmem:[#allocation8 + $0x358] sm:$0xff]
    %v2076 = vld [vmem:[#allocation8 + $0x360] sm:$0xff]
    %v2077 = vld [vmem:[#allocation8 + $0x368] sm:$0xff]
    %v2078 = vld [vmem:[#allocation8 + $0x370] sm:$0xff]
    %v2079 = vld [vmem:[#allocation8 + $0x378] sm:$0xff]
    %v2080 = vld [vmem:[#allocation8 + $0x380] sm:$0xff]
    %v2081 = vld [vmem:[#allocation8 + $0x388] sm:$0xff]
    %v2082 = vld [vmem:[#allocation8 + $0x390] sm:$0xff]
    %v2083 = vld [vmem:[#allocation8 + $0x398] sm:$0xff]
    %v2084 = vld [vmem:[#allocation8 + $0x3a0] sm:$0xff]
    %v2085 = vld [vmem:[#allocation8 + $0x3a8] sm:$0xff]
    %v2086 = vld [vmem:[#allocation8 + $0x3b0] sm:$0xff]
    %v2087 = vld [vmem:[#allocation8 + $0x3b8] sm:$0xff]
    %v2088 = vld [vmem:[#allocation8 + $0x3c0] sm:$0xff]
    %v2089 = vld [vmem:[#allocation8 + $0x3c8] sm:$0xff]
    %v2090 = vld [vmem:[#allocation8 + $0x3d0] sm:$0xff]
    %v2091 = vld [vmem:[#allocation8 + $0x3d8] sm:$0xff]
    %v2092 = vld [vmem:[#allocation8 + $0x3e0] sm:$0xff]
    %v2093 = vld [vmem:[#allocation8 + $0x3e8] sm:$0xff]
    %v2094 = vld [vmem:[#allocation8 + $0x3f0] sm:$0xff]
    %v2095 = vld [vmem:[#allocation8 + $0x3f8] sm:$0xff]
    %v2096 = vld [vmem:[#allocation8 + $0x400] sm:$0xff]
    %v2097 = vld [vmem:[#allocation8 + $0x408] sm:$0xff]
    %v2098 = vld [vmem:[#allocation8 + $0x410] sm:$0xff]
    %v2099 = vld [vmem:[#allocation8 + $0x418] sm:$0xff]
    %v2100 = vld [vmem:[#allocation8 + $0x420] sm:$0xff]
    %v2101 = vld [vmem:[#allocation8 + $0x428] sm:$0xff]
    %v2102 = vld [vmem:[#allocation8 + $0x430] sm:$0xff]
    %v2103 = vld [vmem:[#allocation8 + $0x438] sm:$0xff]
    %v2104 = vld [vmem:[#allocation8 + $0x440] sm:$0xff]
    %v2105 = vld [vmem:[#allocation8 + $0x448] sm:$0xff]
    %v2106 = vld [vmem:[#allocation8 + $0x450] sm:$0xff]
    %v2107 = vld [vmem:[#allocation8 + $0x458] sm:$0xff]
    %v2108 = vld [vmem:[#allocation8 + $0x460] sm:$0xff]
    %v2109 = vld [vmem:[#allocation8 + $0x468] sm:$0xff]
    %v2110 = vld [vmem:[#allocation8 + $0x470] sm:$0xff]
    %v2111 = vld [vmem:[#allocation8 + $0x478] sm:$0xff]
    %v2112 = vld [vmem:[#allocation8 + $0x480] sm:$0xff]
    %v2113 = vld [vmem:[#allocation8 + $0x488] sm:$0xff]
    %v2114 = vld [vmem:[#allocation8 + $0x490] sm:$0xff]
    %v2115 = vld [vmem:[#allocation8 + $0x498] sm:$0xff]
    %v2116 = vld [vmem:[#allocation8 + $0x4a0] sm:$0xff]
    %v2117 = vld [vmem:[#allocation8 + $0x4a8] sm:$0xff]
    %v2118 = vld [vmem:[#allocation8 + $0x4b0] sm:$0xff]
    %v2119 = vld [vmem:[#allocation8 + $0x4b8] sm:$0xff]
    %v2120 = vld [vmem:[#allocation8 + $0x4c0] sm:$0xff]
    %v2121 = vld [vmem:[#allocation8 + $0x4c8] sm:$0xff]
    %v2122 = vld [vmem:[#allocation8 + $0x4d0] sm:$0xff]
    %v2123 = vld [vmem:[#allocation8 + $0x4d8] sm:$0xff]
    %v2124 = vld [vmem:[#allocation8 + $0x4e0] sm:$0xff]
    %v2125 = vld [vmem:[#allocation8 + $0x4e8] sm:$0xff]
    %v2126 = vld [vmem:[#allocation8 + $0x4f0] sm:$0xff]
    %v2127 = vld [vmem:[#allocation8 + $0x4f8] sm:$0xff]
    %v2128 = vld [vmem:[#allocation8 + $0x500] sm:$0xff]
    %v2129 = vld [vmem:[#allocation8 + $0x508] sm:$0xff]
    %v2130 = vld [vmem:[#allocation8 + $0x510] sm:$0xff]
    %v2131 = vld [vmem:[#allocation8 + $0x518] sm:$0xff]
    %v2132 = vld [vmem:[#allocation8 + $0x520] sm:$0xff]
    %v2133 = vld [vmem:[#allocation8 + $0x528] sm:$0xff]
    %v2134 = vld [vmem:[#allocation8 + $0x530] sm:$0xff]
    %v2135 = vld [vmem:[#allocation8 + $0x538] sm:$0xff]
    %v2136 = vld [vmem:[#allocation8 + $0x540] sm:$0xff]
    %v2137 = vld [vmem:[#allocation8 + $0x548] sm:$0xff]
    %v2138 = vld [vmem:[#allocation8 + $0x550] sm:$0xff]
    %v2139 = vld [vmem:[#allocation8 + $0x558] sm:$0xff]
    %v2140 = vld [vmem:[#allocation8 + $0x560] sm:$0xff]
    %v2141 = vld [vmem:[#allocation8 + $0x568] sm:$0xff]
    %v2142 = vld [vmem:[#allocation8 + $0x570] sm:$0xff]
    %v2143 = vld [vmem:[#allocation8 + $0x578] sm:$0xff]
    %v2144 = vld [vmem:[#allocation8 + $0x580] sm:$0xff]
    %v2145 = vld [vmem:[#allocation8 + $0x588] sm:$0xff]
    %v2146 = vld [vmem:[#allocation8 + $0x590] sm:$0xff]
    %v2147 = vld [vmem:[#allocation8 + $0x598] sm:$0xff]
    %v2148 = vld [vmem:[#allocation8 + $0x5a0] sm:$0xff]
    %v2149 = vld [vmem:[#allocation8 + $0x5a8] sm:$0xff]
    %v2150 = vld [vmem:[#allocation8 + $0x5b0] sm:$0xff]
    %v2151 = vld [vmem:[#allocation8 + $0x5b8] sm:$0xff]
    %v2152 = vld [vmem:[#allocation8 + $0x5c0] sm:$0xff]
    %v2153 = vld [vmem:[#allocation8 + $0x5c8] sm:$0xff]
    %v2154 = vld [vmem:[#allocation8 + $0x5d0] sm:$0xff]
    %v2155 = vld [vmem:[#allocation8 + $0x5d8] sm:$0xff]
    %v2156 = vld [vmem:[#allocation8 + $0x5e0] sm:$0xff]
    %v2157 = vld [vmem:[#allocation8 + $0x5e8] sm:$0xff]
    %v2158 = vld [vmem:[#allocation8 + $0x5f0] sm:$0xff]
    %v2159 = vld [vmem:[#allocation8 + $0x5f8] sm:$0xff]
    %v2160 = vld [vmem:[#allocation8 + $0x600] sm:$0xff]
    %v2161 = vld [vmem:[#allocation8 + $0x608] sm:$0xff]
    %v2162 = vld [vmem:[#allocation8 + $0x610] sm:$0xff]
    %v2163 = vld [vmem:[#allocation8 + $0x618] sm:$0xff]
    %v2164 = vld [vmem:[#allocation8 + $0x620] sm:$0xff]
    %v2165 = vld [vmem:[#allocation8 + $0x628] sm:$0xff]
    %v2166 = vld [vmem:[#allocation8 + $0x630] sm:$0xff]
    %v2167 = vld [vmem:[#allocation8 + $0x638] sm:$0xff]
    %v2168 = vld [vmem:[#allocation8 + $0x640] sm:$0xff]
    %v2169 = vld [vmem:[#allocation8 + $0x648] sm:$0xff]
    %v2170 = vld [vmem:[#allocation8 + $0x650] sm:$0xff]
    %v2171 = vld [vmem:[#allocation8 + $0x658] sm:$0xff]
    %v2172 = vld [vmem:[#allocation8 + $0x660] sm:$0xff]
    %v2173 = vld [vmem:[#allocation8 + $0x668] sm:$0xff]
    %v2174 = vld [vmem:[#allocation8 + $0x670] sm:$0xff]
    %v2175 = vld [vmem:[#allocation8 + $0x678] sm:$0xff]
    %v2176 = vld [vmem:[#allocation8 + $0x680] sm:$0xff]
    %v2177 = vld [vmem:[#allocation8 + $0x688] sm:$0xff]
    %v2178 = vld [vmem:[#allocation8 + $0x690] sm:$0xff]
    %v2179 = vld [vmem:[#allocation8 + $0x698] sm:$0xff]
    %v2180 = vld [vmem:[#allocation8 + $0x6a0] sm:$0xff]
    %v2181 = vld [vmem:[#allocation8 + $0x6a8] sm:$0xff]
    %v2182 = vld [vmem:[#allocation8 + $0x6b0] sm:$0xff]
    %v2183 = vld [vmem:[#allocation8 + $0x6b8] sm:$0xff]
    %v2184 = vld [vmem:[#allocation8 + $0x6c0] sm:$0xff]
    %v2185 = vld [vmem:[#allocation8 + $0x6c8] sm:$0xff]
    %v2186 = vld [vmem:[#allocation8 + $0x6d0] sm:$0xff]
    %v2187 = vld [vmem:[#allocation8 + $0x6d8] sm:$0xff]
    %v2188 = vld [vmem:[#allocation8 + $0x6e0] sm:$0xff]
    %v2189 = vld [vmem:[#allocation8 + $0x6e8] sm:$0xff]
    %v2190 = vld [vmem:[#allocation8 + $0x6f0] sm:$0xff]
    %v2191 = vld [vmem:[#allocation8 + $0x6f8] sm:$0xff]
    %v2192 = vld [vmem:[#allocation8 + $0x700] sm:$0xff]
    %v2193 = vld [vmem:[#allocation8 + $0x708] sm:$0xff]
    %v2194 = vld [vmem:[#allocation8 + $0x710] sm:$0xff]
    %v2195 = vld [vmem:[#allocation8 + $0x718] sm:$0xff]
    %v2196 = vld [vmem:[#allocation8 + $0x720] sm:$0xff]
    %v2197 = vld [vmem:[#allocation8 + $0x728] sm:$0xff]
    %v2198 = vld [vmem:[#allocation8 + $0x730] sm:$0xff]
    %v2199 = vld [vmem:[#allocation8 + $0x738] sm:$0xff]
    %v2200 = vld [vmem:[#allocation8 + $0x740] sm:$0xff]
    %v2201 = vld [vmem:[#allocation8 + $0x748] sm:$0xff]
    %v2202 = vld [vmem:[#allocation8 + $0x750] sm:$0xff]
    %v2203 = vld [vmem:[#allocation8 + $0x758] sm:$0xff]
    %v2204 = vld [vmem:[#allocation8 + $0x760] sm:$0xff]
    %v2205 = vld [vmem:[#allocation8 + $0x768] sm:$0xff]
    %v2206 = vld [vmem:[#allocation8 + $0x770] sm:$0xff]
    %v2207 = vld [vmem:[#allocation8 + $0x778] sm:$0xff]
    %v2208 = vld [vmem:[#allocation8 + $0x780] sm:$0xff]
    %v2209 = vld [vmem:[#allocation8 + $0x788] sm:$0xff]
    %v2210 = vld [vmem:[#allocation8 + $0x790] sm:$0xff]
    %v2211 = vld [vmem:[#allocation8 + $0x798] sm:$0xff]
    %v2212 = vld [vmem:[#allocation8 + $0x7a0] sm:$0xff]
    %v2213 = vld [vmem:[#allocation8 + $0x7a8] sm:$0xff]
    %v2214 = vld [vmem:[#allocation8 + $0x7b0] sm:$0xff]
    %v2215 = vld [vmem:[#allocation8 + $0x7b8] sm:$0xff]
    %v2216 = vld [vmem:[#allocation8 + $0x7c0] sm:$0xff]
    %v2217 = vld [vmem:[#allocation8 + $0x7c8] sm:$0xff]
    %v2218 = vld [vmem:[#allocation8 + $0x7d0] sm:$0xff]
    %v2219 = vld [vmem:[#allocation8 + $0x7d8] sm:$0xff]
    %v2220 = vld [vmem:[#allocation8 + $0x7e0] sm:$0xff]
    %v2221 = vld [vmem:[#allocation8 + $0x7e8] sm:$0xff]
    %v2222 = vld [vmem:[#allocation8 + $0x7f0] sm:$0xff]
    %v2223 = vld [vmem:[#allocation8 + $0x7f8] sm:$0xff]
    %v2224 = vld [vmem:[%s4] sm:$0xff]
    %v2226 = vlaneseq
    %v2227 = vshrl.u32 %v2226, 7
    %v2228 = vsub.s32 0, %v2227
    %v2229 = vrot.slane %v2224, %v2228
    %v2230 = vlaneseq
    %v2231 = vshrl.u32 %v2230, 7
    %v2232 = vsub.s32 1, %v2231
    %v2233 = vrot.slane %v2224, %v2232
    %v2234 = vlaneseq
    %v2235 = vshrl.u32 %v2234, 7
    %v2236 = vsub.s32 2, %v2235
    %v2237 = vrot.slane %v2224, %v2236
    %v2238 = vlaneseq
    %v2239 = vshrl.u32 %v2238, 7
    %v2240 = vsub.s32 3, %v2239
    %v2241 = vrot.slane %v2224, %v2240
    %v2242 = vlaneseq
    %v2243 = vshrl.u32 %v2242, 7
    %v2244 = vsub.s32 4, %v2243
    %v2245 = vrot.slane %v2224, %v2244
    %v2246 = vlaneseq
    %v2247 = vshrl.u32 %v2246, 7
    %v2248 = vsub.s32 5, %v2247
    %v2249 = vrot.slane %v2224, %v2248
    %v2250 = vlaneseq
    %v2251 = vshrl.u32 %v2250, 7
    %v2252 = vsub.s32 6, %v2251
    %v2253 = vrot.slane %v2224, %v2252
    %v2254 = vlaneseq
    %v2255 = vshrl.u32 %v2254, 7
    %v2256 = vsub.s32 7, %v2255
    %v2257 = vrot.slane %v2224, %v2256
    %v2268 = vunpack.c.l.b16 %v1966
    %v2269 = vunpack.c.h.b16 %v1966
    %v2270 = vunpack.c.l.b16 %v1967
    %v2271 = vunpack.c.h.b16 %v1967
    %v2272 = vpack.c.b16 %v2268, %v2268
    %v2273 = vpack.c.b16 %v2269, %v2269
    %v2274 = vpack.c.b16 %v2270, %v2270
    %v2275 = vpack.c.b16 %v2271, %v2271
    %v2536 = vunpack.c.l.b16 %v1968
    %v2537 = vunpack.c.h.b16 %v1968
    %v2538 = vunpack.c.l.b16 %v1969
    %v2539 = vunpack.c.h.b16 %v1969
    %v2540 = vunpack.c.l.b16 %v1970
    %v2541 = vunpack.c.h.b16 %v1970
    %v2542 = vunpack.c.l.b16 %v1971
    %v2543 = vunpack.c.h.b16 %v1971
    %v2544 = vunpack.c.l.b16 %v1972
    %v2545 = vunpack.c.h.b16 %v1972
    %v2546 = vunpack.c.l.b16 %v1973
    %v2547 = vunpack.c.h.b16 %v1973
    %v2548 = vunpack.c.l.b16 %v1974
    %v2549 = vunpack.c.h.b16 %v1974
    %v2550 = vunpack.c.l.b16 %v1975
    %v2551 = vunpack.c.h.b16 %v1975
    %v2552 = vunpack.c.l.b16 %v1976
    %v2553 = vunpack.c.h.b16 %v1976
    %v2554 = vunpack.c.l.b16 %v1977
    %v2555 = vunpack.c.h.b16 %v1977
    %v2556 = vunpack.c.l.b16 %v1978
    %v2557 = vunpack.c.h.b16 %v1978
    %v2558 = vunpack.c.l.b16 %v1979
    %v2559 = vunpack.c.h.b16 %v1979
    %v2560 = vunpack.c.l.b16 %v1980
    %v2561 = vunpack.c.h.b16 %v1980
    %v2562 = vunpack.c.l.b16 %v1981
    %v2563 = vunpack.c.h.b16 %v1981
    %v2564 = vunpack.c.l.b16 %v1982
    %v2565 = vunpack.c.h.b16 %v1982
    %v2566 = vunpack.c.l.b16 %v1983
    %v2567 = vunpack.c.h.b16 %v1983
    %v2568 = vunpack.c.l.b16 %v1984
    %v2569 = vunpack.c.h.b16 %v1984
    %v2570 = vunpack.c.l.b16 %v1985
    %v2571 = vunpack.c.h.b16 %v1985
    %v2572 = vunpack.c.l.b16 %v1986
    %v2573 = vunpack.c.h.b16 %v1986
    %v2574 = vunpack.c.l.b16 %v1987
    %v2575 = vunpack.c.h.b16 %v1987
    %v2576 = vunpack.c.l.b16 %v1988
    %v2577 = vunpack.c.h.b16 %v1988
    %v2578 = vunpack.c.l.b16 %v1989
    %v2579 = vunpack.c.h.b16 %v1989
    %v2580 = vunpack.c.l.b16 %v1990
    %v2581 = vunpack.c.h.b16 %v1990
    %v2582 = vunpack.c.l.b16 %v1991
    %v2583 = vunpack.c.h.b16 %v1991
    %v2584 = vunpack.c.l.b16 %v1992
    %v2585 = vunpack.c.h.b16 %v1992
    %v2586 = vunpack.c.l.b16 %v1993
    %v2587 = vunpack.c.h.b16 %v1993
    %v2588 = vunpack.c.l.b16 %v1994
    %v2589 = vunpack.c.h.b16 %v1994
    %v2590 = vunpack.c.l.b16 %v1995
    %v2591 = vunpack.c.h.b16 %v1995
    %v2592 = vunpack.c.l.b16 %v1996
    %v2593 = vunpack.c.h.b16 %v1996
    %v2594 = vunpack.c.l.b16 %v1997
    %v2595 = vunpack.c.h.b16 %v1997
    %v2596 = vunpack.c.l.b16 %v1998
    %v2597 = vunpack.c.h.b16 %v1998
    %v2598 = vunpack.c.l.b16 %v1999
    %v2599 = vunpack.c.h.b16 %v1999
    %v2600 = vunpack.c.l.b16 %v2000
    %v2601 = vunpack.c.h.b16 %v2000
    %v2602 = vunpack.c.l.b16 %v2001
    %v2603 = vunpack.c.h.b16 %v2001
    %v2604 = vunpack.c.l.b16 %v2002
    %v2605 = vunpack.c.h.b16 %v2002
    %v2606 = vunpack.c.l.b16 %v2003
    %v2607 = vunpack.c.h.b16 %v2003
    %v2608 = vunpack.c.l.b16 %v2004
    %v2609 = vunpack.c.h.b16 %v2004
    %v2610 = vunpack.c.l.b16 %v2005
    %v2611 = vunpack.c.h.b16 %v2005
    %v2612 = vunpack.c.l.b16 %v2006
    %v2613 = vunpack.c.h.b16 %v2006
    %v2614 = vunpack.c.l.b16 %v2007
    %v2615 = vunpack.c.h.b16 %v2007
    %v2616 = vunpack.c.l.b16 %v2008
    %v2617 = vunpack.c.h.b16 %v2008
    %v2618 = vunpack.c.l.b16 %v2009
    %v2619 = vunpack.c.h.b16 %v2009
    %v2620 = vunpack.c.l.b16 %v2010
    %v2621 = vunpack.c.h.b16 %v2010
    %v2622 = vunpack.c.l.b16 %v2011
    %v2623 = vunpack.c.h.b16 %v2011
    %v2624 = vunpack.c.l.b16 %v2012
    %v2625 = vunpack.c.h.b16 %v2012
    %v2626 = vunpack.c.l.b16 %v2013
    %v2627 = vunpack.c.h.b16 %v2013
    %v2628 = vunpack.c.l.b16 %v2014
    %v2629 = vunpack.c.h.b16 %v2014
    %v2630 = vunpack.c.l.b16 %v2015
    %v2631 = vunpack.c.h.b16 %v2015
    %v2632 = vunpack.c.l.b16 %v2016
    %v2633 = vunpack.c.h.b16 %v2016
    %v2634 = vunpack.c.l.b16 %v2017
    %v2635 = vunpack.c.h.b16 %v2017
    %v2636 = vunpack.c.l.b16 %v2018
    %v2637 = vunpack.c.h.b16 %v2018
    %v2638 = vunpack.c.l.b16 %v2019
    %v2639 = vunpack.c.h.b16 %v2019
    %v2640 = vunpack.c.l.b16 %v2020
    %v2641 = vunpack.c.h.b16 %v2020
    %v2642 = vunpack.c.l.b16 %v2021
    %v2643 = vunpack.c.h.b16 %v2021
    %v2644 = vunpack.c.l.b16 %v2022
    %v2645 = vunpack.c.h.b16 %v2022
    %v2646 = vunpack.c.l.b16 %v2023
    %v2647 = vunpack.c.h.b16 %v2023
    %v2648 = vunpack.c.l.b16 %v2024
    %v2649 = vunpack.c.h.b16 %v2024
    %v2650 = vunpack.c.l.b16 %v2025
    %v2651 = vunpack.c.h.b16 %v2025
    %v2652 = vunpack.c.l.b16 %v2026
    %v2653 = vunpack.c.h.b16 %v2026
    %v2654 = vunpack.c.l.b16 %v2027
    %v2655 = vunpack.c.h.b16 %v2027
    %v2656 = vunpack.c.l.b16 %v2028
    %v2657 = vunpack.c.h.b16 %v2028
    %v2658 = vunpack.c.l.b16 %v2029
    %v2659 = vunpack.c.h.b16 %v2029
    %v2660 = vunpack.c.l.b16 %v2030
    %v2661 = vunpack.c.h.b16 %v2030
    %v2662 = vunpack.c.l.b16 %v2031
    %v2663 = vunpack.c.h.b16 %v2031
    %v2664 = vunpack.c.l.b16 %v2032
    %v2665 = vunpack.c.h.b16 %v2032
    %v2666 = vunpack.c.l.b16 %v2033
    %v2667 = vunpack.c.h.b16 %v2033
    %v2668 = vunpack.c.l.b16 %v2034
    %v2669 = vunpack.c.h.b16 %v2034
    %v2670 = vunpack.c.l.b16 %v2035
    %v2671 = vunpack.c.h.b16 %v2035
    %v2672 = vunpack.c.l.b16 %v2036
    %v2673 = vunpack.c.h.b16 %v2036
    %v2674 = vunpack.c.l.b16 %v2037
    %v2675 = vunpack.c.h.b16 %v2037
    %v2676 = vunpack.c.l.b16 %v2038
    %v2677 = vunpack.c.h.b16 %v2038
    %v2678 = vunpack.c.l.b16 %v2039
    %v2679 = vunpack.c.h.b16 %v2039
    %v2680 = vunpack.c.l.b16 %v2040
    %v2681 = vunpack.c.h.b16 %v2040
    %v2682 = vunpack.c.l.b16 %v2041
    %v2683 = vunpack.c.h.b16 %v2041
    %v2684 = vunpack.c.l.b16 %v2042
    %v2685 = vunpack.c.h.b16 %v2042
    %v2686 = vunpack.c.l.b16 %v2043
    %v2687 = vunpack.c.h.b16 %v2043
    %v2688 = vunpack.c.l.b16 %v2044
    %v2689 = vunpack.c.h.b16 %v2044
    %v2690 = vunpack.c.l.b16 %v2045
    %v2691 = vunpack.c.h.b16 %v2045
    %v2692 = vunpack.c.l.b16 %v2046
    %v2693 = vunpack.c.h.b16 %v2046
    %v2694 = vunpack.c.l.b16 %v2047
    %v2695 = vunpack.c.h.b16 %v2047
    %v2696 = vunpack.c.l.b16 %v2048
    %v2697 = vunpack.c.h.b16 %v2048
    %v2698 = vunpack.c.l.b16 %v2049
    %v2699 = vunpack.c.h.b16 %v2049
    %v2700 = vunpack.c.l.b16 %v2050
    %v2701 = vunpack.c.h.b16 %v2050
    %v2702 = vunpack.c.l.b16 %v2051
    %v2703 = vunpack.c.h.b16 %v2051
    %v2704 = vunpack.c.l.b16 %v2052
    %v2705 = vunpack.c.h.b16 %v2052
    %v2706 = vunpack.c.l.b16 %v2053
    %v2707 = vunpack.c.h.b16 %v2053
    %v2708 = vunpack.c.l.b16 %v2054
    %v2709 = vunpack.c.h.b16 %v2054
    %v2710 = vunpack.c.l.b16 %v2055
    %v2711 = vunpack.c.h.b16 %v2055
    %v2712 = vunpack.c.l.b16 %v2056
    %v2713 = vunpack.c.h.b16 %v2056
    %v2714 = vunpack.c.l.b16 %v2057
    %v2715 = vunpack.c.h.b16 %v2057
    %v2716 = vunpack.c.l.b16 %v2058
    %v2717 = vunpack.c.h.b16 %v2058
    %v2718 = vunpack.c.l.b16 %v2059
    %v2719 = vunpack.c.h.b16 %v2059
    %v2720 = vunpack.c.l.b16 %v2060
    %v2721 = vunpack.c.h.b16 %v2060
    %v2722 = vunpack.c.l.b16 %v2061
    %v2723 = vunpack.c.h.b16 %v2061
    %v2724 = vunpack.c.l.b16 %v2062
    %v2725 = vunpack.c.h.b16 %v2062
    %v2726 = vunpack.c.l.b16 %v2063
    %v2727 = vunpack.c.h.b16 %v2063
    %v2728 = vunpack.c.l.b16 %v2064
    %v2729 = vunpack.c.h.b16 %v2064
    %v2730 = vunpack.c.l.b16 %v2065
    %v2731 = vunpack.c.h.b16 %v2065
    %v2732 = vunpack.c.l.b16 %v2066
    %v2733 = vunpack.c.h.b16 %v2066
    %v2734 = vunpack.c.l.b16 %v2067
    %v2735 = vunpack.c.h.b16 %v2067
    %v2736 = vunpack.c.l.b16 %v2068
    %v2737 = vunpack.c.h.b16 %v2068
    %v2738 = vunpack.c.l.b16 %v2069
    %v2739 = vunpack.c.h.b16 %v2069
    %v2740 = vunpack.c.l.b16 %v2070
    %v2741 = vunpack.c.h.b16 %v2070
    %v2742 = vunpack.c.l.b16 %v2071
    %v2743 = vunpack.c.h.b16 %v2071
    %v2744 = vunpack.c.l.b16 %v2072
    %v2745 = vunpack.c.h.b16 %v2072
    %v2746 = vunpack.c.l.b16 %v2073
    %v2747 = vunpack.c.h.b16 %v2073
    %v2748 = vunpack.c.l.b16 %v2074
    %v2749 = vunpack.c.h.b16 %v2074
    %v2750 = vunpack.c.l.b16 %v2075
    %v2751 = vunpack.c.h.b16 %v2075
    %v2752 = vunpack.c.l.b16 %v2076
    %v2753 = vunpack.c.h.b16 %v2076
    %v2754 = vunpack.c.l.b16 %v2077
    %v2755 = vunpack.c.h.b16 %v2077
    %v2756 = vunpack.c.l.b16 %v2078
    %v2757 = vunpack.c.h.b16 %v2078
    %v2758 = vunpack.c.l.b16 %v2079
    %v2759 = vunpack.c.h.b16 %v2079
    %v2760 = vunpack.c.l.b16 %v2080
    %v2761 = vunpack.c.h.b16 %v2080
    %v2762 = vunpack.c.l.b16 %v2081
    %v2763 = vunpack.c.h.b16 %v2081
    %v2764 = vunpack.c.l.b16 %v2082
    %v2765 = vunpack.c.h.b16 %v2082
    %v2766 = vunpack.c.l.b16 %v2083
    %v2767 = vunpack.c.h.b16 %v2083
    %v2768 = vunpack.c.l.b16 %v2084
    %v2769 = vunpack.c.h.b16 %v2084
    %v2770 = vunpack.c.l.b16 %v2085
    %v2771 = vunpack.c.h.b16 %v2085
    %v2772 = vunpack.c.l.b16 %v2086
    %v2773 = vunpack.c.h.b16 %v2086
    %v2774 = vunpack.c.l.b16 %v2087
    %v2775 = vunpack.c.h.b16 %v2087
    %v2776 = vunpack.c.l.b16 %v2088
    %v2777 = vunpack.c.h.b16 %v2088
    %v2778 = vunpack.c.l.b16 %v2089
    %v2779 = vunpack.c.h.b16 %v2089
    %v2780 = vunpack.c.l.b16 %v2090
    %v2781 = vunpack.c.h.b16 %v2090
    %v2782 = vunpack.c.l.b16 %v2091
    %v2783 = vunpack.c.h.b16 %v2091
    %v2784 = vunpack.c.l.b16 %v2092
    %v2785 = vunpack.c.h.b16 %v2092
    %v2786 = vunpack.c.l.b16 %v2093
    %v2787 = vunpack.c.h.b16 %v2093
    %v2788 = vunpack.c.l.b16 %v2094
    %v2789 = vunpack.c.h.b16 %v2094
    %v2790 = vunpack.c.l.b16 %v2095
    %v2791 = vunpack.c.h.b16 %v2095
    %v2792 = vunpack.c.l.b16 %v2096
    %v2793 = vunpack.c.h.b16 %v2096
    %v2794 = vunpack.c.l.b16 %v2097
    %v2795 = vunpack.c.h.b16 %v2097
    %v2796 = vunpack.c.l.b16 %v2098
    %v2797 = vunpack.c.h.b16 %v2098
    %v2798 = vunpack.c.l.b16 %v2099
    %v2799 = vunpack.c.h.b16 %v2099
    %v2800 = vunpack.c.l.b16 %v2100
    %v2801 = vunpack.c.h.b16 %v2100
    %v2802 = vunpack.c.l.b16 %v2101
    %v2803 = vunpack.c.h.b16 %v2101
    %v2804 = vunpack.c.l.b16 %v2102
    %v2805 = vunpack.c.h.b16 %v2102
    %v2806 = vunpack.c.l.b16 %v2103
    %v2807 = vunpack.c.h.b16 %v2103
    %v2808 = vunpack.c.l.b16 %v2104
    %v2809 = vunpack.c.h.b16 %v2104
    %v2810 = vunpack.c.l.b16 %v2105
    %v2811 = vunpack.c.h.b16 %v2105
    %v2812 = vunpack.c.l.b16 %v2106
    %v2813 = vunpack.c.h.b16 %v2106
    %v2814 = vunpack.c.l.b16 %v2107
    %v2815 = vunpack.c.h.b16 %v2107
    %v2816 = vunpack.c.l.b16 %v2108
    %v2817 = vunpack.c.h.b16 %v2108
    %v2818 = vunpack.c.l.b16 %v2109
    %v2819 = vunpack.c.h.b16 %v2109
    %v2820 = vunpack.c.l.b16 %v2110
    %v2821 = vunpack.c.h.b16 %v2110
    %v2822 = vunpack.c.l.b16 %v2111
    %v2823 = vunpack.c.h.b16 %v2111
    %v2824 = vunpack.c.l.b16 %v2112
    %v2825 = vunpack.c.h.b16 %v2112
    %v2826 = vunpack.c.l.b16 %v2113
    %v2827 = vunpack.c.h.b16 %v2113
    %v2828 = vunpack.c.l.b16 %v2114
    %v2829 = vunpack.c.h.b16 %v2114
    %v2830 = vunpack.c.l.b16 %v2115
    %v2831 = vunpack.c.h.b16 %v2115
    %v2832 = vunpack.c.l.b16 %v2116
    %v2833 = vunpack.c.h.b16 %v2116
    %v2834 = vunpack.c.l.b16 %v2117
    %v2835 = vunpack.c.h.b16 %v2117
    %v2836 = vunpack.c.l.b16 %v2118
    %v2837 = vunpack.c.h.b16 %v2118
    %v2838 = vunpack.c.l.b16 %v2119
    %v2839 = vunpack.c.h.b16 %v2119
    %v2840 = vunpack.c.l.b16 %v2120
    %v2841 = vunpack.c.h.b16 %v2120
    %v2842 = vunpack.c.l.b16 %v2121
    %v2843 = vunpack.c.h.b16 %v2121
    %v2844 = vunpack.c.l.b16 %v2122
    %v2845 = vunpack.c.h.b16 %v2122
    %v2846 = vunpack.c.l.b16 %v2123
    %v2847 = vunpack.c.h.b16 %v2123
    %v2848 = vunpack.c.l.b16 %v2124
    %v2849 = vunpack.c.h.b16 %v2124
    %v2850 = vunpack.c.l.b16 %v2125
    %v2851 = vunpack.c.h.b16 %v2125
    %v2852 = vunpack.c.l.b16 %v2126
    %v2853 = vunpack.c.h.b16 %v2126
    %v2854 = vunpack.c.l.b16 %v2127
    %v2855 = vunpack.c.h.b16 %v2127
    %v2856 = vunpack.c.l.b16 %v2128
    %v2857 = vunpack.c.h.b16 %v2128
    %v2858 = vunpack.c.l.b16 %v2129
    %v2859 = vunpack.c.h.b16 %v2129
    %v2860 = vunpack.c.l.b16 %v2130
    %v2861 = vunpack.c.h.b16 %v2130
    %v2862 = vunpack.c.l.b16 %v2131
    %v2863 = vunpack.c.h.b16 %v2131
    %v2864 = vunpack.c.l.b16 %v2132
    %v2865 = vunpack.c.h.b16 %v2132
    %v2866 = vunpack.c.l.b16 %v2133
    %v2867 = vunpack.c.h.b16 %v2133
    %v2868 = vunpack.c.l.b16 %v2134
    %v2869 = vunpack.c.h.b16 %v2134
    %v2870 = vunpack.c.l.b16 %v2135
    %v2871 = vunpack.c.h.b16 %v2135
    %v2872 = vunpack.c.l.b16 %v2136
    %v2873 = vunpack.c.h.b16 %v2136
    %v2874 = vunpack.c.l.b16 %v2137
    %v2875 = vunpack.c.h.b16 %v2137
    %v2876 = vunpack.c.l.b16 %v2138
    %v2877 = vunpack.c.h.b16 %v2138
    %v2878 = vunpack.c.l.b16 %v2139
    %v2879 = vunpack.c.h.b16 %v2139
    %v2880 = vunpack.c.l.b16 %v2140
    %v2881 = vunpack.c.h.b16 %v2140
    %v2882 = vunpack.c.l.b16 %v2141
    %v2883 = vunpack.c.h.b16 %v2141
    %v2884 = vunpack.c.l.b16 %v2142
    %v2885 = vunpack.c.h.b16 %v2142
    %v2886 = vunpack.c.l.b16 %v2143
    %v2887 = vunpack.c.h.b16 %v2143
    %v2888 = vunpack.c.l.b16 %v2144
    %v2889 = vunpack.c.h.b16 %v2144
    %v2890 = vunpack.c.l.b16 %v2145
    %v2891 = vunpack.c.h.b16 %v2145
    %v2892 = vunpack.c.l.b16 %v2146
    %v2893 = vunpack.c.h.b16 %v2146
    %v2894 = vunpack.c.l.b16 %v2147
    %v2895 = vunpack.c.h.b16 %v2147
    %v2896 = vunpack.c.l.b16 %v2148
    %v2897 = vunpack.c.h.b16 %v2148
    %v2898 = vunpack.c.l.b16 %v2149
    %v2899 = vunpack.c.h.b16 %v2149
    %v2900 = vunpack.c.l.b16 %v2150
    %v2901 = vunpack.c.h.b16 %v2150
    %v2902 = vunpack.c.l.b16 %v2151
    %v2903 = vunpack.c.h.b16 %v2151
    %v2904 = vunpack.c.l.b16 %v2152
    %v2905 = vunpack.c.h.b16 %v2152
    %v2906 = vunpack.c.l.b16 %v2153
    %v2907 = vunpack.c.h.b16 %v2153
    %v2908 = vunpack.c.l.b16 %v2154
    %v2909 = vunpack.c.h.b16 %v2154
    %v2910 = vunpack.c.l.b16 %v2155
    %v2911 = vunpack.c.h.b16 %v2155
    %v2912 = vunpack.c.l.b16 %v2156
    %v2913 = vunpack.c.h.b16 %v2156
    %v2914 = vunpack.c.l.b16 %v2157
    %v2915 = vunpack.c.h.b16 %v2157
    %v2916 = vunpack.c.l.b16 %v2158
    %v2917 = vunpack.c.h.b16 %v2158
    %v2918 = vunpack.c.l.b16 %v2159
    %v2919 = vunpack.c.h.b16 %v2159
    %v2920 = vunpack.c.l.b16 %v2160
    %v2921 = vunpack.c.h.b16 %v2160
    %v2922 = vunpack.c.l.b16 %v2161
    %v2923 = vunpack.c.h.b16 %v2161
    %v2924 = vunpack.c.l.b16 %v2162
    %v2925 = vunpack.c.h.b16 %v2162
    %v2926 = vunpack.c.l.b16 %v2163
    %v2927 = vunpack.c.h.b16 %v2163
    %v2928 = vunpack.c.l.b16 %v2164
    %v2929 = vunpack.c.h.b16 %v2164
    %v2930 = vunpack.c.l.b16 %v2165
    %v2931 = vunpack.c.h.b16 %v2165
    %v2932 = vunpack.c.l.b16 %v2166
    %v2933 = vunpack.c.h.b16 %v2166
    %v2934 = vunpack.c.l.b16 %v2167
    %v2935 = vunpack.c.h.b16 %v2167
    %v2936 = vunpack.c.l.b16 %v2168
    %v2937 = vunpack.c.h.b16 %v2168
    %v2938 = vunpack.c.l.b16 %v2169
    %v2939 = vunpack.c.h.b16 %v2169
    %v2940 = vunpack.c.l.b16 %v2170
    %v2941 = vunpack.c.h.b16 %v2170
    %v2942 = vunpack.c.l.b16 %v2171
    %v2943 = vunpack.c.h.b16 %v2171
    %v2944 = vunpack.c.l.b16 %v2172
    %v2945 = vunpack.c.h.b16 %v2172
    %v2946 = vunpack.c.l.b16 %v2173
    %v2947 = vunpack.c.h.b16 %v2173
    %v2948 = vunpack.c.l.b16 %v2174
    %v2949 = vunpack.c.h.b16 %v2174
    %v2950 = vunpack.c.l.b16 %v2175
    %v2951 = vunpack.c.h.b16 %v2175
    %v2952 = vunpack.c.l.b16 %v2176
    %v2953 = vunpack.c.h.b16 %v2176
    %v2954 = vunpack.c.l.b16 %v2177
    %v2955 = vunpack.c.h.b16 %v2177
    %v2956 = vunpack.c.l.b16 %v2178
    %v2957 = vunpack.c.h.b16 %v2178
    %v2958 = vunpack.c.l.b16 %v2179
    %v2959 = vunpack.c.h.b16 %v2179
    %v2960 = vunpack.c.l.b16 %v2180
    %v2961 = vunpack.c.h.b16 %v2180
    %v2962 = vunpack.c.l.b16 %v2181
    %v2963 = vunpack.c.h.b16 %v2181
    %v2964 = vunpack.c.l.b16 %v2182
    %v2965 = vunpack.c.h.b16 %v2182
    %v2966 = vunpack.c.l.b16 %v2183
    %v2967 = vunpack.c.h.b16 %v2183
    %v2968 = vunpack.c.l.b16 %v2184
    %v2969 = vunpack.c.h.b16 %v2184
    %v2970 = vunpack.c.l.b16 %v2185
    %v2971 = vunpack.c.h.b16 %v2185
    %v2972 = vunpack.c.l.b16 %v2186
    %v2973 = vunpack.c.h.b16 %v2186
    %v2974 = vunpack.c.l.b16 %v2187
    %v2975 = vunpack.c.h.b16 %v2187
    %v2976 = vunpack.c.l.b16 %v2188
    %v2977 = vunpack.c.h.b16 %v2188
    %v2978 = vunpack.c.l.b16 %v2189
    %v2979 = vunpack.c.h.b16 %v2189
    %v2980 = vunpack.c.l.b16 %v2190
    %v2981 = vunpack.c.h.b16 %v2190
    %v2982 = vunpack.c.l.b16 %v2191
    %v2983 = vunpack.c.h.b16 %v2191
    %v2984 = vunpack.c.l.b16 %v2192
    %v2985 = vunpack.c.h.b16 %v2192
    %v2986 = vunpack.c.l.b16 %v2193
    %v2987 = vunpack.c.h.b16 %v2193
    %v2988 = vunpack.c.l.b16 %v2194
    %v2989 = vunpack.c.h.b16 %v2194
    %v2990 = vunpack.c.l.b16 %v2195
    %v2991 = vunpack.c.h.b16 %v2195
    %v2992 = vunpack.c.l.b16 %v2196
    %v2993 = vunpack.c.h.b16 %v2196
    %v2994 = vunpack.c.l.b16 %v2197
    %v2995 = vunpack.c.h.b16 %v2197
    %v2996 = vunpack.c.l.b16 %v2198
    %v2997 = vunpack.c.h.b16 %v2198
    %v2998 = vunpack.c.l.b16 %v2199
    %v2999 = vunpack.c.h.b16 %v2199
    %v3000 = vunpack.c.l.b16 %v2200
    %v3001 = vunpack.c.h.b16 %v2200
    %v3002 = vunpack.c.l.b16 %v2201
    %v3003 = vunpack.c.h.b16 %v2201
    %v3004 = vunpack.c.l.b16 %v2202
    %v3005 = vunpack.c.h.b16 %v2202
    %v3006 = vunpack.c.l.b16 %v2203
    %v3007 = vunpack.c.h.b16 %v2203
    %v3008 = vunpack.c.l.b16 %v2204
    %v3009 = vunpack.c.h.b16 %v2204
    %v3010 = vunpack.c.l.b16 %v2205
    %v3011 = vunpack.c.h.b16 %v2205
    %v3012 = vunpack.c.l.b16 %v2206
    %v3013 = vunpack.c.h.b16 %v2206
    %v3014 = vunpack.c.l.b16 %v2207
    %v3015 = vunpack.c.h.b16 %v2207
    %v3016 = vunpack.c.l.b16 %v2208
    %v3017 = vunpack.c.h.b16 %v2208
    %v3018 = vunpack.c.l.b16 %v2209
    %v3019 = vunpack.c.h.b16 %v2209
    %v3020 = vunpack.c.l.b16 %v2210
    %v3021 = vunpack.c.h.b16 %v2210
    %v3022 = vunpack.c.l.b16 %v2211
    %v3023 = vunpack.c.h.b16 %v2211
    %v3024 = vunpack.c.l.b16 %v2212
    %v3025 = vunpack.c.h.b16 %v2212
    %v3026 = vunpack.c.l.b16 %v2213
    %v3027 = vunpack.c.h.b16 %v2213
    %v3028 = vunpack.c.l.b16 %v2214
    %v3029 = vunpack.c.h.b16 %v2214
    %v3030 = vunpack.c.l.b16 %v2215
    %v3031 = vunpack.c.h.b16 %v2215
    %v3032 = vunpack.c.l.b16 %v2216
    %v3033 = vunpack.c.h.b16 %v2216
    %v3034 = vunpack.c.l.b16 %v2217
    %v3035 = vunpack.c.h.b16 %v2217
    %v3036 = vunpack.c.l.b16 %v2218
    %v3037 = vunpack.c.h.b16 %v2218
    %v3038 = vunpack.c.l.b16 %v2219
    %v3039 = vunpack.c.h.b16 %v2219
    %v3040 = vunpack.c.l.b16 %v2220
    %v3041 = vunpack.c.h.b16 %v2220
    %v3042 = vunpack.c.l.b16 %v2221
    %v3043 = vunpack.c.h.b16 %v2221
    %v3044 = vunpack.c.l.b16 %v2222
    %v3045 = vunpack.c.h.b16 %v2222
    %v3046 = vunpack.c.l.b16 %v2223
    %v3047 = vunpack.c.h.b16 %v2223
    %v3048 = vpack.c.b16 %v2544, %v2536
    %v3049 = vpack.c.b16 %v2545, %v2537
    %v3050 = vpack.c.b16 %v2546, %v2538
    %v3051 = vpack.c.b16 %v2547, %v2539
    %v3052 = vpack.c.b16 %v2548, %v2540
    %v3053 = vpack.c.b16 %v2549, %v2541
    %v3054 = vpack.c.b16 %v2550, %v2542
    %v3055 = vpack.c.b16 %v2551, %v2543
    %v3056 = vpack.c.b16 %v2560, %v2552
    %v3057 = vpack.c.b16 %v2561, %v2553
    %v3058 = vpack.c.b16 %v2562, %v2554
    %v3059 = vpack.c.b16 %v2563, %v2555
    %v3060 = vpack.c.b16 %v2564, %v2556
    %v3061 = vpack.c.b16 %v2565, %v2557
    %v3062 = vpack.c.b16 %v2566, %v2558
    %v3063 = vpack.c.b16 %v2567, %v2559
    %v3064 = vpack.c.b16 %v2576, %v2568
    %v3065 = vpack.c.b16 %v2577, %v2569
    %v3066 = vpack.c.b16 %v2578, %v2570
    %v3067 = vpack.c.b16 %v2579, %v2571
    %v3068 = vpack.c.b16 %v2580, %v2572
    %v3069 = vpack.c.b16 %v2581, %v2573
    %v3070 = vpack.c.b16 %v2582, %v2574
    %v3071 = vpack.c.b16 %v2583, %v2575
    %v3072 = vpack.c.b16 %v2592, %v2584
    %v3073 = vpack.c.b16 %v2593, %v2585
    %v3074 = vpack.c.b16 %v2594, %v2586
    %v3075 = vpack.c.b16 %v2595, %v2587
    %v3076 = vpack.c.b16 %v2596, %v2588
    %v3077 = vpack.c.b16 %v2597, %v2589
    %v3078 = vpack.c.b16 %v2598, %v2590
    %v3079 = vpack.c.b16 %v2599, %v2591
    %v3080 = vpack.c.b16 %v2608, %v2600
    %v3081 = vpack.c.b16 %v2609, %v2601
    %v3082 = vpack.c.b16 %v2610, %v2602
    %v3083 = vpack.c.b16 %v2611, %v2603
    %v3084 = vpack.c.b16 %v2612, %v2604
    %v3085 = vpack.c.b16 %v2613, %v2605
    %v3086 = vpack.c.b16 %v2614, %v2606
    %v3087 = vpack.c.b16 %v2615, %v2607
    %v3088 = vpack.c.b16 %v2624, %v2616
    %v3089 = vpack.c.b16 %v2625, %v2617
    %v3090 = vpack.c.b16 %v2626, %v2618
    %v3091 = vpack.c.b16 %v2627, %v2619
    %v3092 = vpack.c.b16 %v2628, %v2620
    %v3093 = vpack.c.b16 %v2629, %v2621
    %v3094 = vpack.c.b16 %v2630, %v2622
    %v3095 = vpack.c.b16 %v2631, %v2623
    %v3096 = vpack.c.b16 %v2640, %v2632
    %v3097 = vpack.c.b16 %v2641, %v2633
    %v3098 = vpack.c.b16 %v2642, %v2634
    %v3099 = vpack.c.b16 %v2643, %v2635
    %v3100 = vpack.c.b16 %v2644, %v2636
    %v3101 = vpack.c.b16 %v2645, %v2637
    %v3102 = vpack.c.b16 %v2646, %v2638
    %v3103 = vpack.c.b16 %v2647, %v2639
    %v3104 = vpack.c.b16 %v2656, %v2648
    %v3105 = vpack.c.b16 %v2657, %v2649
    %v3106 = vpack.c.b16 %v2658, %v2650
    %v3107 = vpack.c.b16 %v2659, %v2651
    %v3108 = vpack.c.b16 %v2660, %v2652
    %v3109 = vpack.c.b16 %v2661, %v2653
    %v3110 = vpack.c.b16 %v2662, %v2654
    %v3111 = vpack.c.b16 %v2663, %v2655
    %v3112 = vpack.c.b16 %v2672, %v2664
    %v3113 = vpack.c.b16 %v2673, %v2665
    %v3114 = vpack.c.b16 %v2674, %v2666
    %v3115 = vpack.c.b16 %v2675, %v2667
    %v3116 = vpack.c.b16 %v2676, %v2668
    %v3117 = vpack.c.b16 %v2677, %v2669
    %v3118 = vpack.c.b16 %v2678, %v2670
    %v3119 = vpack.c.b16 %v2679, %v2671
    %v3120 = vpack.c.b16 %v2688, %v2680
    %v3121 = vpack.c.b16 %v2689, %v2681
    %v3122 = vpack.c.b16 %v2690, %v2682
    %v3123 = vpack.c.b16 %v2691, %v2683
    %v3124 = vpack.c.b16 %v2692, %v2684
    %v3125 = vpack.c.b16 %v2693, %v2685
    %v3126 = vpack.c.b16 %v2694, %v2686
    %v3127 = vpack.c.b16 %v2695, %v2687
    %v3128 = vpack.c.b16 %v2704, %v2696
    %v3129 = vpack.c.b16 %v2705, %v2697
    %v3130 = vpack.c.b16 %v2706, %v2698
    %v3131 = vpack.c.b16 %v2707, %v2699
    %v3132 = vpack.c.b16 %v2708, %v2700
    %v3133 = vpack.c.b16 %v2709, %v2701
    %v3134 = vpack.c.b16 %v2710, %v2702
    %v3135 = vpack.c.b16 %v2711, %v2703
    %v3136 = vpack.c.b16 %v2720, %v2712
    %v3137 = vpack.c.b16 %v2721, %v2713
    %v3138 = vpack.c.b16 %v2722, %v2714
    %v3139 = vpack.c.b16 %v2723, %v2715
    %v3140 = vpack.c.b16 %v2724, %v2716
    %v3141 = vpack.c.b16 %v2725, %v2717
    %v3142 = vpack.c.b16 %v2726, %v2718
    %v3143 = vpack.c.b16 %v2727, %v2719
    %v3144 = vpack.c.b16 %v2736, %v2728
    %v3145 = vpack.c.b16 %v2737, %v2729
    %v3146 = vpack.c.b16 %v2738, %v2730
    %v3147 = vpack.c.b16 %v2739, %v2731
    %v3148 = vpack.c.b16 %v2740, %v2732
    %v3149 = vpack.c.b16 %v2741, %v2733
    %v3150 = vpack.c.b16 %v2742, %v2734
    %v3151 = vpack.c.b16 %v2743, %v2735
    %v3152 = vpack.c.b16 %v2752, %v2744
    %v3153 = vpack.c.b16 %v2753, %v2745
    %v3154 = vpack.c.b16 %v2754, %v2746
    %v3155 = vpack.c.b16 %v2755, %v2747
    %v3156 = vpack.c.b16 %v2756, %v2748
    %v3157 = vpack.c.b16 %v2757, %v2749
    %v3158 = vpack.c.b16 %v2758, %v2750
    %v3159 = vpack.c.b16 %v2759, %v2751
    %v3160 = vpack.c.b16 %v2768, %v2760
    %v3161 = vpack.c.b16 %v2769, %v2761
    %v3162 = vpack.c.b16 %v2770, %v2762
    %v3163 = vpack.c.b16 %v2771, %v2763
    %v3164 = vpack.c.b16 %v2772, %v2764
    %v3165 = vpack.c.b16 %v2773, %v2765
    %v3166 = vpack.c.b16 %v2774, %v2766
    %v3167 = vpack.c.b16 %v2775, %v2767
    %v3168 = vpack.c.b16 %v2784, %v2776
    %v3169 = vpack.c.b16 %v2785, %v2777
    %v3170 = vpack.c.b16 %v2786, %v2778
    %v3171 = vpack.c.b16 %v2787, %v2779
    %v3172 = vpack.c.b16 %v2788, %v2780
    %v3173 = vpack.c.b16 %v2789, %v2781
    %v3174 = vpack.c.b16 %v2790, %v2782
    %v3175 = vpack.c.b16 %v2791, %v2783
    %v3176 = vpack.c.b16 %v2800, %v2792
    %v3177 = vpack.c.b16 %v2801, %v2793
    %v3178 = vpack.c.b16 %v2802, %v2794
    %v3179 = vpack.c.b16 %v2803, %v2795
    %v3180 = vpack.c.b16 %v2804, %v2796
    %v3181 = vpack.c.b16 %v2805, %v2797
    %v3182 = vpack.c.b16 %v2806, %v2798
    %v3183 = vpack.c.b16 %v2807, %v2799
    %v3184 = vpack.c.b16 %v2816, %v2808
    %v3185 = vpack.c.b16 %v2817, %v2809
    %v3186 = vpack.c.b16 %v2818, %v2810
    %v3187 = vpack.c.b16 %v2819, %v2811
    %v3188 = vpack.c.b16 %v2820, %v2812
    %v3189 = vpack.c.b16 %v2821, %v2813
    %v3190 = vpack.c.b16 %v2822, %v2814
    %v3191 = vpack.c.b16 %v2823, %v2815
    %v3192 = vpack.c.b16 %v2832, %v2824
    %v3193 = vpack.c.b16 %v2833, %v2825
    %v3194 = vpack.c.b16 %v2834, %v2826
    %v3195 = vpack.c.b16 %v2835, %v2827
    %v3196 = vpack.c.b16 %v2836, %v2828
    %v3197 = vpack.c.b16 %v2837, %v2829
    %v3198 = vpack.c.b16 %v2838, %v2830
    %v3199 = vpack.c.b16 %v2839, %v2831
    %v3200 = vpack.c.b16 %v2848, %v2840
    %v3201 = vpack.c.b16 %v2849, %v2841
    %v3202 = vpack.c.b16 %v2850, %v2842
    %v3203 = vpack.c.b16 %v2851, %v2843
    %v3204 = vpack.c.b16 %v2852, %v2844
    %v3205 = vpack.c.b16 %v2853, %v2845
    %v3206 = vpack.c.b16 %v2854, %v2846
    %v3207 = vpack.c.b16 %v2855, %v2847
    %v3208 = vpack.c.b16 %v2864, %v2856
    %v3209 = vpack.c.b16 %v2865, %v2857
    %v3210 = vpack.c.b16 %v2866, %v2858
    %v3211 = vpack.c.b16 %v2867, %v2859
    %v3212 = vpack.c.b16 %v2868, %v2860
    %v3213 = vpack.c.b16 %v2869, %v2861
    %v3214 = vpack.c.b16 %v2870, %v2862
    %v3215 = vpack.c.b16 %v2871, %v2863
    %v3216 = vpack.c.b16 %v2880, %v2872
    %v3217 = vpack.c.b16 %v2881, %v2873
    %v3218 = vpack.c.b16 %v2882, %v2874
    %v3219 = vpack.c.b16 %v2883, %v2875
    %v3220 = vpack.c.b16 %v2884, %v2876
    %v3221 = vpack.c.b16 %v2885, %v2877
    %v3222 = vpack.c.b16 %v2886, %v2878
    %v3223 = vpack.c.b16 %v2887, %v2879
    %v3224 = vpack.c.b16 %v2896, %v2888
    %v3225 = vpack.c.b16 %v2897, %v2889
    %v3226 = vpack.c.b16 %v2898, %v2890
    %v3227 = vpack.c.b16 %v2899, %v2891
    %v3228 = vpack.c.b16 %v2900, %v2892
    %v3229 = vpack.c.b16 %v2901, %v2893
    %v3230 = vpack.c.b16 %v2902, %v2894
    %v3231 = vpack.c.b16 %v2903, %v2895
    %v3232 = vpack.c.b16 %v2912, %v2904
    %v3233 = vpack.c.b16 %v2913, %v2905
    %v3234 = vpack.c.b16 %v2914, %v2906
    %v3235 = vpack.c.b16 %v2915, %v2907
    %v3236 = vpack.c.b16 %v2916, %v2908
    %v3237 = vpack.c.b16 %v2917, %v2909
    %v3238 = vpack.c.b16 %v2918, %v2910
    %v3239 = vpack.c.b16 %v2919, %v2911
    %v3240 = vpack.c.b16 %v2928, %v2920
    %v3241 = vpack.c.b16 %v2929, %v2921
    %v3242 = vpack.c.b16 %v2930, %v2922
    %v3243 = vpack.c.b16 %v2931, %v2923
    %v3244 = vpack.c.b16 %v2932, %v2924
    %v3245 = vpack.c.b16 %v2933, %v2925
    %v3246 = vpack.c.b16 %v2934, %v2926
    %v3247 = vpack.c.b16 %v2935, %v2927
    %v3248 = vpack.c.b16 %v2944, %v2936
    %v3249 = vpack.c.b16 %v2945, %v2937
    %v3250 = vpack.c.b16 %v2946, %v2938
    %v3251 = vpack.c.b16 %v2947, %v2939
    %v3252 = vpack.c.b16 %v2948, %v2940
    %v3253 = vpack.c.b16 %v2949, %v2941
    %v3254 = vpack.c.b16 %v2950, %v2942
    %v3255 = vpack.c.b16 %v2951, %v2943
    %v3256 = vpack.c.b16 %v2960, %v2952
    %v3257 = vpack.c.b16 %v2961, %v2953
    %v3258 = vpack.c.b16 %v2962, %v2954
    %v3259 = vpack.c.b16 %v2963, %v2955
    %v3260 = vpack.c.b16 %v2964, %v2956
    %v3261 = vpack.c.b16 %v2965, %v2957
    %v3262 = vpack.c.b16 %v2966, %v2958
    %v3263 = vpack.c.b16 %v2967, %v2959
    %v3264 = vpack.c.b16 %v2976, %v2968
    %v3265 = vpack.c.b16 %v2977, %v2969
    %v3266 = vpack.c.b16 %v2978, %v2970
    %v3267 = vpack.c.b16 %v2979, %v2971
    %v3268 = vpack.c.b16 %v2980, %v2972
    %v3269 = vpack.c.b16 %v2981, %v2973
    %v3270 = vpack.c.b16 %v2982, %v2974
    %v3271 = vpack.c.b16 %v2983, %v2975
    %v3272 = vpack.c.b16 %v2992, %v2984
    %v3273 = vpack.c.b16 %v2993, %v2985
    %v3274 = vpack.c.b16 %v2994, %v2986
    %v3275 = vpack.c.b16 %v2995, %v2987
    %v3276 = vpack.c.b16 %v2996, %v2988
    %v3277 = vpack.c.b16 %v2997, %v2989
    %v3278 = vpack.c.b16 %v2998, %v2990
    %v3279 = vpack.c.b16 %v2999, %v2991
    %v3280 = vpack.c.b16 %v3008, %v3000
    %v3281 = vpack.c.b16 %v3009, %v3001
    %v3282 = vpack.c.b16 %v3010, %v3002
    %v3283 = vpack.c.b16 %v3011, %v3003
    %v3284 = vpack.c.b16 %v3012, %v3004
    %v3285 = vpack.c.b16 %v3013, %v3005
    %v3286 = vpack.c.b16 %v3014, %v3006
    %v3287 = vpack.c.b16 %v3015, %v3007
    %v3288 = vpack.c.b16 %v3024, %v3016
    %v3289 = vpack.c.b16 %v3025, %v3017
    %v3290 = vpack.c.b16 %v3026, %v3018
    %v3291 = vpack.c.b16 %v3027, %v3019
    %v3292 = vpack.c.b16 %v3028, %v3020
    %v3293 = vpack.c.b16 %v3029, %v3021
    %v3294 = vpack.c.b16 %v3030, %v3022
    %v3295 = vpack.c.b16 %v3031, %v3023
    %v3296 = vpack.c.b16 %v3040, %v3032
    %v3297 = vpack.c.b16 %v3041, %v3033
    %v3298 = vpack.c.b16 %v3042, %v3034
    %v3299 = vpack.c.b16 %v3043, %v3035
    %v3300 = vpack.c.b16 %v3044, %v3036
    %v3301 = vpack.c.b16 %v3045, %v3037
    %v3302 = vpack.c.b16 %v3046, %v3038
    %v3303 = vpack.c.b16 %v3047, %v3039
    %3560 = vmatprep.subr.bf16.mxu0 %v3049
    %3561 = vmatpush1.bf16.msra.mxu0 %v3048
    %3562 = vmatprep.subr.bf16.mxu0 %v3057
    %3563 = vmatpush1.bf16.msra.mxu0 %v3056
    %3564 = vmatprep.subr.bf16.mxu0 %v3065
    %3565 = vmatpush1.bf16.msra.mxu0 %v3064
    %3566 = vmatprep.subr.bf16.mxu0 %v3073
    %3567 = vmatpush1.bf16.msra.mxu0 %v3072
    %3568 = vmatprep.subr.bf16.mxu0 %v3081
    %3569 = vmatpush1.bf16.msra.mxu0 %v3080
    %3570 = vmatprep.subr.bf16.mxu0 %v3089
    %3571 = vmatpush1.bf16.msra.mxu0 %v3088
    %3572 = vmatprep.subr.bf16.mxu0 %v3097
    %3573 = vmatpush1.bf16.msra.mxu0 %v3096
    %3574 = vmatprep.subr.bf16.mxu0 %v3105
    %3575 = vmatpush1.bf16.msra.mxu0 %v3104
    %3576 = vmatprep.subr.bf16.mxu0 %v3113
    %3577 = vmatpush1.bf16.msra.mxu0 %v3112
    %3578 = vmatprep.subr.bf16.mxu0 %v3121
    %3579 = vmatpush1.bf16.msra.mxu0 %v3120
    %3580 = vmatprep.subr.bf16.mxu0 %v3129
    %3581 = vmatpush1.bf16.msra.mxu0 %v3128
    %3582 = vmatprep.subr.bf16.mxu0 %v3137
    %3583 = vmatpush1.bf16.msra.mxu0 %v3136
    %3584 = vmatprep.subr.bf16.mxu0 %v3145
    %3585 = vmatpush1.bf16.msra.mxu0 %v3144
    %3586 = vmatprep.subr.bf16.mxu0 %v3153
    %3587 = vmatpush1.bf16.msra.mxu0 %v3152
    %3588 = vmatprep.subr.bf16.mxu0 %v3161
    %3589 = vmatpush1.bf16.msra.mxu0 %v3160
    %3590 = vmatprep.subr.bf16.mxu0 %v3169
    %3591 = vmatpush1.bf16.msra.mxu0 %v3168
    %3592 = vmatprep.mubr.bf16.mxu0 %v2273
    %3593 = vmatmul.mubr.bf16.gmra.mrb[0].mxu0 %v2272
    %v3594 = vpop.f32.mrb[0].mxu0
    %v3595 = vadd.f32 %v2229, %v3594
    %v3596 = vpop.f32.mrb[0].mxu0
    %v3597 = vadd.f32 %v2233, %v3596
    %v3598 = vpop.f32.mrb[0].mxu0
    %v3599 = vpop.f32.mrb[0].mxu0
    %3600 = vdwg.mxu0
    %3601 = vmatprep.subr.bf16.mxu0 %v3177
    %3602 = vmatpush1.bf16.msra.mxu0 %v3176
    %3603 = vmatprep.subr.bf16.mxu0 %v3185
    %3604 = vmatpush1.bf16.msra.mxu0 %v3184
    %3605 = vmatprep.subr.bf16.mxu0 %v3193
    %3606 = vmatpush1.bf16.msra.mxu0 %v3192
    %3607 = vmatprep.subr.bf16.mxu0 %v3201
    %3608 = vmatpush1.bf16.msra.mxu0 %v3200
    %3609 = vmatprep.subr.bf16.mxu0 %v3209
    %3610 = vmatpush1.bf16.msra.mxu0 %v3208
    %3611 = vmatprep.subr.bf16.mxu0 %v3217
    %3612 = vmatpush1.bf16.msra.mxu0 %v3216
    %3613 = vmatprep.subr.bf16.mxu0 %v3225
    %3614 = vmatpush1.bf16.msra.mxu0 %v3224
    %3615 = vmatprep.subr.bf16.mxu0 %v3233
    %3616 = vmatpush1.bf16.msra.mxu0 %v3232
    %3617 = vmatprep.subr.bf16.mxu0 %v3241
    %3618 = vmatpush1.bf16.msra.mxu0 %v3240
    %3619 = vmatprep.subr.bf16.mxu0 %v3249
    %3620 = vmatpush1.bf16.msra.mxu0 %v3248
    %3621 = vmatprep.subr.bf16.mxu0 %v3257
    %3622 = vmatpush1.bf16.msra.mxu0 %v3256
    %3623 = vmatprep.subr.bf16.mxu0 %v3265
    %3624 = vmatpush1.bf16.msra.mxu0 %v3264
    %3625 = vmatprep.subr.bf16.mxu0 %v3273
    %3626 = vmatpush1.bf16.msra.mxu0 %v3272
    %3627 = vmatprep.subr.bf16.mxu0 %v3281
    %3628 = vmatpush1.bf16.msra.mxu0 %v3280
    %3629 = vmatprep.subr.bf16.mxu0 %v3289
    %3630 = vmatpush1.bf16.msra.mxu0 %v3288
    %3631 = vmatprep.subr.bf16.mxu0 %v3297
    %3632 = vmatpush1.bf16.msra.mxu0 %v3296
    %3633 = vmatprep.mubr.bf16.mxu0 %v2275
    %3634 = vmatmul.mubr.bf16.gmra.mrb[0].mxu0 %v2274
    %v3635 = vpop.f32.mrb[0].mxu0
    %v3636 = vadd.f32 %v3595, %v3635
    %v3637 = vpop.f32.mrb[0].mxu0
    %v3638 = vadd.f32 %v3597, %v3637
    %v3639 = vpop.f32.mrb[0].mxu0
    %v3640 = vpop.f32.mrb[0].mxu0
    %3641 = vdwg.mxu0
    %3642 = vmatprep.subr.bf16.mxu0 %v3051
    %3643 = vmatpush1.bf16.msra.mxu0 %v3050
    %3644 = vmatprep.subr.bf16.mxu0 %v3059
    %3645 = vmatpush1.bf16.msra.mxu0 %v3058
    %3646 = vmatprep.subr.bf16.mxu0 %v3067
    %3647 = vmatpush1.bf16.msra.mxu0 %v3066
    %3648 = vmatprep.subr.bf16.mxu0 %v3075
    %3649 = vmatpush1.bf16.msra.mxu0 %v3074
    %3650 = vmatprep.subr.bf16.mxu0 %v3083
    %3651 = vmatpush1.bf16.msra.mxu0 %v3082
    %3652 = vmatprep.subr.bf16.mxu0 %v3091
    %3653 = vmatpush1.bf16.msra.mxu0 %v3090
    %3654 = vmatprep.subr.bf16.mxu0 %v3099
    %3655 = vmatpush1.bf16.msra.mxu0 %v3098
    %3656 = vmatprep.subr.bf16.mxu0 %v3107
    %3657 = vmatpush1.bf16.msra.mxu0 %v3106
    %3658 = vmatprep.subr.bf16.mxu0 %v3115
    %3659 = vmatpush1.bf16.msra.mxu0 %v3114
    %3660 = vmatprep.subr.bf16.mxu0 %v3123
    %3661 = vmatpush1.bf16.msra.mxu0 %v3122
    %3662 = vmatprep.subr.bf16.mxu0 %v3131
    %3663 = vmatpush1.bf16.msra.mxu0 %v3130
    %3664 = vmatprep.subr.bf16.mxu0 %v3139
    %3665 = vmatpush1.bf16.msra.mxu0 %v3138
    %3666 = vmatprep.subr.bf16.mxu0 %v3147
    %3667 = vmatpush1.bf16.msra.mxu0 %v3146
    %3668 = vmatprep.subr.bf16.mxu0 %v3155
    %3669 = vmatpush1.bf16.msra.mxu0 %v3154
    %3670 = vmatprep.subr.bf16.mxu0 %v3163
    %3671 = vmatpush1.bf16.msra.mxu0 %v3162
    %3672 = vmatprep.subr.bf16.mxu0 %v3171
    %3673 = vmatpush1.bf16.msra.mxu0 %v3170
    %3674 = vmatprep.mubr.bf16.mxu0 %v2273
    %3675 = vmatmul.mubr.bf16.gmra.mrb[0].mxu0 %v2272
    %v3676 = vpop.f32.mrb[0].mxu0
    %v3677 = vadd.f32 %v2237, %v3676
    %v3678 = vpop.f32.mrb[0].mxu0
    %v3679 = vadd.f32 %v2241, %v3678
    %v3680 = vpop.f32.mrb[0].mxu0
    %v3681 = vpop.f32.mrb[0].mxu0
    %3682 = vdwg.mxu0
    %3683 = vmatprep.subr.bf16.mxu0 %v3179
    %3684 = vmatpush1.bf16.msra.mxu0 %v3178
    %3685 = vmatprep.subr.bf16.mxu0 %v3187
    %3686 = vmatpush1.bf16.msra.mxu0 %v3186
    %3687 = vmatprep.subr.bf16.mxu0 %v3195
    %3688 = vmatpush1.bf16.msra.mxu0 %v3194
    %3689 = vmatprep.subr.bf16.mxu0 %v3203
    %3690 = vmatpush1.bf16.msra.mxu0 %v3202
    %3691 = vmatprep.subr.bf16.mxu0 %v3211
    %3692 = vmatpush1.bf16.msra.mxu0 %v3210
    %3693 = vmatprep.subr.bf16.mxu0 %v3219
    %3694 = vmatpush1.bf16.msra.mxu0 %v3218
    %3695 = vmatprep.subr.bf16.mxu0 %v3227
    %3696 = vmatpush1.bf16.msra.mxu0 %v3226
    %3697 = vmatprep.subr.bf16.mxu0 %v3235
    %3698 = vmatpush1.bf16.msra.mxu0 %v3234
    %3699 = vmatprep.subr.bf16.mxu0 %v3243
    %3700 = vmatpush1.bf16.msra.mxu0 %v3242
    %3701 = vmatprep.subr.bf16.mxu0 %v3251
    %3702 = vmatpush1.bf16.msra.mxu0 %v3250
    %3703 = vmatprep.subr.bf16.mxu0 %v3259
    %3704 = vmatpush1.bf16.msra.mxu0 %v3258
    %3705 = vmatprep.subr.bf16.mxu0 %v3267
    %3706 = vmatpush1.bf16.msra.mxu0 %v3266
    %3707 = vmatprep.subr.bf16.mxu0 %v3275
    %3708 = vmatpush1.bf16.msra.mxu0 %v3274
    %3709 = vmatprep.subr.bf16.mxu0 %v3283
    %3710 = vmatpush1.bf16.msra.mxu0 %v3282
    %3711 = vmatprep.subr.bf16.mxu0 %v3291
    %3712 = vmatpush1.bf16.msra.mxu0 %v3290
    %3713 = vmatprep.subr.bf16.mxu0 %v3299
    %3714 = vmatpush1.bf16.msra.mxu0 %v3298
    %3715 = vmatprep.mubr.bf16.mxu0 %v2275
    %3716 = vmatmul.mubr.bf16.gmra.mrb[0].mxu0 %v2274
    %v3717 = vpop.f32.mrb[0].mxu0
    %v3718 = vadd.f32 %v3677, %v3717
    %v3719 = vpop.f32.mrb[0].mxu0
    %v3720 = vadd.f32 %v3679, %v3719
    %v3721 = vpop.f32.mrb[0].mxu0
    %v3722 = vpop.f32.mrb[0].mxu0
    %3723 = vdwg.mxu0
    %3724 = vmatprep.subr.bf16.mxu0 %v3053
    %3725 = vmatpush1.bf16.msra.mxu0 %v3052
    %3726 = vmatprep.subr.bf16.mxu0 %v3061
    %3727 = vmatpush1.bf16.msra.mxu0 %v3060
    %3728 = vmatprep.subr.bf16.mxu0 %v3069
    %3729 = vmatpush1.bf16.msra.mxu0 %v3068
    %3730 = vmatprep.subr.bf16.mxu0 %v3077
    %3731 = vmatpush1.bf16.msra.mxu0 %v3076
    %3732 = vmatprep.subr.bf16.mxu0 %v3085
    %3733 = vmatpush1.bf16.msra.mxu0 %v3084
    %3734 = vmatprep.subr.bf16.mxu0 %v3093
    %3735 = vmatpush1.bf16.msra.mxu0 %v3092
    %3736 = vmatprep.subr.bf16.mxu0 %v3101
    %3737 = vmatpush1.bf16.msra.mxu0 %v3100
    %3738 = vmatprep.subr.bf16.mxu0 %v3109
    %3739 = vmatpush1.bf16.msra.mxu0 %v3108
    %3740 = vmatprep.subr.bf16.mxu0 %v3117
    %3741 = vmatpush1.bf16.msra.mxu0 %v3116
    %3742 = vmatprep.subr.bf16.mxu0 %v3125
    %3743 = vmatpush1.bf16.msra.mxu0 %v3124
    %3744 = vmatprep.subr.bf16.mxu0 %v3133
    %3745 = vmatpush1.bf16.msra.mxu0 %v3132
    %3746 = vmatprep.subr.bf16.mxu0 %v3141
    %3747 = vmatpush1.bf16.msra.mxu0 %v3140
    %3748 = vmatprep.subr.bf16.mxu0 %v3149
    %3749 = vmatpush1.bf16.msra.mxu0 %v3148
    %3750 = vmatprep.subr.bf16.mxu0 %v3157
    %3751 = vmatpush1.bf16.msra.mxu0 %v3156
    %3752 = vmatprep.subr.bf16.mxu0 %v3165
    %3753 = vmatpush1.bf16.msra.mxu0 %v3164
    %3754 = vmatprep.subr.bf16.mxu0 %v3173
    %3755 = vmatpush1.bf16.msra.mxu0 %v3172
    %3756 = vmatprep.mubr.bf16.mxu0 %v2273
    %3757 = vmatmul.mubr.bf16.gmra.mrb[0].mxu0 %v2272
    %v3758 = vpop.f32.mrb[0].mxu0
    %v3759 = vadd.f32 %v2245, %v3758
    %v3760 = vpop.f32.mrb[0].mxu0
    %v3761 = vadd.f32 %v2249, %v3760
    %v3762 = vpop.f32.mrb[0].mxu0
    %v3763 = vpop.f32.mrb[0].mxu0
    %3764 = vdwg.mxu0
    %3765 = vmatprep.subr.bf16.mxu0 %v3181
    %3766 = vmatpush1.bf16.msra.mxu0 %v3180
    %3767 = vmatprep.subr.bf16.mxu0 %v3189
    %3768 = vmatpush1.bf16.msra.mxu0 %v3188
    %3769 = vmatprep.subr.bf16.mxu0 %v3197
    %3770 = vmatpush1.bf16.msra.mxu0 %v3196
    %3771 = vmatprep.subr.bf16.mxu0 %v3205
    %3772 = vmatpush1.bf16.msra.mxu0 %v3204
    %3773 = vmatprep.subr.bf16.mxu0 %v3213
    %3774 = vmatpush1.bf16.msra.mxu0 %v3212
    %3775 = vmatprep.subr.bf16.mxu0 %v3221
    %3776 = vmatpush1.bf16.msra.mxu0 %v3220
    %3777 = vmatprep.subr.bf16.mxu0 %v3229
    %3778 = vmatpush1.bf16.msra.mxu0 %v3228
    %3779 = vmatprep.subr.bf16.mxu0 %v3237
    %3780 = vmatpush1.bf16.msra.mxu0 %v3236
    %3781 = vmatprep.subr.bf16.mxu0 %v3245
    %3782 = vmatpush1.bf16.msra.mxu0 %v3244
    %3783 = vmatprep.subr.bf16.mxu0 %v3253
    %3784 = vmatpush1.bf16.msra.mxu0 %v3252
    %3785 = vmatprep.subr.bf16.mxu0 %v3261
    %3786 = vmatpush1.bf16.msra.mxu0 %v3260
    %3787 = vmatprep.subr.bf16.mxu0 %v3269
    %3788 = vmatpush1.bf16.msra.mxu0 %v3268
    %3789 = vmatprep.subr.bf16.mxu0 %v3277
    %3790 = vmatpush1.bf16.msra.mxu0 %v3276
    %3791 = vmatprep.subr.bf16.mxu0 %v3285
    %3792 = vmatpush1.bf16.msra.mxu0 %v3284
    %3793 = vmatprep.subr.bf16.mxu0 %v3293
    %3794 = vmatpush1.bf16.msra.mxu0 %v3292
    %3795 = vmatprep.subr.bf16.mxu0 %v3301
    %3796 = vmatpush1.bf16.msra.mxu0 %v3300
    %3797 = vmatprep.mubr.bf16.mxu0 %v2275
    %3798 = vmatmul.mubr.bf16.gmra.mrb[0].mxu0 %v2274
    %v3799 = vpop.f32.mrb[0].mxu0
    %v3800 = vadd.f32 %v3759, %v3799
    %v3801 = vpop.f32.mrb[0].mxu0
    %v3802 = vadd.f32 %v3761, %v3801
    %v3803 = vpop.f32.mrb[0].mxu0
    %v3804 = vpop.f32.mrb[0].mxu0
    %3805 = vdwg.mxu0
    %3806 = vmatprep.subr.bf16.mxu0 %v3055
    %3807 = vmatpush1.bf16.msra.mxu0 %v3054
    %3808 = vmatprep.subr.bf16.mxu0 %v3063
    %3809 = vmatpush1.bf16.msra.mxu0 %v3062
    %3810 = vmatprep.subr.bf16.mxu0 %v3071
    %3811 = vmatpush1.bf16.msra.mxu0 %v3070
    %3812 = vmatprep.subr.bf16.mxu0 %v3079
    %3813 = vmatpush1.bf16.msra.mxu0 %v3078
    %3814 = vmatprep.subr.bf16.mxu0 %v3087
    %3815 = vmatpush1.bf16.msra.mxu0 %v3086
    %3816 = vmatprep.subr.bf16.mxu0 %v3095
    %3817 = vmatpush1.bf16.msra.mxu0 %v3094
    %3818 = vmatprep.subr.bf16.mxu0 %v3103
    %3819 = vmatpush1.bf16.msra.mxu0 %v3102
    %3820 = vmatprep.subr.bf16.mxu0 %v3111
    %3821 = vmatpush1.bf16.msra.mxu0 %v3110
    %3822 = vmatprep.subr.bf16.mxu0 %v3119
    %3823 = vmatpush1.bf16.msra.mxu0 %v3118
    %3824 = vmatprep.subr.bf16.mxu0 %v3127
    %3825 = vmatpush1.bf16.msra.mxu0 %v3126
    %3826 = vmatprep.subr.bf16.mxu0 %v3135
    %3827 = vmatpush1.bf16.msra.mxu0 %v3134
    %3828 = vmatprep.subr.bf16.mxu0 %v3143
    %3829 = vmatpush1.bf16.msra.mxu0 %v3142
    %3830 = vmatprep.subr.bf16.mxu0 %v3151
    %3831 = vmatpush1.bf16.msra.mxu0 %v3150
    %3832 = vmatprep.subr.bf16.mxu0 %v3159
    %3833 = vmatpush1.bf16.msra.mxu0 %v3158
    %3834 = vmatprep.subr.bf16.mxu0 %v3167
    %3835 = vmatpush1.bf16.msra.mxu0 %v3166
    %3836 = vmatprep.subr.bf16.mxu0 %v3175
    %3837 = vmatpush1.bf16.msra.mxu0 %v3174
    %3838 = vmatprep.mubr.bf16.mxu0 %v2273
    %3839 = vmatmul.mubr.bf16.gmra.mrb[0].mxu0 %v2272
    %v3840 = vpop.f32.mrb[0].mxu0
    %v3841 = vadd.f32 %v2253, %v3840
    %v3842 = vpop.f32.mrb[0].mxu0
    %v3843 = vadd.f32 %v2257, %v3842
    %v3844 = vpop.f32.mrb[0].mxu0
    %v3845 = vpop.f32.mrb[0].mxu0
    %3846 = vdwg.mxu0
    %3847 = vmatprep.subr.bf16.mxu0 %v3183
    %3848 = vmatpush1.bf16.msra.mxu0 %v3182
    %3849 = vmatprep.subr.bf16.mxu0 %v3191
    %3850 = vmatpush1.bf16.msra.mxu0 %v3190
    %3851 = vmatprep.subr.bf16.mxu0 %v3199
    %3852 = vmatpush1.bf16.msra.mxu0 %v3198
    %3853 = vmatprep.subr.bf16.mxu0 %v3207
    %3854 = vmatpush1.bf16.msra.mxu0 %v3206
    %3855 = vmatprep.subr.bf16.mxu0 %v3215
    %3856 = vmatpush1.bf16.msra.mxu0 %v3214
    %3857 = vmatprep.subr.bf16.mxu0 %v3223
    %3858 = vmatpush1.bf16.msra.mxu0 %v3222
    %3859 = vmatprep.subr.bf16.mxu0 %v3231
    %3860 = vmatpush1.bf16.msra.mxu0 %v3230
    %3861 = vmatprep.subr.bf16.mxu0 %v3239
    %3862 = vmatpush1.bf16.msra.mxu0 %v3238
    %3863 = vmatprep.subr.bf16.mxu0 %v3247
    %3864 = vmatpush1.bf16.msra.mxu0 %v3246
    %3865 = vmatprep.subr.bf16.mxu0 %v3255
    %3866 = vmatpush1.bf16.msra.mxu0 %v3254
    %3867 = vmatprep.subr.bf16.mxu0 %v3263
    %3868 = vmatpush1.bf16.msra.mxu0 %v3262
    %3869 = vmatprep.subr.bf16.mxu0 %v3271
    %3870 = vmatpush1.bf16.msra.mxu0 %v3270
    %3871 = vmatprep.subr.bf16.mxu0 %v3279
    %3872 = vmatpush1.bf16.msra.mxu0 %v3278
    %3873 = vmatprep.subr.bf16.mxu0 %v3287
    %3874 = vmatpush1.bf16.msra.mxu0 %v3286
    %3875 = vmatprep.subr.bf16.mxu0 %v3295
    %3876 = vmatpush1.bf16.msra.mxu0 %v3294
    %3877 = vmatprep.subr.bf16.mxu0 %v3303
    %3878 = vmatpush1.bf16.msra.mxu0 %v3302
    %3879 = vmatprep.mubr.bf16.mxu0 %v2275
    %3880 = vmatmul.mubr.bf16.gmra.mrb[0].mxu0 %v2274
    %v3881 = vpop.f32.mrb[0].mxu0
    %v3882 = vadd.f32 %v3841, %v3881
    %v3883 = vpop.f32.mrb[0].mxu0
    %v3884 = vadd.f32 %v3843, %v3883
    %v3885 = vpop.f32.mrb[0].mxu0
    %v3886 = vpop.f32.mrb[0].mxu0
    %3887 = vdwg.mxu0
    %v3888 = vmax.f32 %v3636, 0.0
    %v3889 = vmax.f32 %v3638, 0.0
    %v3890 = vmax.f32 %v3718, 0.0
    %v3891 = vmax.f32 %v3720, 0.0
    %v3892 = vmax.f32 %v3800, 0.0
    %v3893 = vmax.f32 %v3802, 0.0
    %v3894 = vmax.f32 %v3882, 0.0
    %v3895 = vmax.f32 %v3884, 0.0
    %v3896 = vpack.c.bf16 %v3888, %v3888
    %v3897 = vpack.c.bf16 %v3889, %v3889
    %v3898 = vpack.c.bf16 %v3890, %v3890
    %v3899 = vpack.c.bf16 %v3891, %v3891
    %v3900 = vpack.c.bf16 %v3892, %v3892
    %v3901 = vpack.c.bf16 %v3893, %v3893
    %v3902 = vpack.c.bf16 %v3894, %v3894
    %v3903 = vpack.c.bf16 %v3895, %v3895
    %v3912 = vunpack.c.l.b16 %v3896
    %v3913 = vunpack.c.l.b16 %v3897
    %v3914 = vunpack.c.l.b16 %v3898
    %v3915 = vunpack.c.l.b16 %v3899
    %v3916 = vunpack.c.l.b16 %v3900
    %v3917 = vunpack.c.l.b16 %v3901
    %v3918 = vunpack.c.l.b16 %v3902
    %v3919 = vunpack.c.l.b16 %v3903
    %v3920 = vpack.c.b16 %v3913, %v3912
    %v3921 = vpack.c.b16 %v3915, %v3914
    %v3922 = vpack.c.b16 %v3917, %v3916
    %v3923 = vpack.c.b16 %v3919, %v3918
    %3928 = vst [vmem:[#allocation9] sm:$0xff] %v3920
    %3929 = vst [vmem:[#allocation9 + $0x8] sm:$0xff] %v3921
    %3930 = vst [vmem:[#allocation9 + $0x10] sm:$0xff] %v3922
    %3931 = vst [vmem:[#allocation9 + $0x18] sm:$0xff] %v3923
    // Predicated region
    $region34: #{_forward.1} parent=1 // pred_check
      _
    $region35: #{_forward.1} parent=1 // pred_check_branch
      %3933 = sbr.rel (0) target = $region37
    $region36: #{_forward.1} parent=1 // pred_region
      %s3935 = ssub.s32 512, 512
      %3936 = vsyncadd [#allocation5], %s3935
      %s3938 = sshll.u32 [#allocation9], 4
      %s3939 = int_to_ptr.vmem [resolvable:$true] %s3938
      %3941 = dma.vmem_to_hbm [thread:$0]  %s3939, 512, %s5, [#allocation5]
    $region37: #{_forward.1} parent=1 // pred_fallthru
      _
    // Predicated region
    $region38: #{_forward.1} parent=1 // pred_check
      _
    $region39: #{_forward.1} parent=1 // pred_check_branch
      %3943 = sbr.rel (0) target = $region41
    $region40: #{_forward.1} parent=1 // pred_region
      %3944 = dma.done [#allocation5], 512
    $region41: #{_forward.1} parent=1 // pred_fallthru
      _
    %3945 = vsyncpa [#allocation4], 1
    %3946 = vsyncpa [#allocation7], 1
    %3947 = vsyncpa [#allocation5], 1

</llo_original>
